<compile_context>
chip_gen: v5e
topology: v5e:2x2
jax: 0.10.0
libtpu: 0.0.40
codegen_flags: <defaults>
</compile_context>

<pallas_src>
import functools

import jax
import jax.numpy as jnp
from jax.experimental import pallas as pl
from jax.experimental.pallas import tpu as pltpu


# ----------------------------------------------------------------------------
# helpers
# ----------------------------------------------------------------------------
def _round_up(v, m):
    return (v + m - 1) // m * m


def _cdiv(a, b):
    return -(-a // b)


def _vmem_limit_bytes():
    """Generation-aware VMEM budget: ~3/4 of per-core capacity, 48 MiB fallback."""
    try:
        cap = getattr(pltpu.get_tpu_info(), "vmem_capacity_bytes", None)
    except Exception:
        cap = None
    if not cap or cap <= 0:
        return 48 * 1024 * 1024
    return int(cap) * 3 // 4


_VMEM_LIMIT = _vmem_limit_bytes()
_FULL_K_MAX = 2048          # K <= this -> single full-K block (nk == 1 fast path)


def _m_tiles(m, tm_max=512, min_split=32):
    """(padded M, tile, #tiles) with minimal padding; >=2 tiles when M >= 32 so
    both v7x TensorCores get a block (free on single-TC v5e/v6e)."""
    nm = max(1, _cdiv(m, tm_max))
    if m >= min_split:
        nm = max(nm, 2)
    tm = _round_up(_cdiv(m, nm), 16)
    return nm * tm, tm, nm


def _pick_tn(np_, tn_max=512):
    """Np is a multiple of 128 (padded at init); pick a lane-dense tile."""
    if np_ <= tn_max:
        return np_
    for t in (512, 256, 128):
        if np_ % t == 0:
            return t
    return 128


# ----------------------------------------------------------------------------
# Pallas kernel 1: matmul + bias + activation, full-K fast path (nk == 1)
#   out = act(x @ w + b)    bf16 inputs, f32 accumulate, no scratch, no pl.when
# ----------------------------------------------------------------------------
def _mm_kernel(x_ref, w_ref, b_ref, o_ref, *, act):
    acc = jnp.dot(x_ref[...], w_ref[...], preferred_element_type=jnp.float32)
    acc = acc + b_ref[...]
    if act == "relu":
        acc = jnp.maximum(acc, 0.0)
    elif act == "sigmoid":
        acc = jax.nn.sigmoid(acc)
    o_ref[...] = acc.astype(o_ref.dtype)


# Split-K fallback (only used when K > _FULL_K_MAX; never hit at these shapes).
def _mm_kernel_ksplit(x_ref, w_ref, b_ref, o_ref, acc_ref, *, act, nk):
    @pl.when(pl.program_id(2) == 0)
    def _init():
        acc_ref[...] = jnp.zeros_like(acc_ref)

    acc_ref[...] += jnp.dot(x_ref[...], w_ref[...],
                            preferred_element_type=jnp.float32)

    @pl.when(pl.program_id(2) == nk - 1)
    def _finalize():
        acc = acc_ref[...] + b_ref[...]
        if act == "relu":
            acc = jnp.maximum(acc, 0.0)
        elif act == "sigmoid":
            acc = jax.nn.sigmoid(acc)
        o_ref[...] = acc.astype(o_ref.dtype)


def matmul_bias_act(x, w, b, act="none", out_dtype=jnp.bfloat16):
    """x:(M,K) @ w:(K,Np) + b:(1,Np), fused activation.
    w / b are PRE-padded (Np multiple of 128) and pre-cast at init."""
    M, K = x.shape
    Kw, Np = w.shape
    assert Kw == K and b.shape == (1, Np)

    Mp, tm, nm = _m_tiles(M)
    tn = _pick_tn(Np)
    nn = Np // tn

    xb = x.astype(jnp.bfloat16)
    if Mp != M:
        xb = jnp.pad(xb, ((0, Mp - M), (0, 0)))

    if K <= _FULL_K_MAX:
        out = pl.pallas_call(
            functools.partial(_mm_kernel, act=act),
            out_shape=jax.ShapeDtypeStruct((Mp, Np), out_dtype),
            grid=(nm, nn),
            in_specs=[pl.BlockSpec((tm, K), lambda i, j: (i, 0)),
                      pl.BlockSpec((K, tn), lambda i, j: (0, j)),
                      pl.BlockSpec((1, tn), lambda i, j: (0, j))],
            out_specs=pl.BlockSpec((tm, tn), lambda i, j: (i, j)),
            compiler_params=pltpu.CompilerParams(
                dimension_semantics=("parallel", "parallel"),
                vmem_limit_bytes=_VMEM_LIMIT),
        )(xb, w, b)
    else:
        tk = next((t for t in (2048, 1024, 512, 256, 128) if K % t == 0), K)
        nk = K // tk
        out = pl.pallas_call(
            functools.partial(_mm_kernel_ksplit, act=act, nk=nk),
            out_shape=jax.ShapeDtypeStruct((Mp, Np), out_dtype),
            grid=(nm, nn, nk),
            in_specs=[pl.BlockSpec((tm, tk), lambda i, j, k: (i, k)),
                      pl.BlockSpec((tk, tn), lambda i, j, k: (k, j)),
                      pl.BlockSpec((1, tn), lambda i, j, k: (0, j))],
            out_specs=pl.BlockSpec((tm, tn), lambda i, j, k: (i, j)),
            scratch_shapes=[pltpu.VMEM((tm, tn), jnp.float32)],
            compiler_params=pltpu.CompilerParams(
                dimension_semantics=("parallel", "parallel", "arbitrary"),
                vmem_limit_bytes=_VMEM_LIMIT),
        )(xb, w, b)

    return out[:M] if Mp != M else out


# ----------------------------------------------------------------------------
# Pallas kernel 2: fused encoder head + reparameterize + fc_decode
#   [mu|logvar] = h @ w_head + b_head ; z = mu + eps*exp(0.5*logvar)
#   hdec = z @ w_dec + b_dec          (z stays in VMEM, never hits HBM twice)
# ----------------------------------------------------------------------------
def _head_dec_kernel(h_ref, wh_ref, bh_ref, eps_ref, wd_ref, bd_ref,
                     mu_ref, lv_ref, z_ref, hd_ref, z_scr, *, lp):
    @pl.when(pl.program_id(1) == 0)
    def _head():
        acc = jnp.dot(h_ref[...], wh_ref[...],
                      preferred_element_type=jnp.float32) + bh_ref[...]
        mu = acc[:, :lp]                     # lane-tile-aligned static split
        lv = acc[:, lp:]
        z = mu + eps_ref[...] * jnp.exp(0.5 * lv)    # exp -> EUP slot
        mu_ref[...] = mu
        lv_ref[...] = lv
        z_ref[...] = z
        z_scr[...] = z.astype(z_scr.dtype)

    hd = jnp.dot(z_scr[...], wd_ref[...],
                 preferred_element_type=jnp.float32) + bd_ref[...]
    hd_ref[...] = hd.astype(hd_ref.dtype)


def encode_head_decode(h, params, eps, latent_dim):
    """h:(B,F) bf16.  Returns mu, logvar, z (B,latent) f32 and hdec (B,FD) bf16."""
    # TODO(synk): keeps the full feature_dim K resident per M tile; a K-split
    # stage would be needed for very large feature_dim (not these shapes).
    wh, bh = params["head_w"], params["head_b"]
    wd, bd = params["dec_w"], params["dec_b"]
    B, F = h.shape
    two_lp = wh.shape[1]
    lp = two_lp // 2
    FDp = wd.shape[1]

    Mp, tm, nm = _m_tiles(B)
    tn = _pick_tn(FDp)
    nj = FDp // tn

    hb = h.astype(jnp.bfloat16)
    if Mp != B:
        hb = jnp.pad(hb, ((0, Mp - B), (0, 0)))
    eb = jnp.pad(eps.astype(jnp.float32),
                 ((0, Mp - B), (0, lp - latent_dim)))

    mu, lv, z, hd = pl.pallas_call(
        functools.partial(_head_dec_kernel, lp=lp),
        out_shape=(jax.ShapeDtypeStruct((Mp, lp), jnp.float32),
                   jax.ShapeDtypeStruct((Mp, lp), jnp.float32),
                   jax.ShapeDtypeStruct((Mp, lp), jnp.float32),
                   jax.ShapeDtypeStruct((Mp, FDp), jnp.bfloat16)),
        grid=(nm, nj),
        in_specs=[pl.BlockSpec((tm, F), lambda i, j: (i, 0)),
                  pl.BlockSpec((F, two_lp), lambda i, j: (0, 0)),
                  pl.BlockSpec((1, two_lp), lambda i, j: (0, 0)),
                  pl.BlockSpec((tm, lp), lambda i, j: (i, 0)),
                  pl.BlockSpec((lp, tn), lambda i, j: (0, j)),
                  pl.BlockSpec((1, tn), lambda i, j: (0, j))],
        out_specs=(pl.BlockSpec((tm, lp), lambda i, j: (i, 0)),
                   pl.BlockSpec((tm, lp), lambda i, j: (i, 0)),
                   pl.BlockSpec((tm, lp), lambda i, j: (i, 0)),
                   pl.BlockSpec((tm, tn), lambda i, j: (i, j))),
        scratch_shapes=[pltpu.VMEM((tm, lp), jnp.bfloat16)],
        compiler_params=pltpu.CompilerParams(
            dimension_semantics=("parallel", "arbitrary"),
            vmem_limit_bytes=_VMEM_LIMIT),
    )(hb, wh, bh, eb, wd, bd)

    return (mu[:B, :latent_dim], lv[:B, :latent_dim], z[:B, :latent_dim],
            hd[:B])


# ----------------------------------------------------------------------------
# NHWC conv / transposed-conv wrappers
# ----------------------------------------------------------------------------
def conv2d_s2k4(x, w, b, act, out_dtype, cout):
    """Conv2d(kernel=4, stride=2, padding=1) on an NHWC bf16 map.
    w:(16*Cin, Np) bf16, rows (kh, kw, ci); b:(1, Np) f32 (padded at init)."""
    B, H, W, Cin = x.shape
    OH = (H + 2 - 4) // 2 + 1
    OW = (W + 2 - 4) // 2 + 1
    xp = jnp.pad(x, ((0, 0), (1, 1), (1, 1), (0, 0)))
    # TODO(synk): im2col patches are still materialized by XLA (not fused into
    # the kernel via pl.ds window reads / a tap grid axis) -- remaining HBM item.
    cols = [xp[:, kh:kh + 2 * OH:2, kw:kw + 2 * OW:2, :]
            for kh in range(4) for kw in range(4)]
    patches = jnp.concatenate(cols, axis=-1).reshape(B * OH * OW, 16 * Cin)
    out = matmul_bias_act(patches, w, b, act, out_dtype)
    if out.shape[1] != cout:
        out = out[:, :cout]
    return out.reshape(B, OH, OW, cout)


def deconv_s2k4(x, w3, b3, act, out_dtype, cout):
    """ConvTranspose2d(kernel=4, stride=2, padding=1) on an NHWC map as ONE
    stride-1 3x3 conv whose output channels are the 4 sub-pixel phases
    (py, px, c), then a cheap depth-to-space.  w3:(9*Cin, Np>=4*cout) bf16."""
    B, H, W, Cin = x.shape
    xp = jnp.pad(x, ((0, 0), (1, 1), (1, 1), (0, 0)))
    cols = [xp[:, r:r + H, s:s + W, :] for r in range(3) for s in range(3)]
    patches = jnp.concatenate(cols, axis=-1).reshape(B * H * W, 9 * Cin)
    out = matmul_bias_act(patches, w3, b3, act, out_dtype)
    if out.shape[1] != 4 * cout:
        out = out[:, :4 * cout]
    out = out.reshape(B, H, W, 2, 2, cout)                 # (..., py, px, c)
    out = out.transpose(0, 1, 3, 2, 4, 5).reshape(B, 2 * H, 2 * W, cout)
    return out


# ----------------------------------------------------------------------------
# One-time (init) weight layout conversions (what a checkpoint loader would do)
# ----------------------------------------------------------------------------
def _conv_w_to_mat(w):
    """Conv2d weight (Cout,Cin,k,k) -> bf16 (k*k*Cin, roundup(Cout,128)),
    rows ordered (kh, kw, ci)."""
    Cout, Cin, k, _ = w.shape
    m = jnp.transpose(w, (2, 3, 1, 0)).reshape(k * k * Cin, Cout)
    Np = _round_up(Cout, 128)
    return jnp.pad(m, ((0, 0), (0, Np - Cout))).astype(jnp.bfloat16)


def _tconv_w_to_3x3(w):
    """ConvTranspose2d weight (Cin,Cout,4,4), stride=2, padding=1 ->
    bf16 (9*Cin, roundup(4*Cout,128)): single 3x3 stride-1 conv whose columns
    are the 4 phases (py,px,co); unused taps are zero."""
    Cin, Cout = w.shape[0], w.shape[1]
    # (phase, 3x3-window row) -> original 4x4 kernel tap (valid entries only)
    tap = {(0, 0): 3, (0, 1): 1, (1, 1): 2, (1, 2): 0}
    w3 = jnp.zeros((3, 3, Cin, 2, 2, Cout), jnp.float32)
    for (py, r), ky in tap.items():
        for (px, s), kx in tap.items():
            w3 = w3.at[r, s, :, py, px, :].set(w[:, :, ky, kx])
    w3 = w3.reshape(9 * Cin, 4 * Cout)
    Np = _round_up(4 * Cout, 128)
    return jnp.pad(w3, ((0, 0), (0, Np - 4 * Cout))).astype(jnp.bfloat16)


def _rows_chw_to_hwc(w, C, H, W):   # (C*H*W, out) -> (H*W*C, out)
    return w.reshape(C, H, W, -1).transpose(1, 2, 0, 3).reshape(H * W * C, -1)


def _cols_chw_to_hwc(w, C, H, W):   # (in, C*H*W) -> (in, H*W*C)
    n = w.shape[0]
    return w.reshape(n, C, H, W).transpose(0, 2, 3, 1).reshape(n, H * W * C)


def _vec_chw_to_hwc(b, C, H, W):
    return b.reshape(C, H, W).transpose(1, 2, 0).reshape(-1)


def _b_row(b, np_):                 # bias -> padded (1, Np) f32
    return jnp.pad(b.astype(jnp.float32), (0, np_ - b.shape[0]))[None, :]


# ----------------------------------------------------------------------------
# ConvVAE parameters (padded / cast to kernel layouts ONCE here) + forward
# ----------------------------------------------------------------------------
def init_params(key, in_channels, latent_dim, feat_hw):
    feature_dim = 128 * feat_hw * feat_hw
    lp = _round_up(latent_dim, 128)
    ks = jax.random.split(key, 18)
    s = 0.05

    def nrm(k, shape):
        return (s * jax.random.normal(k, shape)).astype(jnp.float32)

    # PyTorch-layout raw params (synthetic, stand-in for a checkpoint)
    enc1_w = nrm(ks[0], (32, in_channels, 4, 4)); enc1_b = nrm(ks[1], (32,))
    enc2_w = nrm(ks[2], (64, 32, 4, 4));          enc2_b = nrm(ks[3], (64,))
    enc3_w = nrm(ks[4], (128, 64, 4, 4));         enc3_b = nrm(ks[5], (128,))
    mu_w = nrm(ks[6], (feature_dim, latent_dim)); mu_b = nrm(ks[7], (latent_dim,))
    lv_w = nrm(ks[8], (feature_dim, latent_dim)); lv_b = nrm(ks[9], (latent_dim,))
    dec_w = nrm(ks[10], (latent_dim, feature_dim)); dec_b = nrm(ks[11], (feature_dim,))
    dcv1_w = nrm(ks[12], (128, 64, 4, 4)); dcv1_b = nrm(ks[13], (64,))
    dcv2_w = nrm(ks[14], (64, 32, 4, 4));  dcv2_b = nrm(ks[15], (32,))
    dcv3_w = nrm(ks[16], (32, in_channels, 4, 4)); dcv3_b = nrm(ks[17], (in_channels,))

    fh = fw = feat_hw
    # fc_mu / fc_logvar: permute feature rows from torch CHW flatten to our HWC
    # flatten, concatenate into one lane-padded [mu | logvar] weight.
    head_w = jnp.zeros((feature_dim, 2 * lp), jnp.float32)
    head_w = head_w.at[:, :latent_dim].set(_rows_chw_to_hwc(mu_w, 128, fh, fw))
    head_w = head_w.at[:, lp:lp + latent_dim].set(_rows_chw_to_hwc(lv_w, 128, fh, fw))
    head_b = jnp.zeros((2 * lp,), jnp.float32)
    head_b = head_b.at[:latent_dim].set(mu_b).at[lp:lp + latent_dim].set(lv_b)

    # fc_decode: columns permuted CHW->HWC, zero rows baked for the latent pad.
    dec_w_hwc = _cols_chw_to_hwc(dec_w, 128, fh, fw)
    dec_w_pad = jnp.zeros((lp, feature_dim), jnp.float32).at[:latent_dim].set(dec_w_hwc)
    dec_b_hwc = _vec_chw_to_hwc(dec_b, 128, fh, fw)

    return {
        "enc1_w": _conv_w_to_mat(enc1_w), "enc1_b": _b_row(enc1_b, 128),
        "enc2_w": _conv_w_to_mat(enc2_w), "enc2_b": _b_row(enc2_b, 128),
        "enc3_w": _conv_w_to_mat(enc3_w), "enc3_b": _b_row(enc3_b, 128),
        "head_w": head_w.astype(jnp.bfloat16), "head_b": head_b[None, :],
        "dec_w": dec_w_pad.astype(jnp.bfloat16),
        "dec_b": dec_b_hwc[None, :].astype(jnp.float32),
        "dcv1_w": _tconv_w_to_3x3(dcv1_w),
        "dcv1_b": _b_row(jnp.tile(dcv1_b, 4), _round_up(4 * 64, 128)),
        "dcv2_w": _tconv_w_to_3x3(dcv2_w),
        "dcv2_b": _b_row(jnp.tile(dcv2_b, 4), _round_up(4 * 32, 128)),
        "dcv3_w": _tconv_w_to_3x3(dcv3_w),
        "dcv3_b": _b_row(jnp.tile(dcv3_b, 4), _round_up(4 * in_channels, 128)),
    }


@functools.partial(jax.jit, static_argnames=("feat_hw", "latent_dim", "in_channels"))
def conv_vae_forward(params, x, eps, feat_hw, latent_dim, in_channels):
    """Mirrors ConvVAE.forward: returns (recon, mu, logvar, z).  x is NCHW."""
    B = x.shape[0]
    xh = jnp.transpose(x, (0, 2, 3, 1)).astype(jnp.bfloat16)   # NCHW -> NHWC once

    # ----- encode (3 launches) -----
    h = conv2d_s2k4(xh, params["enc1_w"], params["enc1_b"], "relu", jnp.bfloat16, 32)
    h = conv2d_s2k4(h,  params["enc2_w"], params["enc2_b"], "relu", jnp.bfloat16, 64)
    h = conv2d_s2k4(h,  params["enc3_w"], params["enc3_b"], "relu", jnp.bfloat16, 128)
    h = h.reshape(B, -1)                      # NHWC flatten; head weights pre-permuted

    # ----- mu / logvar / reparameterize / fc_decode: one fused launch -----
    # TODO(synk): torch.randn_like draws eps inside forward; here eps is a
    # deterministic host-supplied input (no in-kernel RNG).
    mu, logvar, z, hd = encode_head_decode(h, params, eps, latent_dim)

    # ----- decode (3 launches) -----
    hd = hd.reshape(B, feat_hw, feat_hw, 128)  # dec_w columns pre-permuted to HWC
    hd = deconv_s2k4(hd, params["dcv1_w"], params["dcv1_b"], "relu", jnp.bfloat16, 64)
    hd = deconv_s2k4(hd, params["dcv2_w"], params["dcv2_b"], "relu", jnp.bfloat16, 32)
    recon = deconv_s2k4(hd, params["dcv3_w"], params["dcv3_b"], "sigmoid",
                        jnp.float32, in_channels)
    recon = jnp.transpose(recon, (0, 3, 1, 2))  # NHWC -> NCHW at the boundary
    return recon, mu, logvar, z


# ----------------------------------------------------------------------------
if __name__ == "__main__":
    # Small shapes consistent with the module: three stride-2 convs
    # 16 -> 8 -> 4 -> 2, so feature_dim = 128 * 2 * 2 = 512.
    B, C_IN, HW = 2, 3, 16
    LATENT = 32
    FEAT_HW = HW // 8

    key = jax.random.PRNGKey(0)
    k_x, k_eps, k_params = jax.random.split(key, 3)

    x = jax.random.uniform(k_x, (B, C_IN, HW, HW), dtype=jnp.float32)
    eps = jax.random.normal(k_eps, (B, LATENT), dtype=jnp.float32)

    params = init_params(k_params, C_IN, LATENT, FEAT_HW)

    recon, mu, logvar, z = conv_vae_forward(params, x, eps, feat_hw=FEAT_HW,
                                            latent_dim=LATENT, in_channels=C_IN)
    jax.block_until_ready((recon, mu, logvar, z))

    assert recon.shape == (B, C_IN, HW, HW)
    assert mu.shape == (B, LATENT)
    assert logvar.shape == (B, LATENT)
    assert z.shape == (B, LATENT)
    assert bool(jnp.all(jnp.isfinite(recon)))
    assert bool(jnp.all(recon >= 0.0)) and bool(jnp.all(recon <= 1.0))
    assert bool(jnp.all(jnp.isfinite(mu))) and bool(jnp.all(jnp.isfinite(logvar)))
    assert bool(jnp.all(jnp.isfinite(z)))

    print("KERNEL_OK")
</pallas_src>

<mosaic_0001>
module attributes {stable_mosaic.version = 11 : i64} {
  func.func @_mm_kernel(%arg0: i32, %arg1: i32, %arg2: memref<64x48xbf16, #tpu.memory_space<vmem>>, %arg3: memref<48x128xbf16, #tpu.memory_space<vmem>>, %arg4: memref<1x128xf32, #tpu.memory_space<vmem>>, %arg5: memref<64x128xbf16, #tpu.memory_space<vmem>>) attributes {dimension_semantics = [#tpu.dimension_semantics<parallel>, #tpu.dimension_semantics<parallel>], iteration_bounds = array<i64: 2, 1>, scalar_prefetch = 0 : i64, scratch_operands = 0 : i64, tpu.core_type = #tpu.core_type<tc>, window_params = [{transform_indices = @transform_0, window_bounds = array<i64: 64, 48>}, {transform_indices = @transform_1, window_bounds = array<i64: 48, 128>}, {transform_indices = @transform_2, window_bounds = array<i64: 1, 128>}, {transform_indices = @transform_3, window_bounds = array<i64: 64, 128>}]} {
    %c0 = arith.constant 0 : index
    %c0_0 = arith.constant 0 : index
    %0 = vector.load %arg2[%c0, %c0_0] : memref<64x48xbf16, #tpu.memory_space<vmem>>, vector<64x48xbf16>
    %c0_1 = arith.constant 0 : index
    %c0_2 = arith.constant 0 : index
    %1 = vector.load %arg3[%c0_1, %c0_2] : memref<48x128xbf16, #tpu.memory_space<vmem>>, vector<48x128xbf16>
    %cst = arith.constant dense<0.000000e+00> : vector<64x128xf32>
    %2 = tpu.matmul %0, %1, %cst {dimension_numbers = #tpu.dot_dimension_numbers<[1], [0], [0], [1], [0, 0, 1, 1], [], []>} : vector<64x48xbf16>, vector<48x128xbf16>, vector<64x128xf32> -> vector<64x128xf32>
    %c0_3 = arith.constant 0 : index
    %c0_4 = arith.constant 0 : index
    %3 = vector.load %arg4[%c0_3, %c0_4] : memref<1x128xf32, #tpu.memory_space<vmem>>, vector<1x128xf32>
    %4 = vector.broadcast %3 : vector<1x128xf32> to vector<64x128xf32>
    %5 = arith.addf %2, %4 : vector<64x128xf32>
    %cst_5 = arith.constant 0.000000e+00 : f32
    %6 = vector.broadcast %cst_5 : f32 to vector<64x128xf32>
    %7 = arith.maximumf %5, %6 : vector<64x128xf32>
    %8 = arith.truncf %7 : vector<64x128xf32> to vector<64x128xbf16>
    %c0_6 = arith.constant 0 : index
    %c0_7 = arith.constant 0 : index
    %9 = vector.load %arg5[%c0_6, %c0_7] : memref<64x128xbf16, #tpu.memory_space<vmem>>, vector<64x128xbf16>
    tpu.vector_store %arg5[%c0_6, %c0_7], %8 {strides = array<i32>} : memref<64x128xbf16, #tpu.memory_space<vmem>>, vector<64x128xbf16>,
    return
  }
  func.func @transform_0(%arg0: i32, %arg1: i32) -> (i32, i32) {
    %c0_i32 = arith.constant 0 : i32
    %c0_i32_0 = arith.constant 0 : i32
    return %arg0, %c0_i32 : i32, i32
  }
  func.func @transform_1(%arg0: i32, %arg1: i32) -> (i32, i32) {
    %c0_i32 = arith.constant 0 : i32
    %c0_i32_0 = arith.constant 0 : i32
    return %c0_i32, %arg1 : i32, i32
  }
  func.func @transform_2(%arg0: i32, %arg1: i32) -> (i32, i32) {
    %c0_i32 = arith.constant 0 : i32
    %c0_i32_0 = arith.constant 0 : i32
    return %c0_i32, %arg1 : i32, i32
  }
  func.func @transform_3(%arg0: i32, %arg1: i32) -> (i32, i32) {
    %c0_i32 = arith.constant 0 : i32
    return %arg0, %arg1 : i32, i32
  }
}

module attributes {stable_mosaic.version = 11 : i64} {
  func.func @_mm_kernel(%arg0: i32, %arg1: i32, %arg2: memref<16x512xbf16, #tpu.memory_space<vmem>>, %arg3: memref<512x128xbf16, #tpu.memory_space<vmem>>, %arg4: memref<1x128xf32, #tpu.memory_space<vmem>>, %arg5: memref<16x128xbf16, #tpu.memory_space<vmem>>) attributes {dimension_semantics = [#tpu.dimension_semantics<parallel>, #tpu.dimension_semantics<parallel>], iteration_bounds = array<i64: 2, 1>, scalar_prefetch = 0 : i64, scratch_operands = 0 : i64, tpu.core_type = #tpu.core_type<tc>, window_params = [{transform_indices = @transform_0, window_bounds = array<i64: 16, 512>}, {transform_indices = @transform_1, window_bounds = array<i64: 512, 128>}, {transform_indices = @transform_2, window_bounds = array<i64: 1, 128>}, {transform_indices = @transform_3, window_bounds = array<i64: 16, 128>}]} {
    %c0 = arith.constant 0 : index
    %c0_0 = arith.constant 0 : index
    %0 = vector.load %arg2[%c0, %c0_0] : memref<16x512xbf16, #tpu.memory_space<vmem>>, vector<16x512xbf16>
    %c0_1 = arith.constant 0 : index
    %c0_2 = arith.constant 0 : index
    %1 = vector.load %arg3[%c0_1, %c0_2] : memref<512x128xbf16, #tpu.memory_space<vmem>>, vector<512x128xbf16>
    %cst = arith.constant dense<0.000000e+00> : vector<16x128xf32>
    %2 = tpu.matmul %0, %1, %cst {dimension_numbers = #tpu.dot_dimension_numbers<[1], [0], [0], [1], [0, 0, 1, 1], [], []>} : vector<16x512xbf16>, vector<512x128xbf16>, vector<16x128xf32> -> vector<16x128xf32>
    %c0_3 = arith.constant 0 : index
    %c0_4 = arith.constant 0 : index
    %3 = vector.load %arg4[%c0_3, %c0_4] : memref<1x128xf32, #tpu.memory_space<vmem>>, vector<1x128xf32>
    %4 = vector.broadcast %3 : vector<1x128xf32> to vector<16x128xf32>
    %5 = arith.addf %2, %4 : vector<16x128xf32>
    %cst_5 = arith.constant 0.000000e+00 : f32
    %6 = vector.broadcast %cst_5 : f32 to vector<16x128xf32>
    %7 = arith.maximumf %5, %6 : vector<16x128xf32>
    %8 = arith.truncf %7 : vector<16x128xf32> to vector<16x128xbf16>
    %c0_6 = arith.constant 0 : index
    %c0_7 = arith.constant 0 : index
    %9 = vector.load %arg5[%c0_6, %c0_7] : memref<16x128xbf16, #tpu.memory_space<vmem>>, vector<16x128xbf16>
    tpu.vector_store %arg5[%c0_6, %c0_7], %8 {strides = array<i32>} : memref<16x128xbf16, #tpu.memory_space<vmem>>, vector<16x128xbf16>,
    return
  }
  func.func @transform_0(%arg0: i32, %arg1: i32) -> (i32, i32) {
    %c0_i32 = arith.constant 0 : i32
    %c0_i32_0 = arith.constant 0 : i32
    return %arg0, %c0_i32 : i32, i32
  }
  func.func @transform_1(%arg0: i32, %arg1: i32) -> (i32, i32) {
    %c0_i32 = arith.constant 0 : i32
    %c0_i32_0 = arith.constant 0 : i32
    return %c0_i32, %arg1 : i32, i32
  }
  func.func @transform_2(%arg0: i32, %arg1: i32) -> (i32, i32) {
    %c0_i32 = arith.constant 0 : i32
    %c0_i32_0 = arith.constant 0 : i32
    return %c0_i32, %arg1 : i32, i32
  }
  func.func @transform_3(%arg0: i32, %arg1: i32) -> (i32, i32) {
    %c0_i32 = arith.constant 0 : i32
    return %arg0, %arg1 : i32, i32
  }
}

module attributes {stable_mosaic.version = 11 : i64} {
  func.func @_head_dec_kernel(%arg0: i32, %arg1: i32, %arg2: memref<16x512xbf16, #tpu.memory_space<vmem>>, %arg3: memref<512x256xbf16, #tpu.memory_space<vmem>>, %arg4: memref<1x256xf32, #tpu.memory_space<vmem>>, %arg5: memref<16x128xf32, #tpu.memory_space<vmem>>, %arg6: memref<128x512xbf16, #tpu.memory_space<vmem>>, %arg7: memref<1x512xf32, #tpu.memory_space<vmem>>, %arg8: memref<16x128xf32, #tpu.memory_space<vmem>>, %arg9: memref<16x128xf32, #tpu.memory_space<vmem>>, %arg10: memref<16x128xf32, #tpu.memory_space<vmem>>, %arg11: memref<16x512xbf16, #tpu.memory_space<vmem>>, %arg12: memref<16x128xbf16, #tpu.memory_space<vmem>>) attributes {dimension_semantics = [#tpu.dimension_semantics<parallel>, #tpu.dimension_semantics<arbitrary>], iteration_bounds = array<i64: 1, 1>, scalar_prefetch = 0 : i64, scratch_operands = 1 : i64, tpu.core_type = #tpu.core_type<tc>, window_params = [{transform_indices = @transform_0, window_bounds = array<i64: 16, 512>}, {pipeline_mode = #tpu.pipeline_mode<synchronous>, transform_indices = @transform_1, window_bounds = array<i64: 512, 256>}, {pipeline_mode = #tpu.pipeline_mode<synchronous>, transform_indices = @transform_2, window_bounds = array<i64: 1, 256>}, {transform_indices = @transform_3, window_bounds = array<i64: 16, 128>}, {transform_indices = @transform_4, window_bounds = array<i64: 128, 512>}, {transform_indices = @transform_5, window_bounds = array<i64: 1, 512>}, {transform_indices = @transform_6, window_bounds = array<i64: 16, 128>}, {transform_indices = @transform_7, window_bounds = array<i64: 16, 128>}, {transform_indices = @transform_8, window_bounds = array<i64: 16, 128>}, {transform_indices = @transform_9, window_bounds = array<i64: 16, 512>}]} {
    %c0_i32 = arith.constant 0 : i32
    %0 = arith.cmpi eq, %arg1, %c0_i32 : i32
    %1 = arith.extui %0 : i1 to i32
    %c0_i32_0 = arith.constant 0 : i32
    %2 = arith.cmpi ne, %1, %c0_i32_0 : i32
    scf.if %2 {
      %c0_8 = arith.constant 0 : index
      %c0_9 = arith.constant 0 : index
      %11 = vector.load %arg2[%c0_8, %c0_9] : memref<16x512xbf16, #tpu.memory_space<vmem>>, vector<16x512xbf16>
      %c0_10 = arith.constant 0 : index
      %c0_11 = arith.constant 0 : index
      %12 = vector.load %arg3[%c0_10, %c0_11] : memref<512x256xbf16, #tpu.memory_space<vmem>>, vector<512x256xbf16>
      %cst_12 = arith.constant dense<0.000000e+00> : vector<16x256xf32>
      %13 = tpu.matmul %11, %12, %cst_12 {dimension_numbers = #tpu.dot_dimension_numbers<[1], [0], [0], [1], [0, 0, 1, 1], [], []>} : vector<16x512xbf16>, vector<512x256xbf16>, vector<16x256xf32> -> vector<16x256xf32>
      %c0_13 = arith.constant 0 : index
      %c0_14 = arith.constant 0 : index
      %14 = vector.load %arg4[%c0_13, %c0_14] : memref<1x256xf32, #tpu.memory_space<vmem>>, vector<1x256xf32>
      %15 = vector.broadcast %14 : vector<1x256xf32> to vector<16x256xf32>
      %16 = arith.addf %13, %15 : vector<16x256xf32>
      %17 = vector.extract_strided_slice %16 {offsets = [0, 0], sizes = [16, 128], strides = [1, 1]} : vector<16x256xf32> to vector<16x128xf32>
      %18 = vector.extract_strided_slice %16 {offsets = [0, 128], sizes = [16, 128], strides = [1, 1]} : vector<16x256xf32> to vector<16x128xf32>
      %c0_15 = arith.constant 0 : index
      %c0_16 = arith.constant 0 : index
      %19 = vector.load %arg5[%c0_15, %c0_16] : memref<16x128xf32, #tpu.memory_space<vmem>>, vector<16x128xf32>
      %cst_17 = arith.constant 5.000000e-01 : f32
      %20 = vector.broadcast %cst_17 : f32 to vector<16x128xf32>
      %21 = arith.mulf %20, %18 : vector<16x128xf32>
      %22 = math.exp %21 : vector<16x128xf32>
      %23 = arith.mulf %19, %22 : vector<16x128xf32>
      %24 = arith.addf %17, %23 : vector<16x128xf32>
      %c0_18 = arith.constant 0 : index
      %c0_19 = arith.constant 0 : index
      %25 = vector.load %arg8[%c0_18, %c0_19] : memref<16x128xf32, #tpu.memory_space<vmem>>, vector<16x128xf32>
      tpu.vector_store %arg8[%c0_18, %c0_19], %17 {strides = array<i32>} : memref<16x128xf32, #tpu.memory_space<vmem>>, vector<16x128xf32>,
      %c0_20 = arith.constant 0 : index
      %c0_21 = arith.constant 0 : index
      %26 = vector.load %arg9[%c0_20, %c0_21] : memref<16x128xf32, #tpu.memory_space<vmem>>, vector<16x128xf32>
      tpu.vector_store %arg9[%c0_20, %c0_21], %18 {strides = array<i32>} : memref<16x128xf32, #tpu.memory_space<vmem>>, vector<16x128xf32>,
      %c0_22 = arith.constant 0 : index
      %c0_23 = arith.constant 0 : index
      %27 = vector.load %arg10[%c0_22, %c0_23] : memref<16x128xf32, #tpu.memory_space<vmem>>, vector<16x128xf32>
      tpu.vector_store %arg10[%c0_22, %c0_23], %24 {strides = array<i32>} : memref<16x128xf32, #tpu.memory_space<vmem>>, vector<16x128xf32>,
      %28 = arith.truncf %24 : vector<16x128xf32> to vector<16x128xbf16>
      %c0_24 = arith.constant 0 : index
      %c0_25 = arith.constant 0 : index
      %29 = vector.load %arg12[%c0_24, %c0_25] : memref<16x128xbf16, #tpu.memory_space<vmem>>, vector<16x128xbf16>
      tpu.vector_store %arg12[%c0_24, %c0_25], %28 {strides = array<i32>} : memref<16x128xbf16, #tpu.memory_space<vmem>>, vector<16x128xbf16>,
    } else {
    }
    %c0 = arith.constant 0 : index
    %c0_1 = arith.constant 0 : index
    %3 = vector.load %arg12[%c0, %c0_1] : memref<16x128xbf16, #tpu.memory_space<vmem>>, vector<16x128xbf16>
    %c0_2 = arith.constant 0 : index
    %c0_3 = arith.constant 0 : index
    %4 = vector.load %arg6[%c0_2, %c0_3] : memref<128x512xbf16, #tpu.memory_space<vmem>>, vector<128x512xbf16>
    %cst = arith.constant dense<0.000000e+00> : vector<16x512xf32>
    %5 = tpu.matmul %3, %4, %cst {dimension_numbers = #tpu.dot_dimension_numbers<[1], [0], [0], [1], [0, 0, 1, 1], [], []>} : vector<16x128xbf16>, vector<128x512xbf16>, vector<16x512xf32> -> vector<16x512xf32>
    %c0_4 = arith.constant 0 : index
    %c0_5 = arith.constant 0 : index
    %6 = vector.load %arg7[%c0_4, %c0_5] : memref<1x512xf32, #tpu.memory_space<vmem>>, vector<1x512xf32>
    %7 = vector.broadcast %6 : vector<1x512xf32> to vector<16x512xf32>
    %8 = arith.addf %5, %7 : vector<16x512xf32>
    %9 = arith.truncf %8 : vector<16x512xf32> to vector<16x512xbf16>
    %c0_6 = arith.constant 0 : index
    %c0_7 = arith.constant 0 : index
    %10 = vector.load %arg11[%c0_6, %c0_7] : memref<16x512xbf16, #tpu.memory_space<vmem>>, vector<16x512xbf16>
    tpu.vector_store %arg11[%c0_6, %c0_7], %9 {strides = array<i32>} : memref<16x512xbf16, #tpu.memory_space<vmem>>, vector<16x512xbf16>,
    return
  }
  func.func @transform_0(%arg0: i32, %arg1: i32) -> (i32, i32) {
    %c0_i32 = arith.constant 0 : i32
    %c0_i32_0 = arith.constant 0 : i32
    return %arg0, %c0_i32 : i32, i32
  }
  func.func @transform_1(%arg0: i32, %arg1: i32) -> (i32, i32) {
    %c0_i32 = arith.constant 0 : i32
    %c0_i32_0 = arith.constant 0 : i32
    %c0_i32_1 = arith.constant 0 : i32
    return %c0_i32, %c0_i32_0 : i32, i32
  }
  func.func @transform_2(%arg0: i32, %arg1: i32) -> (i32, i32) {
    %c0_i32 = arith.constant 0 : i32
    %c0_i32_0 = arith.constant 0 : i32
    %c0_i32_1 = arith.constant 0 : i32
    return %c0_i32, %c0_i32_0 : i32, i32
  }
  func.func @transform_3(%arg0: i32, %arg1: i32) -> (i32, i32) {
    %c0_i32 = arith.constant 0 : i32
    %c0_i32_0 = arith.constant 0 : i32
    return %arg0, %c0_i32 : i32, i32
  }
  func.func @transform_4(%arg0: i32, %arg1: i32) -> (i32, i32) {
    %c0_i32 = arith.constant 0 : i32
    %c0_i32_0 = arith.constant 0 : i32
    return %c0_i32, %arg1 : i32, i32
  }
  func.func @transform_5(%arg0: i32, %arg1: i32) -> (i32, i32) {
    %c0_i32 = arith.constant 0 : i32
    %c0_i32_0 = arith.constant 0 : i32
    return %c0_i32, %arg1 : i32, i32
  }
  func.func @transform_6(%arg0: i32, %arg1: i32) -> (i32, i32) {
    %c0_i32 = arith.constant 0 : i32
    %c0_i32_0 = arith.constant 0 : i32
    return %arg0, %c0_i32 : i32, i32
  }
  func.func @transform_7(%arg0: i32, %arg1: i32) -> (i32, i32) {
    %c0_i32 = arith.constant 0 : i32
    %c0_i32_0 = arith.constant 0 : i32
    return %arg0, %c0_i32 : i32, i32
  }
  func.func @transform_8(%arg0: i32, %arg1: i32) -> (i32, i32) {
    %c0_i32 = arith.constant 0 : i32
    %c0_i32_0 = arith.constant 0 : i32
    return %arg0, %c0_i32 : i32, i32
  }
  func.func @transform_9(%arg0: i32, %arg1: i32) -> (i32, i32) {
    %c0_i32 = arith.constant 0 : i32
    return %arg0, %arg1 : i32, i32
  }
}

module attributes {stable_mosaic.version = 11 : i64} {
  func.func @_mm_kernel(%arg0: i32, %arg1: i32, %arg2: memref<16x1024xbf16, #tpu.memory_space<vmem>>, %arg3: memref<1024x128xbf16, #tpu.memory_space<vmem>>, %arg4: memref<1x128xf32, #tpu.memory_space<vmem>>, %arg5: memref<16x128xbf16, #tpu.memory_space<vmem>>) attributes {dimension_semantics = [#tpu.dimension_semantics<parallel>, #tpu.dimension_semantics<parallel>], iteration_bounds = array<i64: 1, 1>, scalar_prefetch = 0 : i64, scratch_operands = 0 : i64, tpu.core_type = #tpu.core_type<tc>, window_params = [{transform_indices = @transform_0, window_bounds = array<i64: 16, 1024>}, {transform_indices = @transform_1, window_bounds = array<i64: 1024, 128>}, {transform_indices = @transform_2, window_bounds = array<i64: 1, 128>}, {transform_indices = @transform_3, window_bounds = array<i64: 16, 128>}]} {
    %c0 = arith.constant 0 : index
    %c0_0 = arith.constant 0 : index
    %0 = vector.load %arg2[%c0, %c0_0] : memref<16x1024xbf16, #tpu.memory_space<vmem>>, vector<16x1024xbf16>
    %c0_1 = arith.constant 0 : index
    %c0_2 = arith.constant 0 : index
    %1 = vector.load %arg3[%c0_1, %c0_2] : memref<1024x128xbf16, #tpu.memory_space<vmem>>, vector<1024x128xbf16>
    %cst = arith.constant dense<0.000000e+00> : vector<16x128xf32>
    %2 = tpu.matmul %0, %1, %cst {dimension_numbers = #tpu.dot_dimension_numbers<[1], [0], [0], [1], [0, 0, 1, 1], [], []>} : vector<16x1024xbf16>, vector<1024x128xbf16>, vector<16x128xf32> -> vector<16x128xf32>
    %c0_3 = arith.constant 0 : index
    %c0_4 = arith.constant 0 : index
    %3 = vector.load %arg4[%c0_3, %c0_4] : memref<1x128xf32, #tpu.memory_space<vmem>>, vector<1x128xf32>
    %4 = vector.broadcast %3 : vector<1x128xf32> to vector<16x128xf32>
    %5 = arith.addf %2, %4 : vector<16x128xf32>
    %cst_5 = arith.constant 0.000000e+00 : f32
    %6 = vector.broadcast %cst_5 : f32 to vector<16x128xf32>
    %7 = arith.maximumf %5, %6 : vector<16x128xf32>
    %8 = arith.truncf %7 : vector<16x128xf32> to vector<16x128xbf16>
    %c0_6 = arith.constant 0 : index
    %c0_7 = arith.constant 0 : index
    %9 = vector.load %arg5[%c0_6, %c0_7] : memref<16x128xbf16, #tpu.memory_space<vmem>>, vector<16x128xbf16>
    tpu.vector_store %arg5[%c0_6, %c0_7], %8 {strides = array<i32>} : memref<16x128xbf16, #tpu.memory_space<vmem>>, vector<16x128xbf16>,
    return
  }
  func.func @transform_0(%arg0: i32, %arg1: i32) -> (i32, i32) {
    %c0_i32 = arith.constant 0 : i32
    %c0_i32_0 = arith.constant 0 : i32
    return %arg0, %c0_i32 : i32, i32
  }
  func.func @transform_1(%arg0: i32, %arg1: i32) -> (i32, i32) {
    %c0_i32 = arith.constant 0 : i32
    %c0_i32_0 = arith.constant 0 : i32
    return %c0_i32, %arg1 : i32, i32
  }
  func.func @transform_2(%arg0: i32, %arg1: i32) -> (i32, i32) {
    %c0_i32 = arith.constant 0 : i32
    %c0_i32_0 = arith.constant 0 : i32
    return %c0_i32, %arg1 : i32, i32
  }
  func.func @transform_3(%arg0: i32, %arg1: i32) -> (i32, i32) {
    %c0_i32 = arith.constant 0 : i32
    return %arg0, %arg1 : i32, i32
  }
}

module attributes {stable_mosaic.version = 11 : i64} {
  func.func @_mm_kernel(%arg0: i32, %arg1: i32, %arg2: memref<16x1152xbf16, #tpu.memory_space<vmem>>, %arg3: memref<1152x256xbf16, #tpu.memory_space<vmem>>, %arg4: memref<1x256xf32, #tpu.memory_space<vmem>>, %arg5: memref<16x256xbf16, #tpu.memory_space<vmem>>) attributes {dimension_semantics = [#tpu.dimension_semantics<parallel>, #tpu.dimension_semantics<parallel>], iteration_bounds = array<i64: 1, 1>, scalar_prefetch = 0 : i64, scratch_operands = 0 : i64, tpu.core_type = #tpu.core_type<tc>, window_params = [{transform_indices = @transform_0, window_bounds = array<i64: 16, 1152>}, {transform_indices = @transform_1, window_bounds = array<i64: 1152, 256>}, {transform_indices = @transform_2, window_bounds = array<i64: 1, 256>}, {transform_indices = @transform_3, window_bounds = array<i64: 16, 256>}]} {
    %c0 = arith.constant 0 : index
    %c0_0 = arith.constant 0 : index
    %0 = vector.load %arg2[%c0, %c0_0] : memref<16x1152xbf16, #tpu.memory_space<vmem>>, vector<16x1152xbf16>
    %c0_1 = arith.constant 0 : index
    %c0_2 = arith.constant 0 : index
    %1 = vector.load %arg3[%c0_1, %c0_2] : memref<1152x256xbf16, #tpu.memory_space<vmem>>, vector<1152x256xbf16>
    %cst = arith.constant dense<0.000000e+00> : vector<16x256xf32>
    %2 = tpu.matmul %0, %1, %cst {dimension_numbers = #tpu.dot_dimension_numbers<[1], [0], [0], [1], [0, 0, 1, 1], [], []>} : vector<16x1152xbf16>, vector<1152x256xbf16>, vector<16x256xf32> -> vector<16x256xf32>
    %c0_3 = arith.constant 0 : index
    %c0_4 = arith.constant 0 : index
    %3 = vector.load %arg4[%c0_3, %c0_4] : memref<1x256xf32, #tpu.memory_space<vmem>>, vector<1x256xf32>
    %4 = vector.broadcast %3 : vector<1x256xf32> to vector<16x256xf32>
    %5 = arith.addf %2, %4 : vector<16x256xf32>
    %cst_5 = arith.constant 0.000000e+00 : f32
    %6 = vector.broadcast %cst_5 : f32 to vector<16x256xf32>
    %7 = arith.maximumf %5, %6 : vector<16x256xf32>
    %8 = arith.truncf %7 : vector<16x256xf32> to vector<16x256xbf16>
    %c0_6 = arith.constant 0 : index
    %c0_7 = arith.constant 0 : index
    %9 = vector.load %arg5[%c0_6, %c0_7] : memref<16x256xbf16, #tpu.memory_space<vmem>>, vector<16x256xbf16>
    tpu.vector_store %arg5[%c0_6, %c0_7], %8 {strides = array<i32>} : memref<16x256xbf16, #tpu.memory_space<vmem>>, vector<16x256xbf16>,
    return
  }
  func.func @transform_0(%arg0: i32, %arg1: i32) -> (i32, i32) {
    %c0_i32 = arith.constant 0 : i32
    %c0_i32_0 = arith.constant 0 : i32
    return %arg0, %c0_i32 : i32, i32
  }
  func.func @transform_1(%arg0: i32, %arg1: i32) -> (i32, i32) {
    %c0_i32 = arith.constant 0 : i32
    %c0_i32_0 = arith.constant 0 : i32
    return %c0_i32, %arg1 : i32, i32
  }
  func.func @transform_2(%arg0: i32, %arg1: i32) -> (i32, i32) {
    %c0_i32 = arith.constant 0 : i32
    %c0_i32_0 = arith.constant 0 : i32
    return %c0_i32, %arg1 : i32, i32
  }
  func.func @transform_3(%arg0: i32, %arg1: i32) -> (i32, i32) {
    %c0_i32 = arith.constant 0 : i32
    return %arg0, %arg1 : i32, i32
  }
}

module attributes {stable_mosaic.version = 11 : i64} {
  func.func @_mm_kernel(%arg0: i32, %arg1: i32, %arg2: memref<16x576xbf16, #tpu.memory_space<vmem>>, %arg3: memref<576x128xbf16, #tpu.memory_space<vmem>>, %arg4: memref<1x128xf32, #tpu.memory_space<vmem>>, %arg5: memref<16x128xbf16, #tpu.memory_space<vmem>>) attributes {dimension_semantics = [#tpu.dimension_semantics<parallel>, #tpu.dimension_semantics<parallel>], iteration_bounds = array<i64: 2, 1>, scalar_prefetch = 0 : i64, scratch_operands = 0 : i64, tpu.core_type = #tpu.core_type<tc>, window_params = [{transform_indices = @transform_0, window_bounds = array<i64: 16, 576>}, {transform_indices = @transform_1, window_bounds = array<i64: 576, 128>}, {transform_indices = @transform_2, window_bounds = array<i64: 1, 128>}, {transform_indices = @transform_3, window_bounds = array<i64: 16, 128>}]} {
    %c0 = arith.constant 0 : index
    %c0_0 = arith.constant 0 : index
    %0 = vector.load %arg2[%c0, %c0_0] : memref<16x576xbf16, #tpu.memory_space<vmem>>, vector<16x576xbf16>
    %c0_1 = arith.constant 0 : index
    %c0_2 = arith.constant 0 : index
    %1 = vector.load %arg3[%c0_1, %c0_2] : memref<576x128xbf16, #tpu.memory_space<vmem>>, vector<576x128xbf16>
    %cst = arith.constant dense<0.000000e+00> : vector<16x128xf32>
    %2 = tpu.matmul %0, %1, %cst {dimension_numbers = #tpu.dot_dimension_numbers<[1], [0], [0], [1], [0, 0, 1, 1], [], []>} : vector<16x576xbf16>, vector<576x128xbf16>, vector<16x128xf32> -> vector<16x128xf32>
    %c0_3 = arith.constant 0 : index
    %c0_4 = arith.constant 0 : index
    %3 = vector.load %arg4[%c0_3, %c0_4] : memref<1x128xf32, #tpu.memory_space<vmem>>, vector<1x128xf32>
    %4 = vector.broadcast %3 : vector<1x128xf32> to vector<16x128xf32>
    %5 = arith.addf %2, %4 : vector<16x128xf32>
    %cst_5 = arith.constant 0.000000e+00 : f32
    %6 = vector.broadcast %cst_5 : f32 to vector<16x128xf32>
    %7 = arith.maximumf %5, %6 : vector<16x128xf32>
    %8 = arith.truncf %7 : vector<16x128xf32> to vector<16x128xbf16>
    %c0_6 = arith.constant 0 : index
    %c0_7 = arith.constant 0 : index
    %9 = vector.load %arg5[%c0_6, %c0_7] : memref<16x128xbf16, #tpu.memory_space<vmem>>, vector<16x128xbf16>
    tpu.vector_store %arg5[%c0_6, %c0_7], %8 {strides = array<i32>} : memref<16x128xbf16, #tpu.memory_space<vmem>>, vector<16x128xbf16>,
    return
  }
  func.func @transform_0(%arg0: i32, %arg1: i32) -> (i32, i32) {
    %c0_i32 = arith.constant 0 : i32
    %c0_i32_0 = arith.constant 0 : i32
    return %arg0, %c0_i32 : i32, i32
  }
  func.func @transform_1(%arg0: i32, %arg1: i32) -> (i32, i32) {
    %c0_i32 = arith.constant 0 : i32
    %c0_i32_0 = arith.constant 0 : i32
    return %c0_i32, %arg1 : i32, i32
  }
  func.func @transform_2(%arg0: i32, %arg1: i32) -> (i32, i32) {
    %c0_i32 = arith.constant 0 : i32
    %c0_i32_0 = arith.constant 0 : i32
    return %c0_i32, %arg1 : i32, i32
  }
  func.func @transform_3(%arg0: i32, %arg1: i32) -> (i32, i32) {
    %c0_i32 = arith.constant 0 : i32
    return %arg0, %arg1 : i32, i32
  }
}

module attributes {stable_mosaic.version = 11 : i64} {
  func.func @_mm_kernel(%arg0: i32, %arg1: i32, %arg2: memref<64x288xbf16, #tpu.memory_space<vmem>>, %arg3: memref<288x128xbf16, #tpu.memory_space<vmem>>, %arg4: memref<1x128xf32, #tpu.memory_space<vmem>>, %arg5: memref<64x128xf32, #tpu.memory_space<vmem>>) attributes {dimension_semantics = [#tpu.dimension_semantics<parallel>, #tpu.dimension_semantics<parallel>], iteration_bounds = array<i64: 2, 1>, scalar_prefetch = 0 : i64, scratch_operands = 0 : i64, tpu.core_type = #tpu.core_type<tc>, window_params = [{transform_indices = @transform_0, window_bounds = array<i64: 64, 288>}, {transform_indices = @transform_1, window_bounds = array<i64: 288, 128>}, {transform_indices = @transform_2, window_bounds = array<i64: 1, 128>}, {transform_indices = @transform_3, window_bounds = array<i64: 64, 128>}]} {
    %c0 = arith.constant 0 : index
    %c0_0 = arith.constant 0 : index
    %0 = vector.load %arg2[%c0, %c0_0] : memref<64x288xbf16, #tpu.memory_space<vmem>>, vector<64x288xbf16>
    %c0_1 = arith.constant 0 : index
    %c0_2 = arith.constant 0 : index
    %1 = vector.load %arg3[%c0_1, %c0_2] : memref<288x128xbf16, #tpu.memory_space<vmem>>, vector<288x128xbf16>
    %cst = arith.constant dense<0.000000e+00> : vector<64x128xf32>
    %2 = tpu.matmul %0, %1, %cst {dimension_numbers = #tpu.dot_dimension_numbers<[1], [0], [0], [1], [0, 0, 1, 1], [], []>} : vector<64x288xbf16>, vector<288x128xbf16>, vector<64x128xf32> -> vector<64x128xf32>
    %c0_3 = arith.constant 0 : index
    %c0_4 = arith.constant 0 : index
    %3 = vector.load %arg4[%c0_3, %c0_4] : memref<1x128xf32, #tpu.memory_space<vmem>>, vector<1x128xf32>
    %4 = vector.broadcast %3 : vector<1x128xf32> to vector<64x128xf32>
    %5 = arith.addf %2, %4 : vector<64x128xf32>
    %6 = arith.negf %5 : vector<64x128xf32>
    %7 = math.exp %6 : vector<64x128xf32>
    %cst_5 = arith.constant 1.000000e+00 : f32
    %8 = vector.broadcast %cst_5 : f32 to vector<64x128xf32>
    %9 = arith.addf %8, %7 : vector<64x128xf32>
    %10 = arith.divf %8, %9 : vector<64x128xf32>
    %c0_6 = arith.constant 0 : index
    %c0_7 = arith.constant 0 : index
    %11 = vector.load %arg5[%c0_6, %c0_7] : memref<64x128xf32, #tpu.memory_space<vmem>>, vector<64x128xf32>
    tpu.vector_store %arg5[%c0_6, %c0_7], %10 {strides = array<i32>} : memref<64x128xf32, #tpu.memory_space<vmem>>, vector<64x128xf32>,
    return
  }
  func.func @transform_0(%arg0: i32, %arg1: i32) -> (i32, i32) {
    %c0_i32 = arith.constant 0 : i32
    %c0_i32_0 = arith.constant 0 : i32
    return %arg0, %c0_i32 : i32, i32
  }
  func.func @transform_1(%arg0: i32, %arg1: i32) -> (i32, i32) {
    %c0_i32 = arith.constant 0 : i32
    %c0_i32_0 = arith.constant 0 : i32
    return %c0_i32, %arg1 : i32, i32
  }
  func.func @transform_2(%arg0: i32, %arg1: i32) -> (i32, i32) {
    %c0_i32 = arith.constant 0 : i32
    %c0_i32_0 = arith.constant 0 : i32
    return %c0_i32, %arg1 : i32, i32
  }
  func.func @transform_3(%arg0: i32, %arg1: i32) -> (i32, i32) {
    %c0_i32 = arith.constant 0 : i32
    return %arg0, %arg1 : i32, i32
  }
}

</mosaic_0001>

<llo_original>
// kernel: conv_vae_forward.7
$region0: #{conv_vae_forward.7}
  #allocation0 [shape = 'u32[]', space=smem, size = 0x4, offset = 0x4, fixed_abs, tag = 'smem constant byte address 0x4 - core index']
  #allocation1 [shape = 'u32[72,128]{1,0:T(1,128)}', space=vmem, size = 0x9000, scoped, tag = 'internal scratch']
  %s0 = inlined_call_operand.vmem [shape: bf16[128,48], index: 0, kind: input, shape index: {}]
  %s1 = inlined_call_operand.vmem [shape: bf16[48,128], index: 1, kind: input, shape index: {}]
  %s2 = inlined_call_operand.vmem [shape: f32[1,128], index: 2, kind: input, shape index: {}]
  %s3 = inlined_call_operand.vmem [shape: bf16[128,128], index: 3, kind: output, shape index: {}]
  %s4 = sld [smem:[#allocation0]]
  $region45: #{conv_vae_forward.7} parent=0
    _
  %s6 = ssub.s32 1, %s4
  %s7 = scalar_select 0, %s6, %s4
  loop: start=0, step=1, limit=4
  $region2: #{conv_vae_forward.7} parent=0 // loop_pre_header
    _
  $region3: #{conv_vae_forward.7} parent=0 // loop_header
    %s9 = sphi 0, %s13
    %p10 = scmp.ge.s32.totalorder %s9, 4
    %s16 = sphi 0, %s28
    %s17 = sphi 0, %s24
    %s18 = sphi 0, %s16
    %s19 = sphi 0, %s17
    %s20 = sphi 0, %s18
    %s21 = sphi 0, %s19
    %s31 = sphi 0, %s33
    %s34 = sphi 0, %s31
    %s35 = sphi 0, %s34
    %s51 = sphi 0, %s35
    %s57 = sphi 0, %s59
    %s60 = sphi 0, %s57
    %s61 = sphi 0, %s60
    %s77 = sphi 0, %s61
    %s83 = sphi 0, %s85
    %s86 = sphi 0, %s83
    %s87 = sphi 0, %s86
    %s103 = sphi 0, %s87
    %s111 = sphi 0, %s113
    %s114 = sphi 0, %s111
    %s115 = sphi 0, %s114
    %s131 = sphi 0, %s115
  $region4: #{conv_vae_forward.7} parent=0 // loop_header_branch
    %12 = sbr.rel (%p10) target = $region8
  $region5: #{conv_vae_forward.7} parent=0 // loop_body
    %s14 = ssub.s32 %s9, 1
    %s15 = ssub.s32 %s9, 2
    %s22 = sadd.s32 1, %s17
    %p23 = scmp.ge.s32.totalorder %s22, 1
    %s24 = scalar_select %p23, 0, %s22
    %s25 = sadd.s32 1, %s16
    %s26 = scalar_select %p23, %s25, %s16
    %p27 = scmp.ge.s32.totalorder %s26, 2
    %s28 = scalar_select %p27, 0, %s26
    %s29 = ssub.s32 %s16, %s28
    %p30 = scmp.eq.s32.totalorder %s29, 0
    %s32 = sadd.s32 %s31, 1
    %s33 = scalar_select %p30, %s31, %s32
    %p36 = pneg %p30
    %p37 = scmp.eq.s32.totalorder %s9, 1
    %p38 = por %p36, %p37
    %p39 = scmp.ne.s32.totalorder %s31, %s34
    %p40 = scmp.eq.s32.totalorder %s9, 0
    %p41 = por %p39, %p40
    %p42 = scmp.ne.s32.totalorder %s31, %s34
    %p43 = scmp.eq.s32.totalorder %s14, 1
    %p44 = por %p42, %p43
    %p45 = scmp.ne.s32.totalorder %s34, %s35
    %p46 = scmp.eq.s32.totalorder %s14, 0
    %p47 = por %p45, %p46
    %p48 = scmp.ne.s32.totalorder %s34, %s35
    %p49 = scmp.eq.s32.totalorder %s15, 1
    %p50 = por %p48, %p49
    %p52 = scmp.ne.s32.totalorder %s35, %s51
    %p53 = scmp.eq.s32.totalorder %s15, 0
    %p54 = por %p52, %p53
    %s55 = ssub.s32 %s17, %s24
    %p56 = scmp.eq.s32.totalorder %s55, 0
    %s58 = sadd.s32 %s57, 1
    %s59 = scalar_select %p56, %s57, %s58
    %p62 = pneg %p56
    %p63 = scmp.eq.s32.totalorder %s9, 1
    %p64 = por %p62, %p63
    %p65 = scmp.ne.s32.totalorder %s57, %s60
    %p66 = scmp.eq.s32.totalorder %s9, 0
    %p67 = por %p65, %p66
    %p68 = scmp.ne.s32.totalorder %s57, %s60
    %p69 = scmp.eq.s32.totalorder %s14, 1
    %p70 = por %p68, %p69
    %p71 = scmp.ne.s32.totalorder %s60, %s61
    %p72 = scmp.eq.s32.totalorder %s14, 0
    %p73 = por %p71, %p72
    %p74 = scmp.ne.s32.totalorder %s60, %s61
    %p75 = scmp.eq.s32.totalorder %s15, 1
    %p76 = por %p74, %p75
    %p78 = scmp.ne.s32.totalorder %s61, %s77
    %p79 = scmp.eq.s32.totalorder %s15, 0
    %p80 = por %p78, %p79
    %s81 = ssub.s32 %s17, %s24
    %p82 = scmp.eq.s32.totalorder %s81, 0
    %s84 = sadd.s32 %s83, 1
    %s85 = scalar_select %p82, %s83, %s84
    %p88 = pneg %p82
    %p89 = scmp.eq.s32.totalorder %s9, 1
    %p90 = por %p88, %p89
    %p91 = scmp.ne.s32.totalorder %s83, %s86
    %p92 = scmp.eq.s32.totalorder %s9, 0
    %p93 = por %p91, %p92
    %p94 = scmp.ne.s32.totalorder %s83, %s86
    %p95 = scmp.eq.s32.totalorder %s14, 1
    %p96 = por %p94, %p95
    %p97 = scmp.ne.s32.totalorder %s86, %s87
    %p98 = scmp.eq.s32.totalorder %s14, 0
    %p99 = por %p97, %p98
    %p100 = scmp.ne.s32.totalorder %s86, %s87
    %p101 = scmp.eq.s32.totalorder %s15, 1
    %p102 = por %p100, %p101
    %p104 = scmp.ne.s32.totalorder %s87, %s103
    %p105 = scmp.eq.s32.totalorder %s15, 0
    %p106 = por %p104, %p105
    %s107 = ssub.s32 %s16, %s28
    %s108 = ssub.s32 %s17, %s24
    %s109 = sor.u32 %s107, %s108
    %p110 = scmp.eq.s32.totalorder %s109, 0
    %s112 = sadd.s32 %s111, 1
    %s113 = scalar_select %p110, %s111, %s112
    %p116 = pneg %p110
    %p117 = scmp.eq.s32.totalorder %s9, 1
    %p118 = por %p116, %p117
    %p119 = scmp.ne.s32.totalorder %s111, %s114
    %p120 = scmp.eq.s32.totalorder %s9, 0
    %p121 = por %p119, %p120
    %p122 = scmp.ne.s32.totalorder %s111, %s114
    %p123 = scmp.eq.s32.totalorder %s14, 1
    %p124 = por %p122, %p123
    %p125 = scmp.ne.s32.totalorder %s114, %s115
    %p126 = scmp.eq.s32.totalorder %s14, 0
    %p127 = por %p125, %p126
    %p128 = scmp.ne.s32.totalorder %s114, %s115
    %p129 = scmp.eq.s32.totalorder %s15, 1
    %p130 = por %p128, %p129
    %p132 = scmp.ne.s32.totalorder %s115, %s131
    %p133 = scmp.eq.s32.totalorder %s15, 0
    %p134 = por %p132, %p133
    %p135 = scmp.le.s32.totalorder 1, %s9
    %p136 = scmp.lt.s32.totalorder %s9, 3
    %p137 = pnand %p135, %p136
    %p138 = pneg %p137
    // Predicated region
    $region9: #{conv_vae_forward.7} parent=5 // pred_check
      _
    $region10: #{conv_vae_forward.7} parent=5 // pred_check_branch
      %140 = sbr.rel (%p137) target = $region12
    $region11: #{conv_vae_forward.7} parent=5 // pred_region
      %s141 = ssub.s32 %s9, 1
      // Predicated region
      $region13: #{conv_vae_forward.7} parent=11 // pred_check
        %p142 = pneg %p73
      $region14: #{conv_vae_forward.7} parent=11 // pred_check_branch
        %144 = sbr.rel (%p142) target = $region16
      $region15: #{conv_vae_forward.7} parent=11 // pred_region
        %p145 = scmp.lt.s32.totalorder %s19, 0
        %s146 = scalar_select %p145, %s19, 0
        %s147 = smul.addr %s146, 4
        %s148 = scalar_lea.vmem %s1, %s147
      $region16: #{conv_vae_forward.7} parent=11 // pred_fallthru
        _
      // Predicated region
      $region17: #{conv_vae_forward.7} parent=11 // pred_check
        %p149 = pneg %p99
      $region18: #{conv_vae_forward.7} parent=11 // pred_check_branch
        %151 = sbr.rel (%p149) target = $region20
      $region19: #{conv_vae_forward.7} parent=11 // pred_region
        %p152 = scmp.lt.s32.totalorder %s19, 0
        %s153 = scalar_select %p152, %s19, 0
        %s154 = scalar_lea.vmem %s2, %s153
      $region20: #{conv_vae_forward.7} parent=11 // pred_fallthru
        _
    $region12: #{conv_vae_forward.7} parent=5 // pred_fallthru
      _
    %p155 = scmp.lt.s32.totalorder %s9, 2
    // Predicated region
    $region21: #{conv_vae_forward.7} parent=5 // pred_check
      %p156 = pneg %p155
    $region22: #{conv_vae_forward.7} parent=5 // pred_check_branch
      %158 = sbr.rel (%p156) target = $region24
    $region23: #{conv_vae_forward.7} parent=5 // pred_region
      // Predicated region
      $region25: #{conv_vae_forward.7} parent=23 // pred_check
        %p159 = pneg %p41
      $region26: #{conv_vae_forward.7} parent=23 // pred_check_branch
        %161 = sbr.rel (%p159) target = $region28
      $region27: #{conv_vae_forward.7} parent=23 // pred_region
        %s162 = smul.u32 8, %s16
        %p163 = scmp.lt.s32.totalorder %s162, 15
        %s164 = scalar_select %p163, %s162, 15
        %s165 = smul.addr %s164, 4
        %s166 = scalar_lea.vmem %s0, %s165
        %s167 = smul.u32 8, %s16
      $region28: #{conv_vae_forward.7} parent=23 // pred_fallthru
        _
    $region24: #{conv_vae_forward.7} parent=5 // pred_fallthru
      _
    %p168 = scmp.le.s32.totalorder 1, %s9
    %p169 = scmp.lt.s32.totalorder %s9, 3
    %p170 = pnand %p168, %p169
    %p171 = pneg %p170
    // Predicated region
    $region29: #{conv_vae_forward.7} parent=5 // pred_check
      _
    $region30: #{conv_vae_forward.7} parent=5 // pred_check_branch
      %173 = sbr.rel (%p170) target = $region32
    $region31: #{conv_vae_forward.7} parent=5 // pred_region
      %s174 = ssub.s32 %s9, 1
      %s175 = smul.u32 8, %s18
      %p176 = scmp.lt.s32.totalorder %s175, 15
      %s177 = scalar_select %p176, %s175, 15
      %s178 = smul.addr %s177, 4
      %s179 = scalar_lea.vmem %s0, %s178
      %p180 = pneg %p47
      %p181 = pneg %p44
      %p182 = scmp.lt.s32.totalorder %s19, 0
      %s183 = scalar_select %p182, %s19, 0
      %s184 = smul.addr %s183, 4
      %s185 = scalar_lea.vmem %s1, %s184
      %p186 = pneg %p73
      %p187 = pneg %p70
      %p188 = scmp.lt.s32.totalorder %s19, 0
      %s189 = scalar_select %p188, %s19, 0
      %s190 = scalar_lea.vmem %s2, %s189
      %p191 = pneg %p99
      %p192 = pneg %p96
      %p193 = pneg %p127
      %p194 = pneg %p124
      %s195 = smul.u32 8, %s18
      %p196 = scmp.lt.s32.totalorder %s195, 15
      %s197 = scalar_select %p196, %s195, 15
      %p198 = scmp.lt.s32.totalorder %s19, 0
      %s199 = scalar_select %p198, %s19, 0
      %s200 = sadd.s32 %s199, %s197
      %s201 = smul.addr %s200, 4
      %s202 = scalar_lea.vmem %s3, %s201
      %s203 = smul.u32 8, %s18
      %p204 = scmp.lt.s32.totalorder %s203, 15
      %s205 = scalar_select %p204, %s203, 15
      %s206 = smul.addr %s205, 4
      %s207 = scalar_lea.vmem %s0, %s206
      %s208 = smul.u32 8, %s18
      %p209 = scmp.lt.s32.totalorder %s19, 0
      %s210 = scalar_select %p209, %s19, 0
      %s211 = smul.addr %s210, 4
      %s212 = scalar_lea.vmem %s1, %s211
      %p213 = scmp.lt.s32.totalorder %s19, 0
      %s214 = scalar_select %p213, %s19, 0
      %s215 = scalar_lea.vmem %s2, %s214
      %s216 = smul.u32 8, %s18
      %p217 = scmp.lt.s32.totalorder %s216, 15
      %s218 = scalar_select %p217, %s216, 15
      %p219 = scmp.lt.s32.totalorder %s19, 0
      %s220 = scalar_select %p219, %s19, 0
      %s221 = sadd.s32 %s220, %s218
      %s222 = smul.addr %s221, 4
      %s223 = scalar_lea.vmem %s3, %s222
      %s224 = smul.u32 8, %s18
      %v226 = vld [vmem:[%s207] sm:$0xf]
      %v227 = vld [vmem:[%s207 + $0x4] sm:$0xf]
      %v228 = vld [vmem:[%s207 + $0x8] sm:$0xf]
      %v229 = vld [vmem:[%s207 + $0xc] sm:$0xf]
      %v230 = vld [vmem:[%s207 + $0x10] sm:$0xf]
      %v231 = vld [vmem:[%s207 + $0x14] sm:$0xf]
      %v232 = vld [vmem:[%s207 + $0x18] sm:$0xf]
      %v233 = vld [vmem:[%s207 + $0x1c] sm:$0xf]
      %v234 = vld [vmem:[%s212] sm:$0xf]
      %v235 = vld [vmem:[%s212 + $0x4] sm:$0xf]
      %v236 = vld [vmem:[%s212 + $0x8] sm:$0xf]
      %v237 = vld [vmem:[%s212 + $0xc] sm:$0xf]
      %v238 = vld [vmem:[%s212 + $0x10] sm:$0xf]
      %v239 = vld [vmem:[%s212 + $0x14] sm:$0xf]
      %v240 = vld [vmem:[%s215] sm:$0x1]
      %v242 = vperm.slane %v240, 0
      %v252 = vunpack.c.l.b16 %v226
      %v253 = vunpack.c.l.b16 %v227
      %v254 = vunpack.c.l.b16 %v228
      %v255 = vunpack.c.l.b16 %v229
      %v256 = vunpack.c.l.b16 %v230
      %v257 = vunpack.c.l.b16 %v231
      %v258 = vunpack.c.l.b16 %v232
      %v259 = vunpack.c.l.b16 %v233
      %v260 = vpack.c.b16 %v253, %v252
      %v261 = vpack.c.b16 %v255, %v254
      %v262 = vpack.c.b16 %v257, %v256
      %v263 = vpack.c.b16 %v259, %v258
      %v270 = vunpack.c.l.b16 %v234
      %v271 = vunpack.c.l.b16 %v235
      %v272 = vunpack.c.l.b16 %v236
      %v273 = vunpack.c.l.b16 %v237
      %v274 = vunpack.c.l.b16 %v238
      %v275 = vunpack.c.l.b16 %v239
      %v276 = vpack.c.b16 %v271, %v270
      %v277 = vpack.c.b16 %v273, %v272
      %v278 = vpack.c.b16 %v275, %v274
      %vm282 = vcmask 392192
      %v284 = vsel %vm282, %v260, 0
      %v287 = vsel %vm282, %v261, 0
      %v290 = vsel %vm282, %v262, 0
      %v293 = vsel %vm282, %v263, 0
      %295 = vmatpush.bf16.msra.mxu0 0
      %296 = vmatpush.bf16.msra.mxu0 0
      %297 = vmatpush.bf16.msra.mxu0 0
      %298 = vmatpush.bf16.msra.mxu0 0
      %299 = vmatpush.bf16.msra.mxu0 0
      %300 = vmatpush.bf16.msra.mxu0 %v278
      %301 = vmatpush.bf16.msra.mxu0 %v277
      %302 = vmatpush.bf16.msra.mxu0 %v276
      %303 = vmatmul.bf16.gmra.mxu0 %v284
      %v304 = vpop.f32.mrf.mxu0
      %v305 = vadd.f32 %v242, %v304
      %v306 = vpop.f32.mrf.mxu0
      %v307 = vadd.f32 %v242, %v306
      %308 = vmatmul.bf16.gmra.mxu0 %v287
      %v309 = vpop.f32.mrf.mxu0
      %v310 = vadd.f32 %v242, %v309
      %v311 = vpop.f32.mrf.mxu0
      %v312 = vadd.f32 %v242, %v311
      %313 = vmatmul.bf16.gmra.mxu0 %v290
      %v314 = vpop.f32.mrf.mxu0
      %v315 = vadd.f32 %v242, %v314
      %v316 = vpop.f32.mrf.mxu0
      %v317 = vadd.f32 %v242, %v316
      %318 = vmatmul.bf16.gmra.mxu0 %v293
      %v319 = vpop.f32.mrf.mxu0
      %v320 = vadd.f32 %v242, %v319
      %v321 = vpop.f32.mrf.mxu0
      %v322 = vadd.f32 %v242, %v321
      %323 = vdwg.mxu0
      %v324 = vmax.f32 %v305, 0.0
      %v325 = vmax.f32 %v307, 0.0
      %v326 = vmax.f32 %v310, 0.0
      %v327 = vmax.f32 %v312, 0.0
      %v328 = vmax.f32 %v315, 0.0
      %v329 = vmax.f32 %v317, 0.0
      %v330 = vmax.f32 %v320, 0.0
      %v331 = vmax.f32 %v322, 0.0
      %v332 = vpack.c.bf16 %v324, %v324
      %v333 = vpack.c.bf16 %v325, %v325
      %v334 = vpack.c.bf16 %v326, %v326
      %v335 = vpack.c.bf16 %v327, %v327
      %v336 = vpack.c.bf16 %v328, %v328
      %v337 = vpack.c.bf16 %v329, %v329
      %v338 = vpack.c.bf16 %v330, %v330
      %v339 = vpack.c.bf16 %v331, %v331
      %340 = vst [vmem:[%s223] sm:$0xf] %v332
      %341 = vst [vmem:[%s223 + $0x4] sm:$0xf] %v333
      %342 = vst [vmem:[%s223 + $0x8] sm:$0xf] %v334
      %343 = vst [vmem:[%s223 + $0xc] sm:$0xf] %v335
      %344 = vst [vmem:[%s223 + $0x10] sm:$0xf] %v336
      %345 = vst [vmem:[%s223 + $0x14] sm:$0xf] %v337
      %346 = vst [vmem:[%s223 + $0x18] sm:$0xf] %v338
      %347 = vst [vmem:[%s223 + $0x1c] sm:$0xf] %v339
      %s348 = smul.u32 8, %s18
      %p349 = scmp.lt.s32.totalorder %s348, 15
      %s350 = scalar_select %p349, %s348, 15
      %p351 = scmp.lt.s32.totalorder %s19, 0
      %s352 = scalar_select %p351, %s19, 0
      %s353 = sadd.s32 %s352, %s350
      %s354 = smul.addr %s353, 4
      %s355 = scalar_lea.vmem %s3, %s354
      // Predicated region
      $region33: #{conv_vae_forward.7} parent=31 // pred_check
        %p356 = pneg %p124
      $region34: #{conv_vae_forward.7} parent=31 // pred_check_branch
        %358 = sbr.rel (%p356) target = $region36
      $region35: #{conv_vae_forward.7} parent=31 // pred_region
        %s359 = smul.u32 8, %s18
      $region36: #{conv_vae_forward.7} parent=31 // pred_fallthru
        _
    $region32: #{conv_vae_forward.7} parent=5 // pred_fallthru
      _
    %p360 = scmp.le.s32.totalorder 2, %s9
    // Predicated region
    $region37: #{conv_vae_forward.7} parent=5 // pred_check
      %p361 = pneg %p360
    $region38: #{conv_vae_forward.7} parent=5 // pred_check_branch
      %363 = sbr.rel (%p361) target = $region40
    $region39: #{conv_vae_forward.7} parent=5 // pred_region
      %s364 = ssub.s32 %s9, 2
      // Predicated region
      $region41: #{conv_vae_forward.7} parent=39 // pred_check
        %p365 = pneg %p130
      $region42: #{conv_vae_forward.7} parent=39 // pred_check_branch
        %367 = sbr.rel (%p365) target = $region44
      $region43: #{conv_vae_forward.7} parent=39 // pred_region
        %s368 = smul.u32 8, %s20
        %p369 = scmp.lt.s32.totalorder %s368, 15
        %s370 = scalar_select %p369, %s368, 15
        %p371 = scmp.lt.s32.totalorder %s21, 0
        %s372 = scalar_select %p371, %s21, 0
        %s373 = sadd.s32 %s372, %s370
        %s374 = smul.addr %s373, 4
        %s375 = scalar_lea.vmem %s3, %s374
      $region44: #{conv_vae_forward.7} parent=39 // pred_fallthru
        _
    $region40: #{conv_vae_forward.7} parent=5 // pred_fallthru
      _
  $region6: #{conv_vae_forward.7} parent=0 // loop_footer
    %s13 = sadd.s32 1, %s9
  $region7: #{conv_vae_forward.7} parent=0 // loop_footer_branch
    %8 = sbr.rel target = $region3
  $region8: #{conv_vae_forward.7} parent=0 // loop_exit
    _

// kernel: conv_vae_forward.8
$region0: #{conv_vae_forward.8}
  #allocation0 [shape = 'u32[]', space=smem, size = 0x4, offset = 0x4, fixed_abs, tag = 'smem constant byte address 0x4 - core index']
  #allocation1 [shape = 'u32[72,128]{1,0:T(1,128)}', space=vmem, size = 0x9000, scoped, tag = 'internal scratch']
  %s0 = inlined_call_operand.vmem [shape: bf16[32,512], index: 0, kind: input, shape index: {}]
  %s1 = inlined_call_operand.vmem [shape: bf16[512,128], index: 1, kind: input, shape index: {}]
  %s2 = inlined_call_operand.vmem [shape: f32[1,128], index: 2, kind: input, shape index: {}]
  %s3 = inlined_call_operand.vmem [shape: bf16[32,128], index: 3, kind: output, shape index: {}]
  %s4 = sld [smem:[#allocation0]]
  $region45: #{conv_vae_forward.8} parent=0
    _
  %s6 = ssub.s32 1, %s4
  %s7 = scalar_select 0, %s6, %s4
  loop: start=0, step=1, limit=4
  $region2: #{conv_vae_forward.8} parent=0 // loop_pre_header
    _
  $region3: #{conv_vae_forward.8} parent=0 // loop_header
    %s9 = sphi 0, %s13
    %p10 = scmp.ge.s32.totalorder %s9, 4
    %s16 = sphi 0, %s28
    %s17 = sphi 0, %s24
    %s18 = sphi 0, %s16
    %s19 = sphi 0, %s17
    %s20 = sphi 0, %s18
    %s21 = sphi 0, %s19
    %s31 = sphi 0, %s33
    %s34 = sphi 0, %s31
    %s35 = sphi 0, %s34
    %s51 = sphi 0, %s35
    %s57 = sphi 0, %s59
    %s60 = sphi 0, %s57
    %s61 = sphi 0, %s60
    %s77 = sphi 0, %s61
    %s83 = sphi 0, %s85
    %s86 = sphi 0, %s83
    %s87 = sphi 0, %s86
    %s103 = sphi 0, %s87
    %s111 = sphi 0, %s113
    %s114 = sphi 0, %s111
    %s115 = sphi 0, %s114
    %s131 = sphi 0, %s115
  $region4: #{conv_vae_forward.8} parent=0 // loop_header_branch
    %12 = sbr.rel (%p10) target = $region8
  $region5: #{conv_vae_forward.8} parent=0 // loop_body
    %s14 = ssub.s32 %s9, 1
    %s15 = ssub.s32 %s9, 2
    %s22 = sadd.s32 1, %s17
    %p23 = scmp.ge.s32.totalorder %s22, 1
    %s24 = scalar_select %p23, 0, %s22
    %s25 = sadd.s32 1, %s16
    %s26 = scalar_select %p23, %s25, %s16
    %p27 = scmp.ge.s32.totalorder %s26, 2
    %s28 = scalar_select %p27, 0, %s26
    %s29 = ssub.s32 %s16, %s28
    %p30 = scmp.eq.s32.totalorder %s29, 0
    %s32 = sadd.s32 %s31, 1
    %s33 = scalar_select %p30, %s31, %s32
    %p36 = pneg %p30
    %p37 = scmp.eq.s32.totalorder %s9, 1
    %p38 = por %p36, %p37
    %p39 = scmp.ne.s32.totalorder %s31, %s34
    %p40 = scmp.eq.s32.totalorder %s9, 0
    %p41 = por %p39, %p40
    %p42 = scmp.ne.s32.totalorder %s31, %s34
    %p43 = scmp.eq.s32.totalorder %s14, 1
    %p44 = por %p42, %p43
    %p45 = scmp.ne.s32.totalorder %s34, %s35
    %p46 = scmp.eq.s32.totalorder %s14, 0
    %p47 = por %p45, %p46
    %p48 = scmp.ne.s32.totalorder %s34, %s35
    %p49 = scmp.eq.s32.totalorder %s15, 1
    %p50 = por %p48, %p49
    %p52 = scmp.ne.s32.totalorder %s35, %s51
    %p53 = scmp.eq.s32.totalorder %s15, 0
    %p54 = por %p52, %p53
    %s55 = ssub.s32 %s17, %s24
    %p56 = scmp.eq.s32.totalorder %s55, 0
    %s58 = sadd.s32 %s57, 1
    %s59 = scalar_select %p56, %s57, %s58
    %p62 = pneg %p56
    %p63 = scmp.eq.s32.totalorder %s9, 1
    %p64 = por %p62, %p63
    %p65 = scmp.ne.s32.totalorder %s57, %s60
    %p66 = scmp.eq.s32.totalorder %s9, 0
    %p67 = por %p65, %p66
    %p68 = scmp.ne.s32.totalorder %s57, %s60
    %p69 = scmp.eq.s32.totalorder %s14, 1
    %p70 = por %p68, %p69
    %p71 = scmp.ne.s32.totalorder %s60, %s61
    %p72 = scmp.eq.s32.totalorder %s14, 0
    %p73 = por %p71, %p72
    %p74 = scmp.ne.s32.totalorder %s60, %s61
    %p75 = scmp.eq.s32.totalorder %s15, 1
    %p76 = por %p74, %p75
    %p78 = scmp.ne.s32.totalorder %s61, %s77
    %p79 = scmp.eq.s32.totalorder %s15, 0
    %p80 = por %p78, %p79
    %s81 = ssub.s32 %s17, %s24
    %p82 = scmp.eq.s32.totalorder %s81, 0
    %s84 = sadd.s32 %s83, 1
    %s85 = scalar_select %p82, %s83, %s84
    %p88 = pneg %p82
    %p89 = scmp.eq.s32.totalorder %s9, 1
    %p90 = por %p88, %p89
    %p91 = scmp.ne.s32.totalorder %s83, %s86
    %p92 = scmp.eq.s32.totalorder %s9, 0
    %p93 = por %p91, %p92
    %p94 = scmp.ne.s32.totalorder %s83, %s86
    %p95 = scmp.eq.s32.totalorder %s14, 1
    %p96 = por %p94, %p95
    %p97 = scmp.ne.s32.totalorder %s86, %s87
    %p98 = scmp.eq.s32.totalorder %s14, 0
    %p99 = por %p97, %p98
    %p100 = scmp.ne.s32.totalorder %s86, %s87
    %p101 = scmp.eq.s32.totalorder %s15, 1
    %p102 = por %p100, %p101
    %p104 = scmp.ne.s32.totalorder %s87, %s103
    %p105 = scmp.eq.s32.totalorder %s15, 0
    %p106 = por %p104, %p105
    %s107 = ssub.s32 %s16, %s28
    %s108 = ssub.s32 %s17, %s24
    %s109 = sor.u32 %s107, %s108
    %p110 = scmp.eq.s32.totalorder %s109, 0
    %s112 = sadd.s32 %s111, 1
    %s113 = scalar_select %p110, %s111, %s112
    %p116 = pneg %p110
    %p117 = scmp.eq.s32.totalorder %s9, 1
    %p118 = por %p116, %p117
    %p119 = scmp.ne.s32.totalorder %s111, %s114
    %p120 = scmp.eq.s32.totalorder %s9, 0
    %p121 = por %p119, %p120
    %p122 = scmp.ne.s32.totalorder %s111, %s114
    %p123 = scmp.eq.s32.totalorder %s14, 1
    %p124 = por %p122, %p123
    %p125 = scmp.ne.s32.totalorder %s114, %s115
    %p126 = scmp.eq.s32.totalorder %s14, 0
    %p127 = por %p125, %p126
    %p128 = scmp.ne.s32.totalorder %s114, %s115
    %p129 = scmp.eq.s32.totalorder %s15, 1
    %p130 = por %p128, %p129
    %p132 = scmp.ne.s32.totalorder %s115, %s131
    %p133 = scmp.eq.s32.totalorder %s15, 0
    %p134 = por %p132, %p133
    %p135 = scmp.le.s32.totalorder 1, %s9
    %p136 = scmp.lt.s32.totalorder %s9, 3
    %p137 = pnand %p135, %p136
    %p138 = pneg %p137
    // Predicated region
    $region9: #{conv_vae_forward.8} parent=5 // pred_check
      _
    $region10: #{conv_vae_forward.8} parent=5 // pred_check_branch
      %140 = sbr.rel (%p137) target = $region12
    $region11: #{conv_vae_forward.8} parent=5 // pred_region
      %s141 = ssub.s32 %s9, 1
      // Predicated region
      $region13: #{conv_vae_forward.8} parent=11 // pred_check
        %p142 = pneg %p73
      $region14: #{conv_vae_forward.8} parent=11 // pred_check_branch
        %144 = sbr.rel (%p142) target = $region16
      $region15: #{conv_vae_forward.8} parent=11 // pred_region
        %p145 = scmp.lt.s32.totalorder %s19, 0
        %s146 = scalar_select %p145, %s19, 0
        %s147 = smul.addr %s146, 4
        %s148 = scalar_lea.vmem %s1, %s147
      $region16: #{conv_vae_forward.8} parent=11 // pred_fallthru
        _
      // Predicated region
      $region17: #{conv_vae_forward.8} parent=11 // pred_check
        %p149 = pneg %p99
      $region18: #{conv_vae_forward.8} parent=11 // pred_check_branch
        %151 = sbr.rel (%p149) target = $region20
      $region19: #{conv_vae_forward.8} parent=11 // pred_region
        %p152 = scmp.lt.s32.totalorder %s19, 0
        %s153 = scalar_select %p152, %s19, 0
        %s154 = scalar_lea.vmem %s2, %s153
      $region20: #{conv_vae_forward.8} parent=11 // pred_fallthru
        _
    $region12: #{conv_vae_forward.8} parent=5 // pred_fallthru
      _
    %p155 = scmp.lt.s32.totalorder %s9, 2
    // Predicated region
    $region21: #{conv_vae_forward.8} parent=5 // pred_check
      %p156 = pneg %p155
    $region22: #{conv_vae_forward.8} parent=5 // pred_check_branch
      %158 = sbr.rel (%p156) target = $region24
    $region23: #{conv_vae_forward.8} parent=5 // pred_region
      // Predicated region
      $region25: #{conv_vae_forward.8} parent=23 // pred_check
        %p159 = pneg %p41
      $region26: #{conv_vae_forward.8} parent=23 // pred_check_branch
        %161 = sbr.rel (%p159) target = $region28
      $region27: #{conv_vae_forward.8} parent=23 // pred_region
        %s162 = smul.u32 2, %s16
        %p163 = scmp.lt.s32.totalorder %s162, 3
        %s164 = scalar_select %p163, %s162, 3
        %s165 = smul.addr %s164, 4
        %s166 = smul.addr %s165, 4
        %s167 = scalar_lea.vmem %s0, %s166
        %s168 = smul.u32 2, %s16
      $region28: #{conv_vae_forward.8} parent=23 // pred_fallthru
        _
    $region24: #{conv_vae_forward.8} parent=5 // pred_fallthru
      _
    %p169 = scmp.le.s32.totalorder 1, %s9
    %p170 = scmp.lt.s32.totalorder %s9, 3
    %p171 = pnand %p169, %p170
    %p172 = pneg %p171
    // Predicated region
    $region29: #{conv_vae_forward.8} parent=5 // pred_check
      _
    $region30: #{conv_vae_forward.8} parent=5 // pred_check_branch
      %174 = sbr.rel (%p171) target = $region32
    $region31: #{conv_vae_forward.8} parent=5 // pred_region
      %s175 = ssub.s32 %s9, 1
      %s176 = smul.u32 2, %s18
      %p177 = scmp.lt.s32.totalorder %s176, 3
      %s178 = scalar_select %p177, %s176, 3
      %s179 = smul.addr %s178, 4
      %s180 = smul.addr %s179, 4
      %s181 = scalar_lea.vmem %s0, %s180
      %p182 = pneg %p47
      %p183 = pneg %p44
      %p184 = scmp.lt.s32.totalorder %s19, 0
      %s185 = scalar_select %p184, %s19, 0
      %s186 = smul.addr %s185, 4
      %s187 = scalar_lea.vmem %s1, %s186
      %p188 = pneg %p73
      %p189 = pneg %p70
      %p190 = scmp.lt.s32.totalorder %s19, 0
      %s191 = scalar_select %p190, %s19, 0
      %s192 = scalar_lea.vmem %s2, %s191
      %p193 = pneg %p99
      %p194 = pneg %p96
      %p195 = pneg %p127
      %p196 = pneg %p124
      %s197 = smul.u32 2, %s18
      %p198 = scmp.lt.s32.totalorder %s197, 3
      %s199 = scalar_select %p198, %s197, 3
      %p200 = scmp.lt.s32.totalorder %s19, 0
      %s201 = scalar_select %p200, %s19, 0
      %s202 = sadd.s32 %s201, %s199
      %s203 = smul.addr %s202, 4
      %s204 = scalar_lea.vmem %s3, %s203
      %s205 = smul.u32 2, %s18
      %p206 = scmp.lt.s32.totalorder %s205, 3
      %s207 = scalar_select %p206, %s205, 3
      %s208 = smul.addr %s207, 4
      %s209 = smul.addr %s208, 4
      %s210 = scalar_lea.vmem %s0, %s209
      %s211 = smul.u32 2, %s18
      %p212 = scmp.lt.s32.totalorder %s19, 0
      %s213 = scalar_select %p212, %s19, 0
      %s214 = smul.addr %s213, 4
      %s215 = scalar_lea.vmem %s1, %s214
      %p216 = scmp.lt.s32.totalorder %s19, 0
      %s217 = scalar_select %p216, %s19, 0
      %s218 = scalar_lea.vmem %s2, %s217
      %s219 = smul.u32 2, %s18
      %p220 = scmp.lt.s32.totalorder %s219, 3
      %s221 = scalar_select %p220, %s219, 3
      %p222 = scmp.lt.s32.totalorder %s19, 0
      %s223 = scalar_select %p222, %s19, 0
      %s224 = sadd.s32 %s223, %s221
      %s225 = smul.addr %s224, 4
      %s226 = scalar_lea.vmem %s3, %s225
      %s227 = smul.u32 2, %s18
      %v228 = vld [vmem:[%s210] sm:$0xff]
      %v229 = vld [vmem:[%s210 + $0x8] sm:$0xff]
      %v230 = vld [vmem:[%s210 + $0x10] sm:$0xff]
      %v231 = vld [vmem:[%s210 + $0x18] sm:$0xff]
      %v232 = vld [vmem:[%s215] sm:$0xf]
      %v233 = vld [vmem:[%s215 + $0x4] sm:$0xf]
      %v234 = vld [vmem:[%s215 + $0x8] sm:$0xf]
      %v235 = vld [vmem:[%s215 + $0xc] sm:$0xf]
      %v236 = vld [vmem:[%s215 + $0x10] sm:$0xf]
      %v237 = vld [vmem:[%s215 + $0x14] sm:$0xf]
      %v238 = vld [vmem:[%s215 + $0x18] sm:$0xf]
      %v239 = vld [vmem:[%s215 + $0x1c] sm:$0xf]
      %v240 = vld [vmem:[%s215 + $0x20] sm:$0xf]
      %v241 = vld [vmem:[%s215 + $0x24] sm:$0xf]
      %v242 = vld [vmem:[%s215 + $0x28] sm:$0xf]
      %v243 = vld [vmem:[%s215 + $0x2c] sm:$0xf]
      %v244 = vld [vmem:[%s215 + $0x30] sm:$0xf]
      %v245 = vld [vmem:[%s215 + $0x34] sm:$0xf]
      %v246 = vld [vmem:[%s215 + $0x38] sm:$0xf]
      %v247 = vld [vmem:[%s215 + $0x3c] sm:$0xf]
      %v248 = vld [vmem:[%s215 + $0x40] sm:$0xf]
      %v249 = vld [vmem:[%s215 + $0x44] sm:$0xf]
      %v250 = vld [vmem:[%s215 + $0x48] sm:$0xf]
      %v251 = vld [vmem:[%s215 + $0x4c] sm:$0xf]
      %v252 = vld [vmem:[%s215 + $0x50] sm:$0xf]
      %v253 = vld [vmem:[%s215 + $0x54] sm:$0xf]
      %v254 = vld [vmem:[%s215 + $0x58] sm:$0xf]
      %v255 = vld [vmem:[%s215 + $0x5c] sm:$0xf]
      %v256 = vld [vmem:[%s215 + $0x60] sm:$0xf]
      %v257 = vld [vmem:[%s215 + $0x64] sm:$0xf]
      %v258 = vld [vmem:[%s215 + $0x68] sm:$0xf]
      %v259 = vld [vmem:[%s215 + $0x6c] sm:$0xf]
      %v260 = vld [vmem:[%s215 + $0x70] sm:$0xf]
      %v261 = vld [vmem:[%s215 + $0x74] sm:$0xf]
      %v262 = vld [vmem:[%s215 + $0x78] sm:$0xf]
      %v263 = vld [vmem:[%s215 + $0x7c] sm:$0xf]
      %v264 = vld [vmem:[%s215 + $0x80] sm:$0xf]
      %v265 = vld [vmem:[%s215 + $0x84] sm:$0xf]
      %v266 = vld [vmem:[%s215 + $0x88] sm:$0xf]
      %v267 = vld [vmem:[%s215 + $0x8c] sm:$0xf]
      %v268 = vld [vmem:[%s215 + $0x90] sm:$0xf]
      %v269 = vld [vmem:[%s215 + $0x94] sm:$0xf]
      %v270 = vld [vmem:[%s215 + $0x98] sm:$0xf]
      %v271 = vld [vmem:[%s215 + $0x9c] sm:$0xf]
      %v272 = vld [vmem:[%s215 + $0xa0] sm:$0xf]
      %v273 = vld [vmem:[%s215 + $0xa4] sm:$0xf]
      %v274 = vld [vmem:[%s215 + $0xa8] sm:$0xf]
      %v275 = vld [vmem:[%s215 + $0xac] sm:$0xf]
      %v276 = vld [vmem:[%s215 + $0xb0] sm:$0xf]
      %v277 = vld [vmem:[%s215 + $0xb4] sm:$0xf]
      %v278 = vld [vmem:[%s215 + $0xb8] sm:$0xf]
      %v279 = vld [vmem:[%s215 + $0xbc] sm:$0xf]
      %v280 = vld [vmem:[%s215 + $0xc0] sm:$0xf]
      %v281 = vld [vmem:[%s215 + $0xc4] sm:$0xf]
      %v282 = vld [vmem:[%s215 + $0xc8] sm:$0xf]
      %v283 = vld [vmem:[%s215 + $0xcc] sm:$0xf]
      %v284 = vld [vmem:[%s215 + $0xd0] sm:$0xf]
      %v285 = vld [vmem:[%s215 + $0xd4] sm:$0xf]
      %v286 = vld [vmem:[%s215 + $0xd8] sm:$0xf]
      %v287 = vld [vmem:[%s215 + $0xdc] sm:$0xf]
      %v288 = vld [vmem:[%s215 + $0xe0] sm:$0xf]
      %v289 = vld [vmem:[%s215 + $0xe4] sm:$0xf]
      %v290 = vld [vmem:[%s215 + $0xe8] sm:$0xf]
      %v291 = vld [vmem:[%s215 + $0xec] sm:$0xf]
      %v292 = vld [vmem:[%s215 + $0xf0] sm:$0xf]
      %v293 = vld [vmem:[%s215 + $0xf4] sm:$0xf]
      %v294 = vld [vmem:[%s215 + $0xf8] sm:$0xf]
      %v295 = vld [vmem:[%s215 + $0xfc] sm:$0xf]
      %v296 = vld [vmem:[%s218] sm:$0x1]
      %v298 = vperm.slane %v296, 0
      %v304 = vunpack.c.l.b16 %v228
      %v305 = vunpack.c.h.b16 %v228
      %v306 = vunpack.c.l.b16 %v229
      %v307 = vunpack.c.h.b16 %v229
      %v308 = vunpack.c.l.b16 %v230
      %v309 = vunpack.c.h.b16 %v230
      %v310 = vunpack.c.l.b16 %v231
      %v311 = vunpack.c.h.b16 %v231
      %v312 = vpack.c.b16 %v308, %v304
      %v313 = vpack.c.b16 %v309, %v305
      %v314 = vpack.c.b16 %v310, %v306
      %v315 = vpack.c.b16 %v311, %v307
      %v384 = vunpack.c.l.b16 %v232
      %v385 = vunpack.c.l.b16 %v233
      %v386 = vunpack.c.l.b16 %v234
      %v387 = vunpack.c.l.b16 %v235
      %v388 = vunpack.c.l.b16 %v236
      %v389 = vunpack.c.l.b16 %v237
      %v390 = vunpack.c.l.b16 %v238
      %v391 = vunpack.c.l.b16 %v239
      %v392 = vunpack.c.l.b16 %v240
      %v393 = vunpack.c.l.b16 %v241
      %v394 = vunpack.c.l.b16 %v242
      %v395 = vunpack.c.l.b16 %v243
      %v396 = vunpack.c.l.b16 %v244
      %v397 = vunpack.c.l.b16 %v245
      %v398 = vunpack.c.l.b16 %v246
      %v399 = vunpack.c.l.b16 %v247
      %v400 = vunpack.c.l.b16 %v248
      %v401 = vunpack.c.l.b16 %v249
      %v402 = vunpack.c.l.b16 %v250
      %v403 = vunpack.c.l.b16 %v251
      %v404 = vunpack.c.l.b16 %v252
      %v405 = vunpack.c.l.b16 %v253
      %v406 = vunpack.c.l.b16 %v254
      %v407 = vunpack.c.l.b16 %v255
      %v408 = vunpack.c.l.b16 %v256
      %v409 = vunpack.c.l.b16 %v257
      %v410 = vunpack.c.l.b16 %v258
      %v411 = vunpack.c.l.b16 %v259
      %v412 = vunpack.c.l.b16 %v260
      %v413 = vunpack.c.l.b16 %v261
      %v414 = vunpack.c.l.b16 %v262
      %v415 = vunpack.c.l.b16 %v263
      %v416 = vunpack.c.l.b16 %v264
      %v417 = vunpack.c.l.b16 %v265
      %v418 = vunpack.c.l.b16 %v266
      %v419 = vunpack.c.l.b16 %v267
      %v420 = vunpack.c.l.b16 %v268
      %v421 = vunpack.c.l.b16 %v269
      %v422 = vunpack.c.l.b16 %v270
      %v423 = vunpack.c.l.b16 %v271
      %v424 = vunpack.c.l.b16 %v272
      %v425 = vunpack.c.l.b16 %v273
      %v426 = vunpack.c.l.b16 %v274
      %v427 = vunpack.c.l.b16 %v275
      %v428 = vunpack.c.l.b16 %v276
      %v429 = vunpack.c.l.b16 %v277
      %v430 = vunpack.c.l.b16 %v278
      %v431 = vunpack.c.l.b16 %v279
      %v432 = vunpack.c.l.b16 %v280
      %v433 = vunpack.c.l.b16 %v281
      %v434 = vunpack.c.l.b16 %v282
      %v435 = vunpack.c.l.b16 %v283
      %v436 = vunpack.c.l.b16 %v284
      %v437 = vunpack.c.l.b16 %v285
      %v438 = vunpack.c.l.b16 %v286
      %v439 = vunpack.c.l.b16 %v287
      %v440 = vunpack.c.l.b16 %v288
      %v441 = vunpack.c.l.b16 %v289
      %v442 = vunpack.c.l.b16 %v290
      %v443 = vunpack.c.l.b16 %v291
      %v444 = vunpack.c.l.b16 %v292
      %v445 = vunpack.c.l.b16 %v293
      %v446 = vunpack.c.l.b16 %v294
      %v447 = vunpack.c.l.b16 %v295
      %v448 = vpack.c.b16 %v385, %v384
      %v449 = vpack.c.b16 %v387, %v386
      %v450 = vpack.c.b16 %v389, %v388
      %v451 = vpack.c.b16 %v391, %v390
      %v452 = vpack.c.b16 %v393, %v392
      %v453 = vpack.c.b16 %v395, %v394
      %v454 = vpack.c.b16 %v397, %v396
      %v455 = vpack.c.b16 %v399, %v398
      %v456 = vpack.c.b16 %v401, %v400
      %v457 = vpack.c.b16 %v403, %v402
      %v458 = vpack.c.b16 %v405, %v404
      %v459 = vpack.c.b16 %v407, %v406
      %v460 = vpack.c.b16 %v409, %v408
      %v461 = vpack.c.b16 %v411, %v410
      %v462 = vpack.c.b16 %v413, %v412
      %v463 = vpack.c.b16 %v415, %v414
      %v464 = vpack.c.b16 %v417, %v416
      %v465 = vpack.c.b16 %v419, %v418
      %v466 = vpack.c.b16 %v421, %v420
      %v467 = vpack.c.b16 %v423, %v422
      %v468 = vpack.c.b16 %v425, %v424
      %v469 = vpack.c.b16 %v427, %v426
      %v470 = vpack.c.b16 %v429, %v428
      %v471 = vpack.c.b16 %v431, %v430
      %v472 = vpack.c.b16 %v433, %v432
      %v473 = vpack.c.b16 %v435, %v434
      %v474 = vpack.c.b16 %v437, %v436
      %v475 = vpack.c.b16 %v439, %v438
      %v476 = vpack.c.b16 %v441, %v440
      %v477 = vpack.c.b16 %v443, %v442
      %v478 = vpack.c.b16 %v445, %v444
      %v479 = vpack.c.b16 %v447, %v446
      %512 = vmatpush.bf16.msra.mxu0 %v455
      %513 = vmatpush.bf16.msra.mxu0 %v454
      %514 = vmatpush.bf16.msra.mxu0 %v453
      %515 = vmatpush.bf16.msra.mxu0 %v452
      %516 = vmatpush.bf16.msra.mxu0 %v451
      %517 = vmatpush.bf16.msra.mxu0 %v450
      %518 = vmatpush.bf16.msra.mxu0 %v449
      %519 = vmatpush.bf16.msra.mxu0 %v448
      %520 = vmatmul.bf16.gmra.mxu0 %v312
      %v521 = vpop.f32.mrf.mxu0
      %v522 = vadd.f32 %v298, %v521
      %v523 = vpop.f32.mrf.mxu0
      %v524 = vadd.f32 %v298, %v523
      %525 = vdwg.mxu0
      %526 = vmatpush.bf16.msra.mxu0 %v463
      %527 = vmatpush.bf16.msra.mxu0 %v462
      %528 = vmatpush.bf16.msra.mxu0 %v461
      %529 = vmatpush.bf16.msra.mxu0 %v460
      %530 = vmatpush.bf16.msra.mxu0 %v459
      %531 = vmatpush.bf16.msra.mxu0 %v458
      %532 = vmatpush.bf16.msra.mxu0 %v457
      %533 = vmatpush.bf16.msra.mxu0 %v456
      %534 = vmatmul.bf16.gmra.mxu0 %v313
      %v535 = vpop.f32.mrf.mxu0
      %v536 = vadd.f32 %v522, %v535
      %v537 = vpop.f32.mrf.mxu0
      %v538 = vadd.f32 %v524, %v537
      %539 = vdwg.mxu0
      %540 = vmatpush.bf16.msra.mxu0 %v471
      %541 = vmatpush.bf16.msra.mxu0 %v470
      %542 = vmatpush.bf16.msra.mxu0 %v469
      %543 = vmatpush.bf16.msra.mxu0 %v468
      %544 = vmatpush.bf16.msra.mxu0 %v467
      %545 = vmatpush.bf16.msra.mxu0 %v466
      %546 = vmatpush.bf16.msra.mxu0 %v465
      %547 = vmatpush.bf16.msra.mxu0 %v464
      %548 = vmatmul.bf16.gmra.mxu0 %v314
      %v549 = vpop.f32.mrf.mxu0
      %v550 = vadd.f32 %v536, %v549
      %v551 = vpop.f32.mrf.mxu0
      %v552 = vadd.f32 %v538, %v551
      %553 = vdwg.mxu0
      %554 = vmatpush.bf16.msra.mxu0 %v479
      %555 = vmatpush.bf16.msra.mxu0 %v478
      %556 = vmatpush.bf16.msra.mxu0 %v477
      %557 = vmatpush.bf16.msra.mxu0 %v476
      %558 = vmatpush.bf16.msra.mxu0 %v475
      %559 = vmatpush.bf16.msra.mxu0 %v474
      %560 = vmatpush.bf16.msra.mxu0 %v473
      %561 = vmatpush.bf16.msra.mxu0 %v472
      %562 = vmatmul.bf16.gmra.mxu0 %v315
      %v563 = vpop.f32.mrf.mxu0
      %v564 = vadd.f32 %v550, %v563
      %v565 = vpop.f32.mrf.mxu0
      %v566 = vadd.f32 %v552, %v565
      %567 = vdwg.mxu0
      %v568 = vmax.f32 %v564, 0.0
      %v569 = vmax.f32 %v566, 0.0
      %v570 = vpack.c.bf16 %v568, %v568
      %v571 = vpack.c.bf16 %v569, %v569
      %572 = vst [vmem:[%s226] sm:$0xf] %v570
      %573 = vst [vmem:[%s226 + $0x4] sm:$0xf] %v571
      %s574 = smul.u32 2, %s18
      %p575 = scmp.lt.s32.totalorder %s574, 3
      %s576 = scalar_select %p575, %s574, 3
      %p577 = scmp.lt.s32.totalorder %s19, 0
      %s578 = scalar_select %p577, %s19, 0
      %s579 = sadd.s32 %s578, %s576
      %s580 = smul.addr %s579, 4
      %s581 = scalar_lea.vmem %s3, %s580
      // Predicated region
      $region33: #{conv_vae_forward.8} parent=31 // pred_check
        %p582 = pneg %p124
      $region34: #{conv_vae_forward.8} parent=31 // pred_check_branch
        %584 = sbr.rel (%p582) target = $region36
      $region35: #{conv_vae_forward.8} parent=31 // pred_region
        %s585 = smul.u32 2, %s18
      $region36: #{conv_vae_forward.8} parent=31 // pred_fallthru
        _
    $region32: #{conv_vae_forward.8} parent=5 // pred_fallthru
      _
    %p586 = scmp.le.s32.totalorder 2, %s9
    // Predicated region
    $region37: #{conv_vae_forward.8} parent=5 // pred_check
      %p587 = pneg %p586
    $region38: #{conv_vae_forward.8} parent=5 // pred_check_branch
      %589 = sbr.rel (%p587) target = $region40
    $region39: #{conv_vae_forward.8} parent=5 // pred_region
      %s590 = ssub.s32 %s9, 2
      // Predicated region
      $region41: #{conv_vae_forward.8} parent=39 // pred_check
        %p591 = pneg %p130
      $region42: #{conv_vae_forward.8} parent=39 // pred_check_branch
        %593 = sbr.rel (%p591) target = $region44
      $region43: #{conv_vae_forward.8} parent=39 // pred_region
        %s594 = smul.u32 2, %s20
        %p595 = scmp.lt.s32.totalorder %s594, 3
        %s596 = scalar_select %p595, %s594, 3
        %p597 = scmp.lt.s32.totalorder %s21, 0
        %s598 = scalar_select %p597, %s21, 0
        %s599 = sadd.s32 %s598, %s596
        %s600 = smul.addr %s599, 4
        %s601 = scalar_lea.vmem %s3, %s600
      $region44: #{conv_vae_forward.8} parent=39 // pred_fallthru
        _
    $region40: #{conv_vae_forward.8} parent=5 // pred_fallthru
      _
  $region6: #{conv_vae_forward.8} parent=0 // loop_footer
    %s13 = sadd.s32 1, %s9
  $region7: #{conv_vae_forward.8} parent=0 // loop_footer_branch
    %8 = sbr.rel target = $region3
  $region8: #{conv_vae_forward.8} parent=0 // loop_exit
    _

// kernel: conv_vae_forward.9
$region0: #{conv_vae_forward.9}
  #allocation0 [shape = 'u32[]', space=smem, size = 0x4, offset = 0x4, fixed_abs, tag = 'smem constant byte address 0x4 - core index']
  #allocation1 [shape = 'u32[72,128]{1,0:T(1,128)}', space=vmem, size = 0x9000, scoped, tag = 'internal scratch']
  %s0 = inlined_call_operand.vmem [shape: bf16[16,1024], index: 0, kind: input, shape index: {}]
  %s1 = inlined_call_operand.vmem [shape: bf16[1024,128], index: 1, kind: input, shape index: {}]
  %s2 = inlined_call_operand.vmem [shape: f32[1,128], index: 2, kind: input, shape index: {}]
  %s3 = inlined_call_operand.vmem [shape: bf16[16,128], index: 3, kind: output, shape index: {}]
  %s4 = sld [smem:[#allocation0]]
  $region22: #{conv_vae_forward.9} parent=0
    _
  %s6 = ssub.s32 1, %s4
  %s7 = scalar_select 0, %s6, %s4
  // Predicated region
  $region2: #{conv_vae_forward.9} parent=0 // pred_check
    _
  $region3: #{conv_vae_forward.9} parent=0 // pred_check_branch
    %9 = sbr.rel (0) target = $region5
  $region4: #{conv_vae_forward.9} parent=0 // pred_region
    _
  $region5: #{conv_vae_forward.9} parent=0 // pred_fallthru
    _
  // Predicated region
  $region6: #{conv_vae_forward.9} parent=0 // pred_check
    _
  $region7: #{conv_vae_forward.9} parent=0 // pred_check_branch
    %11 = sbr.rel (0) target = $region9
  $region8: #{conv_vae_forward.9} parent=0 // pred_region
    _
  $region9: #{conv_vae_forward.9} parent=0 // pred_fallthru
    _
  // Predicated region
  $region10: #{conv_vae_forward.9} parent=0 // pred_check
    _
  $region11: #{conv_vae_forward.9} parent=0 // pred_check_branch
    %13 = sbr.rel (0) target = $region13
  $region12: #{conv_vae_forward.9} parent=0 // pred_region
    _
  $region13: #{conv_vae_forward.9} parent=0 // pred_fallthru
    _
  %v14 = vld [vmem:[%s0] sm:$0xff]
  %v15 = vld [vmem:[%s0 + $0x8] sm:$0xff]
  %v16 = vld [vmem:[%s0 + $0x10] sm:$0xff]
  %v17 = vld [vmem:[%s0 + $0x18] sm:$0xff]
  %v18 = vld [vmem:[%s0 + $0x20] sm:$0xff]
  %v19 = vld [vmem:[%s0 + $0x28] sm:$0xff]
  %v20 = vld [vmem:[%s0 + $0x30] sm:$0xff]
  %v21 = vld [vmem:[%s0 + $0x38] sm:$0xff]
  %v22 = vld [vmem:[%s1] sm:$0xf]
  %v23 = vld [vmem:[%s1 + $0x4] sm:$0xf]
  %v24 = vld [vmem:[%s1 + $0x8] sm:$0xf]
  %v25 = vld [vmem:[%s1 + $0xc] sm:$0xf]
  %v26 = vld [vmem:[%s1 + $0x10] sm:$0xf]
  %v27 = vld [vmem:[%s1 + $0x14] sm:$0xf]
  %v28 = vld [vmem:[%s1 + $0x18] sm:$0xf]
  %v29 = vld [vmem:[%s1 + $0x1c] sm:$0xf]
  %v30 = vld [vmem:[%s1 + $0x20] sm:$0xf]
  %v31 = vld [vmem:[%s1 + $0x24] sm:$0xf]
  %v32 = vld [vmem:[%s1 + $0x28] sm:$0xf]
  %v33 = vld [vmem:[%s1 + $0x2c] sm:$0xf]
  %v34 = vld [vmem:[%s1 + $0x30] sm:$0xf]
  %v35 = vld [vmem:[%s1 + $0x34] sm:$0xf]
  %v36 = vld [vmem:[%s1 + $0x38] sm:$0xf]
  %v37 = vld [vmem:[%s1 + $0x3c] sm:$0xf]
  %v38 = vld [vmem:[%s1 + $0x40] sm:$0xf]
  %v39 = vld [vmem:[%s1 + $0x44] sm:$0xf]
  %v40 = vld [vmem:[%s1 + $0x48] sm:$0xf]
  %v41 = vld [vmem:[%s1 + $0x4c] sm:$0xf]
  %v42 = vld [vmem:[%s1 + $0x50] sm:$0xf]
  %v43 = vld [vmem:[%s1 + $0x54] sm:$0xf]
  %v44 = vld [vmem:[%s1 + $0x58] sm:$0xf]
  %v45 = vld [vmem:[%s1 + $0x5c] sm:$0xf]
  %v46 = vld [vmem:[%s1 + $0x60] sm:$0xf]
  %v47 = vld [vmem:[%s1 + $0x64] sm:$0xf]
  %v48 = vld [vmem:[%s1 + $0x68] sm:$0xf]
  %v49 = vld [vmem:[%s1 + $0x6c] sm:$0xf]
  %v50 = vld [vmem:[%s1 + $0x70] sm:$0xf]
  %v51 = vld [vmem:[%s1 + $0x74] sm:$0xf]
  %v52 = vld [vmem:[%s1 + $0x78] sm:$0xf]
  %v53 = vld [vmem:[%s1 + $0x7c] sm:$0xf]
  %v54 = vld [vmem:[%s1 + $0x80] sm:$0xf]
  %v55 = vld [vmem:[%s1 + $0x84] sm:$0xf]
  %v56 = vld [vmem:[%s1 + $0x88] sm:$0xf]
  %v57 = vld [vmem:[%s1 + $0x8c] sm:$0xf]
  %v58 = vld [vmem:[%s1 + $0x90] sm:$0xf]
  %v59 = vld [vmem:[%s1 + $0x94] sm:$0xf]
  %v60 = vld [vmem:[%s1 + $0x98] sm:$0xf]
  %v61 = vld [vmem:[%s1 + $0x9c] sm:$0xf]
  %v62 = vld [vmem:[%s1 + $0xa0] sm:$0xf]
  %v63 = vld [vmem:[%s1 + $0xa4] sm:$0xf]
  %v64 = vld [vmem:[%s1 + $0xa8] sm:$0xf]
  %v65 = vld [vmem:[%s1 + $0xac] sm:$0xf]
  %v66 = vld [vmem:[%s1 + $0xb0] sm:$0xf]
  %v67 = vld [vmem:[%s1 + $0xb4] sm:$0xf]
  %v68 = vld [vmem:[%s1 + $0xb8] sm:$0xf]
  %v69 = vld [vmem:[%s1 + $0xbc] sm:$0xf]
  %v70 = vld [vmem:[%s1 + $0xc0] sm:$0xf]
  %v71 = vld [vmem:[%s1 + $0xc4] sm:$0xf]
  %v72 = vld [vmem:[%s1 + $0xc8] sm:$0xf]
  %v73 = vld [vmem:[%s1 + $0xcc] sm:$0xf]
  %v74 = vld [vmem:[%s1 + $0xd0] sm:$0xf]
  %v75 = vld [vmem:[%s1 + $0xd4] sm:$0xf]
  %v76 = vld [vmem:[%s1 + $0xd8] sm:$0xf]
  %v77 = vld [vmem:[%s1 + $0xdc] sm:$0xf]
  %v78 = vld [vmem:[%s1 + $0xe0] sm:$0xf]
  %v79 = vld [vmem:[%s1 + $0xe4] sm:$0xf]
  %v80 = vld [vmem:[%s1 + $0xe8] sm:$0xf]
  %v81 = vld [vmem:[%s1 + $0xec] sm:$0xf]
  %v82 = vld [vmem:[%s1 + $0xf0] sm:$0xf]
  %v83 = vld [vmem:[%s1 + $0xf4] sm:$0xf]
  %v84 = vld [vmem:[%s1 + $0xf8] sm:$0xf]
  %v85 = vld [vmem:[%s1 + $0xfc] sm:$0xf]
  %v86 = vld [vmem:[%s1 + $0x100] sm:$0xf]
  %v87 = vld [vmem:[%s1 + $0x104] sm:$0xf]
  %v88 = vld [vmem:[%s1 + $0x108] sm:$0xf]
  %v89 = vld [vmem:[%s1 + $0x10c] sm:$0xf]
  %v90 = vld [vmem:[%s1 + $0x110] sm:$0xf]
  %v91 = vld [vmem:[%s1 + $0x114] sm:$0xf]
  %v92 = vld [vmem:[%s1 + $0x118] sm:$0xf]
  %v93 = vld [vmem:[%s1 + $0x11c] sm:$0xf]
  %v94 = vld [vmem:[%s1 + $0x120] sm:$0xf]
  %v95 = vld [vmem:[%s1 + $0x124] sm:$0xf]
  %v96 = vld [vmem:[%s1 + $0x128] sm:$0xf]
  %v97 = vld [vmem:[%s1 + $0x12c] sm:$0xf]
  %v98 = vld [vmem:[%s1 + $0x130] sm:$0xf]
  %v99 = vld [vmem:[%s1 + $0x134] sm:$0xf]
  %v100 = vld [vmem:[%s1 + $0x138] sm:$0xf]
  %v101 = vld [vmem:[%s1 + $0x13c] sm:$0xf]
  %v102 = vld [vmem:[%s1 + $0x140] sm:$0xf]
  %v103 = vld [vmem:[%s1 + $0x144] sm:$0xf]
  %v104 = vld [vmem:[%s1 + $0x148] sm:$0xf]
  %v105 = vld [vmem:[%s1 + $0x14c] sm:$0xf]
  %v106 = vld [vmem:[%s1 + $0x150] sm:$0xf]
  %v107 = vld [vmem:[%s1 + $0x154] sm:$0xf]
  %v108 = vld [vmem:[%s1 + $0x158] sm:$0xf]
  %v109 = vld [vmem:[%s1 + $0x15c] sm:$0xf]
  %v110 = vld [vmem:[%s1 + $0x160] sm:$0xf]
  %v111 = vld [vmem:[%s1 + $0x164] sm:$0xf]
  %v112 = vld [vmem:[%s1 + $0x168] sm:$0xf]
  %v113 = vld [vmem:[%s1 + $0x16c] sm:$0xf]
  %v114 = vld [vmem:[%s1 + $0x170] sm:$0xf]
  %v115 = vld [vmem:[%s1 + $0x174] sm:$0xf]
  %v116 = vld [vmem:[%s1 + $0x178] sm:$0xf]
  %v117 = vld [vmem:[%s1 + $0x17c] sm:$0xf]
  %v118 = vld [vmem:[%s1 + $0x180] sm:$0xf]
  %v119 = vld [vmem:[%s1 + $0x184] sm:$0xf]
  %v120 = vld [vmem:[%s1 + $0x188] sm:$0xf]
  %v121 = vld [vmem:[%s1 + $0x18c] sm:$0xf]
  %v122 = vld [vmem:[%s1 + $0x190] sm:$0xf]
  %v123 = vld [vmem:[%s1 + $0x194] sm:$0xf]
  %v124 = vld [vmem:[%s1 + $0x198] sm:$0xf]
  %v125 = vld [vmem:[%s1 + $0x19c] sm:$0xf]
  %v126 = vld [vmem:[%s1 + $0x1a0] sm:$0xf]
  %v127 = vld [vmem:[%s1 + $0x1a4] sm:$0xf]
  %v128 = vld [vmem:[%s1 + $0x1a8] sm:$0xf]
  %v129 = vld [vmem:[%s1 + $0x1ac] sm:$0xf]
  %v130 = vld [vmem:[%s1 + $0x1b0] sm:$0xf]
  %v131 = vld [vmem:[%s1 + $0x1b4] sm:$0xf]
  %v132 = vld [vmem:[%s1 + $0x1b8] sm:$0xf]
  %v133 = vld [vmem:[%s1 + $0x1bc] sm:$0xf]
  %v134 = vld [vmem:[%s1 + $0x1c0] sm:$0xf]
  %v135 = vld [vmem:[%s1 + $0x1c4] sm:$0xf]
  %v136 = vld [vmem:[%s1 + $0x1c8] sm:$0xf]
  %v137 = vld [vmem:[%s1 + $0x1cc] sm:$0xf]
  %v138 = vld [vmem:[%s1 + $0x1d0] sm:$0xf]
  %v139 = vld [vmem:[%s1 + $0x1d4] sm:$0xf]
  %v140 = vld [vmem:[%s1 + $0x1d8] sm:$0xf]
  %v141 = vld [vmem:[%s1 + $0x1dc] sm:$0xf]
  %v142 = vld [vmem:[%s1 + $0x1e0] sm:$0xf]
  %v143 = vld [vmem:[%s1 + $0x1e4] sm:$0xf]
  %v144 = vld [vmem:[%s1 + $0x1e8] sm:$0xf]
  %v145 = vld [vmem:[%s1 + $0x1ec] sm:$0xf]
  %v146 = vld [vmem:[%s1 + $0x1f0] sm:$0xf]
  %v147 = vld [vmem:[%s1 + $0x1f4] sm:$0xf]
  %v148 = vld [vmem:[%s1 + $0x1f8] sm:$0xf]
  %v149 = vld [vmem:[%s1 + $0x1fc] sm:$0xf]
  %v150 = vld [vmem:[%s2] sm:$0x1]
  %v152 = vperm.slane %v150, 0
  %v162 = vunpack.c.l.b16 %v14
  %v163 = vunpack.c.h.b16 %v14
  %v164 = vunpack.c.l.b16 %v15
  %v165 = vunpack.c.h.b16 %v15
  %v166 = vunpack.c.l.b16 %v16
  %v167 = vunpack.c.h.b16 %v16
  %v168 = vunpack.c.l.b16 %v17
  %v169 = vunpack.c.h.b16 %v17
  %v170 = vunpack.c.l.b16 %v18
  %v171 = vunpack.c.h.b16 %v18
  %v172 = vunpack.c.l.b16 %v19
  %v173 = vunpack.c.h.b16 %v19
  %v174 = vunpack.c.l.b16 %v20
  %v175 = vunpack.c.h.b16 %v20
  %v176 = vunpack.c.l.b16 %v21
  %v177 = vunpack.c.h.b16 %v21
  %v178 = vpack.c.b16 %v170, %v162
  %v179 = vpack.c.b16 %v171, %v163
  %v180 = vpack.c.b16 %v172, %v164
  %v181 = vpack.c.b16 %v173, %v165
  %v182 = vpack.c.b16 %v174, %v166
  %v183 = vpack.c.b16 %v175, %v167
  %v184 = vpack.c.b16 %v176, %v168
  %v185 = vpack.c.b16 %v177, %v169
  %v322 = vunpack.c.l.b16 %v22
  %v323 = vunpack.c.l.b16 %v23
  %v324 = vunpack.c.l.b16 %v24
  %v325 = vunpack.c.l.b16 %v25
  %v326 = vunpack.c.l.b16 %v26
  %v327 = vunpack.c.l.b16 %v27
  %v328 = vunpack.c.l.b16 %v28
  %v329 = vunpack.c.l.b16 %v29
  %v330 = vunpack.c.l.b16 %v30
  %v331 = vunpack.c.l.b16 %v31
  %v332 = vunpack.c.l.b16 %v32
  %v333 = vunpack.c.l.b16 %v33
  %v334 = vunpack.c.l.b16 %v34
  %v335 = vunpack.c.l.b16 %v35
  %v336 = vunpack.c.l.b16 %v36
  %v337 = vunpack.c.l.b16 %v37
  %v338 = vunpack.c.l.b16 %v38
  %v339 = vunpack.c.l.b16 %v39
  %v340 = vunpack.c.l.b16 %v40
  %v341 = vunpack.c.l.b16 %v41
  %v342 = vunpack.c.l.b16 %v42
  %v343 = vunpack.c.l.b16 %v43
  %v344 = vunpack.c.l.b16 %v44
  %v345 = vunpack.c.l.b16 %v45
  %v346 = vunpack.c.l.b16 %v46
  %v347 = vunpack.c.l.b16 %v47
  %v348 = vunpack.c.l.b16 %v48
  %v349 = vunpack.c.l.b16 %v49
  %v350 = vunpack.c.l.b16 %v50
  %v351 = vunpack.c.l.b16 %v51
  %v352 = vunpack.c.l.b16 %v52
  %v353 = vunpack.c.l.b16 %v53
  %v354 = vunpack.c.l.b16 %v54
  %v355 = vunpack.c.l.b16 %v55
  %v356 = vunpack.c.l.b16 %v56
  %v357 = vunpack.c.l.b16 %v57
  %v358 = vunpack.c.l.b16 %v58
  %v359 = vunpack.c.l.b16 %v59
  %v360 = vunpack.c.l.b16 %v60
  %v361 = vunpack.c.l.b16 %v61
  %v362 = vunpack.c.l.b16 %v62
  %v363 = vunpack.c.l.b16 %v63
  %v364 = vunpack.c.l.b16 %v64
  %v365 = vunpack.c.l.b16 %v65
  %v366 = vunpack.c.l.b16 %v66
  %v367 = vunpack.c.l.b16 %v67
  %v368 = vunpack.c.l.b16 %v68
  %v369 = vunpack.c.l.b16 %v69
  %v370 = vunpack.c.l.b16 %v70
  %v371 = vunpack.c.l.b16 %v71
  %v372 = vunpack.c.l.b16 %v72
  %v373 = vunpack.c.l.b16 %v73
  %v374 = vunpack.c.l.b16 %v74
  %v375 = vunpack.c.l.b16 %v75
  %v376 = vunpack.c.l.b16 %v76
  %v377 = vunpack.c.l.b16 %v77
  %v378 = vunpack.c.l.b16 %v78
  %v379 = vunpack.c.l.b16 %v79
  %v380 = vunpack.c.l.b16 %v80
  %v381 = vunpack.c.l.b16 %v81
  %v382 = vunpack.c.l.b16 %v82
  %v383 = vunpack.c.l.b16 %v83
  %v384 = vunpack.c.l.b16 %v84
  %v385 = vunpack.c.l.b16 %v85
  %v386 = vunpack.c.l.b16 %v86
  %v387 = vunpack.c.l.b16 %v87
  %v388 = vunpack.c.l.b16 %v88
  %v389 = vunpack.c.l.b16 %v89
  %v390 = vunpack.c.l.b16 %v90
  %v391 = vunpack.c.l.b16 %v91
  %v392 = vunpack.c.l.b16 %v92
  %v393 = vunpack.c.l.b16 %v93
  %v394 = vunpack.c.l.b16 %v94
  %v395 = vunpack.c.l.b16 %v95
  %v396 = vunpack.c.l.b16 %v96
  %v397 = vunpack.c.l.b16 %v97
  %v398 = vunpack.c.l.b16 %v98
  %v399 = vunpack.c.l.b16 %v99
  %v400 = vunpack.c.l.b16 %v100
  %v401 = vunpack.c.l.b16 %v101
  %v402 = vunpack.c.l.b16 %v102
  %v403 = vunpack.c.l.b16 %v103
  %v404 = vunpack.c.l.b16 %v104
  %v405 = vunpack.c.l.b16 %v105
  %v406 = vunpack.c.l.b16 %v106
  %v407 = vunpack.c.l.b16 %v107
  %v408 = vunpack.c.l.b16 %v108
  %v409 = vunpack.c.l.b16 %v109
  %v410 = vunpack.c.l.b16 %v110
  %v411 = vunpack.c.l.b16 %v111
  %v412 = vunpack.c.l.b16 %v112
  %v413 = vunpack.c.l.b16 %v113
  %v414 = vunpack.c.l.b16 %v114
  %v415 = vunpack.c.l.b16 %v115
  %v416 = vunpack.c.l.b16 %v116
  %v417 = vunpack.c.l.b16 %v117
  %v418 = vunpack.c.l.b16 %v118
  %v419 = vunpack.c.l.b16 %v119
  %v420 = vunpack.c.l.b16 %v120
  %v421 = vunpack.c.l.b16 %v121
  %v422 = vunpack.c.l.b16 %v122
  %v423 = vunpack.c.l.b16 %v123
  %v424 = vunpack.c.l.b16 %v124
  %v425 = vunpack.c.l.b16 %v125
  %v426 = vunpack.c.l.b16 %v126
  %v427 = vunpack.c.l.b16 %v127
  %v428 = vunpack.c.l.b16 %v128
  %v429 = vunpack.c.l.b16 %v129
  %v430 = vunpack.c.l.b16 %v130
  %v431 = vunpack.c.l.b16 %v131
  %v432 = vunpack.c.l.b16 %v132
  %v433 = vunpack.c.l.b16 %v133
  %v434 = vunpack.c.l.b16 %v134
  %v435 = vunpack.c.l.b16 %v135
  %v436 = vunpack.c.l.b16 %v136
  %v437 = vunpack.c.l.b16 %v137
  %v438 = vunpack.c.l.b16 %v138
  %v439 = vunpack.c.l.b16 %v139
  %v440 = vunpack.c.l.b16 %v140
  %v441 = vunpack.c.l.b16 %v141
  %v442 = vunpack.c.l.b16 %v142
  %v443 = vunpack.c.l.b16 %v143
  %v444 = vunpack.c.l.b16 %v144
  %v445 = vunpack.c.l.b16 %v145
  %v446 = vunpack.c.l.b16 %v146
  %v447 = vunpack.c.l.b16 %v147
  %v448 = vunpack.c.l.b16 %v148
  %v449 = vunpack.c.l.b16 %v149
  %v450 = vpack.c.b16 %v323, %v322
  %v451 = vpack.c.b16 %v325, %v324
  %v452 = vpack.c.b16 %v327, %v326
  %v453 = vpack.c.b16 %v329, %v328
  %v454 = vpack.c.b16 %v331, %v330
  %v455 = vpack.c.b16 %v333, %v332
  %v456 = vpack.c.b16 %v335, %v334
  %v457 = vpack.c.b16 %v337, %v336
  %v458 = vpack.c.b16 %v339, %v338
  %v459 = vpack.c.b16 %v341, %v340
  %v460 = vpack.c.b16 %v343, %v342
  %v461 = vpack.c.b16 %v345, %v344
  %v462 = vpack.c.b16 %v347, %v346
  %v463 = vpack.c.b16 %v349, %v348
  %v464 = vpack.c.b16 %v351, %v350
  %v465 = vpack.c.b16 %v353, %v352
  %v466 = vpack.c.b16 %v355, %v354
  %v467 = vpack.c.b16 %v357, %v356
  %v468 = vpack.c.b16 %v359, %v358
  %v469 = vpack.c.b16 %v361, %v360
  %v470 = vpack.c.b16 %v363, %v362
  %v471 = vpack.c.b16 %v365, %v364
  %v472 = vpack.c.b16 %v367, %v366
  %v473 = vpack.c.b16 %v369, %v368
  %v474 = vpack.c.b16 %v371, %v370
  %v475 = vpack.c.b16 %v373, %v372
  %v476 = vpack.c.b16 %v375, %v374
  %v477 = vpack.c.b16 %v377, %v376
  %v478 = vpack.c.b16 %v379, %v378
  %v479 = vpack.c.b16 %v381, %v380
  %v480 = vpack.c.b16 %v383, %v382
  %v481 = vpack.c.b16 %v385, %v384
  %v482 = vpack.c.b16 %v387, %v386
  %v483 = vpack.c.b16 %v389, %v388
  %v484 = vpack.c.b16 %v391, %v390
  %v485 = vpack.c.b16 %v393, %v392
  %v486 = vpack.c.b16 %v395, %v394
  %v487 = vpack.c.b16 %v397, %v396
  %v488 = vpack.c.b16 %v399, %v398
  %v489 = vpack.c.b16 %v401, %v400
  %v490 = vpack.c.b16 %v403, %v402
  %v491 = vpack.c.b16 %v405, %v404
  %v492 = vpack.c.b16 %v407, %v406
  %v493 = vpack.c.b16 %v409, %v408
  %v494 = vpack.c.b16 %v411, %v410
  %v495 = vpack.c.b16 %v413, %v412
  %v496 = vpack.c.b16 %v415, %v414
  %v497 = vpack.c.b16 %v417, %v416
  %v498 = vpack.c.b16 %v419, %v418
  %v499 = vpack.c.b16 %v421, %v420
  %v500 = vpack.c.b16 %v423, %v422
  %v501 = vpack.c.b16 %v425, %v424
  %v502 = vpack.c.b16 %v427, %v426
  %v503 = vpack.c.b16 %v429, %v428
  %v504 = vpack.c.b16 %v431, %v430
  %v505 = vpack.c.b16 %v433, %v432
  %v506 = vpack.c.b16 %v435, %v434
  %v507 = vpack.c.b16 %v437, %v436
  %v508 = vpack.c.b16 %v439, %v438
  %v509 = vpack.c.b16 %v441, %v440
  %v510 = vpack.c.b16 %v443, %v442
  %v511 = vpack.c.b16 %v445, %v444
  %v512 = vpack.c.b16 %v447, %v446
  %v513 = vpack.c.b16 %v449, %v448
  %578 = vmatpush.bf16.msra.mxu0 %v457
  %579 = vmatpush.bf16.msra.mxu0 %v456
  %580 = vmatpush.bf16.msra.mxu0 %v455
  %581 = vmatpush.bf16.msra.mxu0 %v454
  %582 = vmatpush.bf16.msra.mxu0 %v453
  %583 = vmatpush.bf16.msra.mxu0 %v452
  %584 = vmatpush.bf16.msra.mxu0 %v451
  %585 = vmatpush.bf16.msra.mxu0 %v450
  %586 = vmatmul.bf16.gmra.mxu0 %v178
  %v587 = vpop.f32.mrf.mxu0
  %v588 = vadd.f32 %v152, %v587
  %v589 = vpop.f32.mrf.mxu0
  %v590 = vadd.f32 %v152, %v589
  %591 = vdwg.mxu0
  %592 = vmatpush.bf16.msra.mxu0 %v465
  %593 = vmatpush.bf16.msra.mxu0 %v464
  %594 = vmatpush.bf16.msra.mxu0 %v463
  %595 = vmatpush.bf16.msra.mxu0 %v462
  %596 = vmatpush.bf16.msra.mxu0 %v461
  %597 = vmatpush.bf16.msra.mxu0 %v460
  %598 = vmatpush.bf16.msra.mxu0 %v459
  %599 = vmatpush.bf16.msra.mxu0 %v458
  %600 = vmatmul.bf16.gmra.mxu0 %v179
  %v601 = vpop.f32.mrf.mxu0
  %v602 = vadd.f32 %v588, %v601
  %v603 = vpop.f32.mrf.mxu0
  %v604 = vadd.f32 %v590, %v603
  %605 = vdwg.mxu0
  %606 = vmatpush.bf16.msra.mxu0 %v473
  %607 = vmatpush.bf16.msra.mxu0 %v472
  %608 = vmatpush.bf16.msra.mxu0 %v471
  %609 = vmatpush.bf16.msra.mxu0 %v470
  %610 = vmatpush.bf16.msra.mxu0 %v469
  %611 = vmatpush.bf16.msra.mxu0 %v468
  %612 = vmatpush.bf16.msra.mxu0 %v467
  %613 = vmatpush.bf16.msra.mxu0 %v466
  %614 = vmatmul.bf16.gmra.mxu0 %v180
  %v615 = vpop.f32.mrf.mxu0
  %v616 = vadd.f32 %v602, %v615
  %v617 = vpop.f32.mrf.mxu0
  %v618 = vadd.f32 %v604, %v617
  %619 = vdwg.mxu0
  %620 = vmatpush.bf16.msra.mxu0 %v481
  %621 = vmatpush.bf16.msra.mxu0 %v480
  %622 = vmatpush.bf16.msra.mxu0 %v479
  %623 = vmatpush.bf16.msra.mxu0 %v478
  %624 = vmatpush.bf16.msra.mxu0 %v477
  %625 = vmatpush.bf16.msra.mxu0 %v476
  %626 = vmatpush.bf16.msra.mxu0 %v475
  %627 = vmatpush.bf16.msra.mxu0 %v474
  %628 = vmatmul.bf16.gmra.mxu0 %v181
  %v629 = vpop.f32.mrf.mxu0
  %v630 = vadd.f32 %v616, %v629
  %v631 = vpop.f32.mrf.mxu0
  %v632 = vadd.f32 %v618, %v631
  %633 = vdwg.mxu0
  %634 = vmatpush.bf16.msra.mxu0 %v489
  %635 = vmatpush.bf16.msra.mxu0 %v488
  %636 = vmatpush.bf16.msra.mxu0 %v487
  %637 = vmatpush.bf16.msra.mxu0 %v486
  %638 = vmatpush.bf16.msra.mxu0 %v485
  %639 = vmatpush.bf16.msra.mxu0 %v484
  %640 = vmatpush.bf16.msra.mxu0 %v483
  %641 = vmatpush.bf16.msra.mxu0 %v482
  %642 = vmatmul.bf16.gmra.mxu0 %v182
  %v643 = vpop.f32.mrf.mxu0
  %v644 = vadd.f32 %v630, %v643
  %v645 = vpop.f32.mrf.mxu0
  %v646 = vadd.f32 %v632, %v645
  %647 = vdwg.mxu0
  %648 = vmatpush.bf16.msra.mxu0 %v497
  %649 = vmatpush.bf16.msra.mxu0 %v496
  %650 = vmatpush.bf16.msra.mxu0 %v495
  %651 = vmatpush.bf16.msra.mxu0 %v494
  %652 = vmatpush.bf16.msra.mxu0 %v493
  %653 = vmatpush.bf16.msra.mxu0 %v492
  %654 = vmatpush.bf16.msra.mxu0 %v491
  %655 = vmatpush.bf16.msra.mxu0 %v490
  %656 = vmatmul.bf16.gmra.mxu0 %v183
  %v657 = vpop.f32.mrf.mxu0
  %v658 = vadd.f32 %v644, %v657
  %v659 = vpop.f32.mrf.mxu0
  %v660 = vadd.f32 %v646, %v659
  %661 = vdwg.mxu0
  %662 = vmatpush.bf16.msra.mxu0 %v505
  %663 = vmatpush.bf16.msra.mxu0 %v504
  %664 = vmatpush.bf16.msra.mxu0 %v503
  %665 = vmatpush.bf16.msra.mxu0 %v502
  %666 = vmatpush.bf16.msra.mxu0 %v501
  %667 = vmatpush.bf16.msra.mxu0 %v500
  %668 = vmatpush.bf16.msra.mxu0 %v499
  %669 = vmatpush.bf16.msra.mxu0 %v498
  %670 = vmatmul.bf16.gmra.mxu0 %v184
  %v671 = vpop.f32.mrf.mxu0
  %v672 = vadd.f32 %v658, %v671
  %v673 = vpop.f32.mrf.mxu0
  %v674 = vadd.f32 %v660, %v673
  %675 = vdwg.mxu0
  %676 = vmatpush.bf16.msra.mxu0 %v513
  %677 = vmatpush.bf16.msra.mxu0 %v512
  %678 = vmatpush.bf16.msra.mxu0 %v511
  %679 = vmatpush.bf16.msra.mxu0 %v510
  %680 = vmatpush.bf16.msra.mxu0 %v509
  %681 = vmatpush.bf16.msra.mxu0 %v508
  %682 = vmatpush.bf16.msra.mxu0 %v507
  %683 = vmatpush.bf16.msra.mxu0 %v506
  %684 = vmatmul.bf16.gmra.mxu0 %v185
  %v685 = vpop.f32.mrf.mxu0
  %v686 = vadd.f32 %v672, %v685
  %v687 = vpop.f32.mrf.mxu0
  %v688 = vadd.f32 %v674, %v687
  %689 = vdwg.mxu0
  %v690 = vmax.f32 %v686, 0.0
  %v691 = vmax.f32 %v688, 0.0
  %v692 = vpack.c.bf16 %v690, %v690
  %v693 = vpack.c.bf16 %v691, %v691
  %694 = vst [vmem:[%s3] sm:$0xf] %v692
  %695 = vst [vmem:[%s3 + $0x4] sm:$0xf] %v693
  // Predicated region
  $region14: #{conv_vae_forward.9} parent=0 // pred_check
    _
  $region15: #{conv_vae_forward.9} parent=0 // pred_check_branch
    %697 = sbr.rel (0) target = $region17
  $region16: #{conv_vae_forward.9} parent=0 // pred_region
    _
  $region17: #{conv_vae_forward.9} parent=0 // pred_fallthru
    _
  // Predicated region
  $region18: #{conv_vae_forward.9} parent=0 // pred_check
    _
  $region19: #{conv_vae_forward.9} parent=0 // pred_check_branch
    %699 = sbr.rel (0) target = $region21
  $region20: #{conv_vae_forward.9} parent=0 // pred_region
    _
  $region21: #{conv_vae_forward.9} parent=0 // pred_fallthru
    _

// kernel: conv_vae_forward.10
$region0: #{conv_vae_forward.10}
  #allocation0 [shape = 'u32[]', space=smem, size = 0x4, offset = 0x4, fixed_abs, tag = 'smem constant byte address 0x4 - core index']
  #allocation1 [shape = 'u32[72,128]{1,0:T(1,128)}', space=vmem, size = 0x9000, scoped, tag = 'internal scratch']
  #allocation2 [shape = 'bf16[16,128]{1,0:T(8,128)(2,1)}', space=vmem, size = 0x1000, scoped, tag = 'scratch operand']
  %s0 = inlined_call_operand.vmem [shape: bf16[16,512], index: 0, kind: input, shape index: {}]
  %s1 = inlined_call_operand.vmem [shape: bf16[512,256], index: 1, kind: input, shape index: {}]
  %s2 = inlined_call_operand.vmem [shape: f32[1,256], index: 2, kind: input, shape index: {}]
  %s3 = inlined_call_operand.vmem [shape: f32[16,128], index: 3, kind: input, shape index: {}]
  %s4 = inlined_call_operand.vmem [shape: bf16[128,512], index: 4, kind: input, shape index: {}]
  %s5 = inlined_call_operand.vmem [shape: f32[1,512], index: 5, kind: input, shape index: {}]
  %s6 = inlined_call_operand.vmem [shape: f32[16,128], index: 6, kind: output, shape index: {0}]
  %s7 = inlined_call_operand.vmem [shape: f32[16,128], index: 7, kind: output, shape index: {1}]
  %s8 = inlined_call_operand.vmem [shape: f32[16,128], index: 8, kind: output, shape index: {2}]
  %s9 = inlined_call_operand.vmem [shape: bf16[16,512], index: 9, kind: output, shape index: {3}]
  %10 = xla_tuple %s6, %s7, %s8, %s9
  %s11 = sld [smem:[#allocation0]]
  $region62: #{conv_vae_forward.10} parent=0
    _
  %s13 = ssub.s32 1, %s11
  %s14 = scalar_select 0, %s13, %s11
  // Predicated region
  $region2: #{conv_vae_forward.10} parent=0 // pred_check
    _
  $region3: #{conv_vae_forward.10} parent=0 // pred_check_branch
    %16 = sbr.rel (0) target = $region5
  $region4: #{conv_vae_forward.10} parent=0 // pred_region
    _
  $region5: #{conv_vae_forward.10} parent=0 // pred_fallthru
    _
  // Predicated region
  $region6: #{conv_vae_forward.10} parent=0 // pred_check
    _
  $region7: #{conv_vae_forward.10} parent=0 // pred_check_branch
    %18 = sbr.rel (0) target = $region9
  $region8: #{conv_vae_forward.10} parent=0 // pred_region
    _
  $region9: #{conv_vae_forward.10} parent=0 // pred_fallthru
    _
  // Predicated region
  $region10: #{conv_vae_forward.10} parent=0 // pred_check
    _
  $region11: #{conv_vae_forward.10} parent=0 // pred_check_branch
    %20 = sbr.rel (0) target = $region13
  $region12: #{conv_vae_forward.10} parent=0 // pred_region
    _
  $region13: #{conv_vae_forward.10} parent=0 // pred_fallthru
    _
  // Predicated region
  $region14: #{conv_vae_forward.10} parent=0 // pred_check
    _
  $region15: #{conv_vae_forward.10} parent=0 // pred_check_branch
    %22 = sbr.rel (0) target = $region17
  $region16: #{conv_vae_forward.10} parent=0 // pred_region
    _
  $region17: #{conv_vae_forward.10} parent=0 // pred_fallthru
    _
  // Predicated region
  $region18: #{conv_vae_forward.10} parent=0 // pred_check
    _
  $region19: #{conv_vae_forward.10} parent=0 // pred_check_branch
    %24 = sbr.rel (0) target = $region21
  $region20: #{conv_vae_forward.10} parent=0 // pred_region
    _
  $region21: #{conv_vae_forward.10} parent=0 // pred_fallthru
    _
  // Predicated region
  $region22: #{conv_vae_forward.10} parent=0 // pred_check
    _
  $region23: #{conv_vae_forward.10} parent=0 // pred_check_branch
    %26 = sbr.rel (0) target = $region25
  $region24: #{conv_vae_forward.10} parent=0 // pred_region
    _
  $region25: #{conv_vae_forward.10} parent=0 // pred_fallthru
    _
  %p27 = scmp.eq.s32.totalorder 0, 0
  // Predicated region
  $region26: #{conv_vae_forward.10} parent=0 // pred_check
    %p28 = pneg %p27
  $region27: #{conv_vae_forward.10} parent=0 // pred_check_branch
    %30 = sbr.rel (%p28) target = $region29
  $region28: #{conv_vae_forward.10} parent=0 // pred_region
    %v31 = vld [vmem:[%s0] sm:$0xff]
    %v32 = vld [vmem:[%s0 + $0x8] sm:$0xff]
    %v33 = vld [vmem:[%s0 + $0x10] sm:$0xff]
    %v34 = vld [vmem:[%s0 + $0x18] sm:$0xff]
    %v35 = vld [vmem:[%s1] sm:$0xff]
    %v36 = vld [vmem:[%s1 + $0x8] sm:$0xff]
    %v37 = vld [vmem:[%s1 + $0x10] sm:$0xff]
    %v38 = vld [vmem:[%s1 + $0x18] sm:$0xff]
    %v39 = vld [vmem:[%s1 + $0x20] sm:$0xff]
    %v40 = vld [vmem:[%s1 + $0x28] sm:$0xff]
    %v41 = vld [vmem:[%s1 + $0x30] sm:$0xff]
    %v42 = vld [vmem:[%s1 + $0x38] sm:$0xff]
    %v43 = vld [vmem:[%s1 + $0x40] sm:$0xff]
    %v44 = vld [vmem:[%s1 + $0x48] sm:$0xff]
    %v45 = vld [vmem:[%s1 + $0x50] sm:$0xff]
    %v46 = vld [vmem:[%s1 + $0x58] sm:$0xff]
    %v47 = vld [vmem:[%s1 + $0x60] sm:$0xff]
    %v48 = vld [vmem:[%s1 + $0x68] sm:$0xff]
    %v49 = vld [vmem:[%s1 + $0x70] sm:$0xff]
    %v50 = vld [vmem:[%s1 + $0x78] sm:$0xff]
    %v51 = vld [vmem:[%s1 + $0x80] sm:$0xff]
    %v52 = vld [vmem:[%s1 + $0x88] sm:$0xff]
    %v53 = vld [vmem:[%s1 + $0x90] sm:$0xff]
    %v54 = vld [vmem:[%s1 + $0x98] sm:$0xff]
    %v55 = vld [vmem:[%s1 + $0xa0] sm:$0xff]
    %v56 = vld [vmem:[%s1 + $0xa8] sm:$0xff]
    %v57 = vld [vmem:[%s1 + $0xb0] sm:$0xff]
    %v58 = vld [vmem:[%s1 + $0xb8] sm:$0xff]
    %v59 = vld [vmem:[%s1 + $0xc0] sm:$0xff]
    %v60 = vld [vmem:[%s1 + $0xc8] sm:$0xff]
    %v61 = vld [vmem:[%s1 + $0xd0] sm:$0xff]
    %v62 = vld [vmem:[%s1 + $0xd8] sm:$0xff]
    %v63 = vld [vmem:[%s1 + $0xe0] sm:$0xff]
    %v64 = vld [vmem:[%s1 + $0xe8] sm:$0xff]
    %v65 = vld [vmem:[%s1 + $0xf0] sm:$0xff]
    %v66 = vld [vmem:[%s1 + $0xf8] sm:$0xff]
    %v67 = vld [vmem:[%s1 + $0x100] sm:$0xff]
    %v68 = vld [vmem:[%s1 + $0x108] sm:$0xff]
    %v69 = vld [vmem:[%s1 + $0x110] sm:$0xff]
    %v70 = vld [vmem:[%s1 + $0x118] sm:$0xff]
    %v71 = vld [vmem:[%s1 + $0x120] sm:$0xff]
    %v72 = vld [vmem:[%s1 + $0x128] sm:$0xff]
    %v73 = vld [vmem:[%s1 + $0x130] sm:$0xff]
    %v74 = vld [vmem:[%s1 + $0x138] sm:$0xff]
    %v75 = vld [vmem:[%s1 + $0x140] sm:$0xff]
    %v76 = vld [vmem:[%s1 + $0x148] sm:$0xff]
    %v77 = vld [vmem:[%s1 + $0x150] sm:$0xff]
    %v78 = vld [vmem:[%s1 + $0x158] sm:$0xff]
    %v79 = vld [vmem:[%s1 + $0x160] sm:$0xff]
    %v80 = vld [vmem:[%s1 + $0x168] sm:$0xff]
    %v81 = vld [vmem:[%s1 + $0x170] sm:$0xff]
    %v82 = vld [vmem:[%s1 + $0x178] sm:$0xff]
    %v83 = vld [vmem:[%s1 + $0x180] sm:$0xff]
    %v84 = vld [vmem:[%s1 + $0x188] sm:$0xff]
    %v85 = vld [vmem:[%s1 + $0x190] sm:$0xff]
    %v86 = vld [vmem:[%s1 + $0x198] sm:$0xff]
    %v87 = vld [vmem:[%s1 + $0x1a0] sm:$0xff]
    %v88 = vld [vmem:[%s1 + $0x1a8] sm:$0xff]
    %v89 = vld [vmem:[%s1 + $0x1b0] sm:$0xff]
    %v90 = vld [vmem:[%s1 + $0x1b8] sm:$0xff]
    %v91 = vld [vmem:[%s1 + $0x1c0] sm:$0xff]
    %v92 = vld [vmem:[%s1 + $0x1c8] sm:$0xff]
    %v93 = vld [vmem:[%s1 + $0x1d0] sm:$0xff]
    %v94 = vld [vmem:[%s1 + $0x1d8] sm:$0xff]
    %v95 = vld [vmem:[%s1 + $0x1e0] sm:$0xff]
    %v96 = vld [vmem:[%s1 + $0x1e8] sm:$0xff]
    %v97 = vld [vmem:[%s1 + $0x1f0] sm:$0xff]
    %v98 = vld [vmem:[%s1 + $0x1f8] sm:$0xff]
    %v99 = vld [vmem:[%s2] sm:$0x3]
    %v101 = vperm.slane %v99, 0
    %v102 = vperm.slane %v99, 1
    %v109 = vunpack.c.l.b16 %v31
    %v110 = vunpack.c.h.b16 %v31
    %v111 = vunpack.c.l.b16 %v32
    %v112 = vunpack.c.h.b16 %v32
    %v113 = vunpack.c.l.b16 %v33
    %v114 = vunpack.c.h.b16 %v33
    %v115 = vunpack.c.l.b16 %v34
    %v116 = vunpack.c.h.b16 %v34
    %v117 = vpack.c.b16 %v113, %v109
    %v118 = vpack.c.b16 %v114, %v110
    %v119 = vpack.c.b16 %v115, %v111
    %v120 = vpack.c.b16 %v116, %v112
    %v189 = vunpack.c.l.b16 %v35
    %v190 = vunpack.c.h.b16 %v35
    %v191 = vunpack.c.l.b16 %v36
    %v192 = vunpack.c.h.b16 %v36
    %v193 = vunpack.c.l.b16 %v37
    %v194 = vunpack.c.h.b16 %v37
    %v195 = vunpack.c.l.b16 %v38
    %v196 = vunpack.c.h.b16 %v38
    %v197 = vunpack.c.l.b16 %v39
    %v198 = vunpack.c.h.b16 %v39
    %v199 = vunpack.c.l.b16 %v40
    %v200 = vunpack.c.h.b16 %v40
    %v201 = vunpack.c.l.b16 %v41
    %v202 = vunpack.c.h.b16 %v41
    %v203 = vunpack.c.l.b16 %v42
    %v204 = vunpack.c.h.b16 %v42
    %v205 = vunpack.c.l.b16 %v43
    %v206 = vunpack.c.h.b16 %v43
    %v207 = vunpack.c.l.b16 %v44
    %v208 = vunpack.c.h.b16 %v44
    %v209 = vunpack.c.l.b16 %v45
    %v210 = vunpack.c.h.b16 %v45
    %v211 = vunpack.c.l.b16 %v46
    %v212 = vunpack.c.h.b16 %v46
    %v213 = vunpack.c.l.b16 %v47
    %v214 = vunpack.c.h.b16 %v47
    %v215 = vunpack.c.l.b16 %v48
    %v216 = vunpack.c.h.b16 %v48
    %v217 = vunpack.c.l.b16 %v49
    %v218 = vunpack.c.h.b16 %v49
    %v219 = vunpack.c.l.b16 %v50
    %v220 = vunpack.c.h.b16 %v50
    %v221 = vunpack.c.l.b16 %v51
    %v222 = vunpack.c.h.b16 %v51
    %v223 = vunpack.c.l.b16 %v52
    %v224 = vunpack.c.h.b16 %v52
    %v225 = vunpack.c.l.b16 %v53
    %v226 = vunpack.c.h.b16 %v53
    %v227 = vunpack.c.l.b16 %v54
    %v228 = vunpack.c.h.b16 %v54
    %v229 = vunpack.c.l.b16 %v55
    %v230 = vunpack.c.h.b16 %v55
    %v231 = vunpack.c.l.b16 %v56
    %v232 = vunpack.c.h.b16 %v56
    %v233 = vunpack.c.l.b16 %v57
    %v234 = vunpack.c.h.b16 %v57
    %v235 = vunpack.c.l.b16 %v58
    %v236 = vunpack.c.h.b16 %v58
    %v237 = vunpack.c.l.b16 %v59
    %v238 = vunpack.c.h.b16 %v59
    %v239 = vunpack.c.l.b16 %v60
    %v240 = vunpack.c.h.b16 %v60
    %v241 = vunpack.c.l.b16 %v61
    %v242 = vunpack.c.h.b16 %v61
    %v243 = vunpack.c.l.b16 %v62
    %v244 = vunpack.c.h.b16 %v62
    %v245 = vunpack.c.l.b16 %v63
    %v246 = vunpack.c.h.b16 %v63
    %v247 = vunpack.c.l.b16 %v64
    %v248 = vunpack.c.h.b16 %v64
    %v249 = vunpack.c.l.b16 %v65
    %v250 = vunpack.c.h.b16 %v65
    %v251 = vunpack.c.l.b16 %v66
    %v252 = vunpack.c.h.b16 %v66
    %v253 = vunpack.c.l.b16 %v67
    %v254 = vunpack.c.h.b16 %v67
    %v255 = vunpack.c.l.b16 %v68
    %v256 = vunpack.c.h.b16 %v68
    %v257 = vunpack.c.l.b16 %v69
    %v258 = vunpack.c.h.b16 %v69
    %v259 = vunpack.c.l.b16 %v70
    %v260 = vunpack.c.h.b16 %v70
    %v261 = vunpack.c.l.b16 %v71
    %v262 = vunpack.c.h.b16 %v71
    %v263 = vunpack.c.l.b16 %v72
    %v264 = vunpack.c.h.b16 %v72
    %v265 = vunpack.c.l.b16 %v73
    %v266 = vunpack.c.h.b16 %v73
    %v267 = vunpack.c.l.b16 %v74
    %v268 = vunpack.c.h.b16 %v74
    %v269 = vunpack.c.l.b16 %v75
    %v270 = vunpack.c.h.b16 %v75
    %v271 = vunpack.c.l.b16 %v76
    %v272 = vunpack.c.h.b16 %v76
    %v273 = vunpack.c.l.b16 %v77
    %v274 = vunpack.c.h.b16 %v77
    %v275 = vunpack.c.l.b16 %v78
    %v276 = vunpack.c.h.b16 %v78
    %v277 = vunpack.c.l.b16 %v79
    %v278 = vunpack.c.h.b16 %v79
    %v279 = vunpack.c.l.b16 %v80
    %v280 = vunpack.c.h.b16 %v80
    %v281 = vunpack.c.l.b16 %v81
    %v282 = vunpack.c.h.b16 %v81
    %v283 = vunpack.c.l.b16 %v82
    %v284 = vunpack.c.h.b16 %v82
    %v285 = vunpack.c.l.b16 %v83
    %v286 = vunpack.c.h.b16 %v83
    %v287 = vunpack.c.l.b16 %v84
    %v288 = vunpack.c.h.b16 %v84
    %v289 = vunpack.c.l.b16 %v85
    %v290 = vunpack.c.h.b16 %v85
    %v291 = vunpack.c.l.b16 %v86
    %v292 = vunpack.c.h.b16 %v86
    %v293 = vunpack.c.l.b16 %v87
    %v294 = vunpack.c.h.b16 %v87
    %v295 = vunpack.c.l.b16 %v88
    %v296 = vunpack.c.h.b16 %v88
    %v297 = vunpack.c.l.b16 %v89
    %v298 = vunpack.c.h.b16 %v89
    %v299 = vunpack.c.l.b16 %v90
    %v300 = vunpack.c.h.b16 %v90
    %v301 = vunpack.c.l.b16 %v91
    %v302 = vunpack.c.h.b16 %v91
    %v303 = vunpack.c.l.b16 %v92
    %v304 = vunpack.c.h.b16 %v92
    %v305 = vunpack.c.l.b16 %v93
    %v306 = vunpack.c.h.b16 %v93
    %v307 = vunpack.c.l.b16 %v94
    %v308 = vunpack.c.h.b16 %v94
    %v309 = vunpack.c.l.b16 %v95
    %v310 = vunpack.c.h.b16 %v95
    %v311 = vunpack.c.l.b16 %v96
    %v312 = vunpack.c.h.b16 %v96
    %v313 = vunpack.c.l.b16 %v97
    %v314 = vunpack.c.h.b16 %v97
    %v315 = vunpack.c.l.b16 %v98
    %v316 = vunpack.c.h.b16 %v98
    %v317 = vpack.c.b16 %v191, %v189
    %v318 = vpack.c.b16 %v192, %v190
    %v319 = vpack.c.b16 %v195, %v193
    %v320 = vpack.c.b16 %v196, %v194
    %v321 = vpack.c.b16 %v199, %v197
    %v322 = vpack.c.b16 %v200, %v198
    %v323 = vpack.c.b16 %v203, %v201
    %v324 = vpack.c.b16 %v204, %v202
    %v325 = vpack.c.b16 %v207, %v205
    %v326 = vpack.c.b16 %v208, %v206
    %v327 = vpack.c.b16 %v211, %v209
    %v328 = vpack.c.b16 %v212, %v210
    %v329 = vpack.c.b16 %v215, %v213
    %v330 = vpack.c.b16 %v216, %v214
    %v331 = vpack.c.b16 %v219, %v217
    %v332 = vpack.c.b16 %v220, %v218
    %v333 = vpack.c.b16 %v223, %v221
    %v334 = vpack.c.b16 %v224, %v222
    %v335 = vpack.c.b16 %v227, %v225
    %v336 = vpack.c.b16 %v228, %v226
    %v337 = vpack.c.b16 %v231, %v229
    %v338 = vpack.c.b16 %v232, %v230
    %v339 = vpack.c.b16 %v235, %v233
    %v340 = vpack.c.b16 %v236, %v234
    %v341 = vpack.c.b16 %v239, %v237
    %v342 = vpack.c.b16 %v240, %v238
    %v343 = vpack.c.b16 %v243, %v241
    %v344 = vpack.c.b16 %v244, %v242
    %v345 = vpack.c.b16 %v247, %v245
    %v346 = vpack.c.b16 %v248, %v246
    %v347 = vpack.c.b16 %v251, %v249
    %v348 = vpack.c.b16 %v252, %v250
    %v349 = vpack.c.b16 %v255, %v253
    %v350 = vpack.c.b16 %v256, %v254
    %v351 = vpack.c.b16 %v259, %v257
    %v352 = vpack.c.b16 %v260, %v258
    %v353 = vpack.c.b16 %v263, %v261
    %v354 = vpack.c.b16 %v264, %v262
    %v355 = vpack.c.b16 %v267, %v265
    %v356 = vpack.c.b16 %v268, %v266
    %v357 = vpack.c.b16 %v271, %v269
    %v358 = vpack.c.b16 %v272, %v270
    %v359 = vpack.c.b16 %v275, %v273
    %v360 = vpack.c.b16 %v276, %v274
    %v361 = vpack.c.b16 %v279, %v277
    %v362 = vpack.c.b16 %v280, %v278
    %v363 = vpack.c.b16 %v283, %v281
    %v364 = vpack.c.b16 %v284, %v282
    %v365 = vpack.c.b16 %v287, %v285
    %v366 = vpack.c.b16 %v288, %v286
    %v367 = vpack.c.b16 %v291, %v289
    %v368 = vpack.c.b16 %v292, %v290
    %v369 = vpack.c.b16 %v295, %v293
    %v370 = vpack.c.b16 %v296, %v294
    %v371 = vpack.c.b16 %v299, %v297
    %v372 = vpack.c.b16 %v300, %v298
    %v373 = vpack.c.b16 %v303, %v301
    %v374 = vpack.c.b16 %v304, %v302
    %v375 = vpack.c.b16 %v307, %v305
    %v376 = vpack.c.b16 %v308, %v306
    %v377 = vpack.c.b16 %v311, %v309
    %v378 = vpack.c.b16 %v312, %v310
    %v379 = vpack.c.b16 %v315, %v313
    %v380 = vpack.c.b16 %v316, %v314
    %445 = vmatpush.bf16.msra.mxu0 %v331
    %446 = vmatpush.bf16.msra.mxu0 %v329
    %447 = vmatpush.bf16.msra.mxu0 %v327
    %448 = vmatpush.bf16.msra.mxu0 %v325
    %449 = vmatpush.bf16.msra.mxu0 %v323
    %450 = vmatpush.bf16.msra.mxu0 %v321
    %451 = vmatpush.bf16.msra.mxu0 %v319
    %452 = vmatpush.bf16.msra.mxu0 %v317
    %453 = vmatmul.bf16.gmra.mxu0 %v117
    %v454 = vpop.f32.mrf.mxu0
    %v455 = vadd.f32 %v101, %v454
    %v456 = vpop.f32.mrf.mxu0
    %v457 = vadd.f32 %v101, %v456
    %458 = vdwg.mxu0
    %459 = vmatpush.bf16.msra.mxu0 %v347
    %460 = vmatpush.bf16.msra.mxu0 %v345
    %461 = vmatpush.bf16.msra.mxu0 %v343
    %462 = vmatpush.bf16.msra.mxu0 %v341
    %463 = vmatpush.bf16.msra.mxu0 %v339
    %464 = vmatpush.bf16.msra.mxu0 %v337
    %465 = vmatpush.bf16.msra.mxu0 %v335
    %466 = vmatpush.bf16.msra.mxu0 %v333
    %467 = vmatmul.bf16.gmra.mxu0 %v118
    %v468 = vpop.f32.mrf.mxu0
    %v469 = vadd.f32 %v455, %v468
    %v470 = vpop.f32.mrf.mxu0
    %v471 = vadd.f32 %v457, %v470
    %472 = vdwg.mxu0
    %473 = vmatpush.bf16.msra.mxu0 %v363
    %474 = vmatpush.bf16.msra.mxu0 %v361
    %475 = vmatpush.bf16.msra.mxu0 %v359
    %476 = vmatpush.bf16.msra.mxu0 %v357
    %477 = vmatpush.bf16.msra.mxu0 %v355
    %478 = vmatpush.bf16.msra.mxu0 %v353
    %479 = vmatpush.bf16.msra.mxu0 %v351
    %480 = vmatpush.bf16.msra.mxu0 %v349
    %481 = vmatmul.bf16.gmra.mxu0 %v119
    %v482 = vpop.f32.mrf.mxu0
    %v483 = vadd.f32 %v469, %v482
    %v484 = vpop.f32.mrf.mxu0
    %v485 = vadd.f32 %v471, %v484
    %486 = vdwg.mxu0
    %487 = vmatpush.bf16.msra.mxu0 %v379
    %488 = vmatpush.bf16.msra.mxu0 %v377
    %489 = vmatpush.bf16.msra.mxu0 %v375
    %490 = vmatpush.bf16.msra.mxu0 %v373
    %491 = vmatpush.bf16.msra.mxu0 %v371
    %492 = vmatpush.bf16.msra.mxu0 %v369
    %493 = vmatpush.bf16.msra.mxu0 %v367
    %494 = vmatpush.bf16.msra.mxu0 %v365
    %495 = vmatmul.bf16.gmra.mxu0 %v120
    %v496 = vpop.f32.mrf.mxu0
    %v497 = vadd.f32 %v483, %v496
    %v498 = vpop.f32.mrf.mxu0
    %v499 = vadd.f32 %v485, %v498
    %500 = vdwg.mxu0
    %501 = vmatpush.bf16.msra.mxu0 %v332
    %502 = vmatpush.bf16.msra.mxu0 %v330
    %503 = vmatpush.bf16.msra.mxu0 %v328
    %504 = vmatpush.bf16.msra.mxu0 %v326
    %505 = vmatpush.bf16.msra.mxu0 %v324
    %506 = vmatpush.bf16.msra.mxu0 %v322
    %507 = vmatpush.bf16.msra.mxu0 %v320
    %508 = vmatpush.bf16.msra.mxu0 %v318
    %509 = vmatmul.bf16.gmra.mxu0 %v117
    %v510 = vpop.f32.mrf.mxu0
    %v511 = vadd.f32 %v102, %v510
    %v512 = vpop.f32.mrf.mxu0
    %v513 = vadd.f32 %v102, %v512
    %514 = vdwg.mxu0
    %515 = vmatpush.bf16.msra.mxu0 %v348
    %516 = vmatpush.bf16.msra.mxu0 %v346
    %517 = vmatpush.bf16.msra.mxu0 %v344
    %518 = vmatpush.bf16.msra.mxu0 %v342
    %519 = vmatpush.bf16.msra.mxu0 %v340
    %520 = vmatpush.bf16.msra.mxu0 %v338
    %521 = vmatpush.bf16.msra.mxu0 %v336
    %522 = vmatpush.bf16.msra.mxu0 %v334
    %523 = vmatmul.bf16.gmra.mxu0 %v118
    %v524 = vpop.f32.mrf.mxu0
    %v525 = vadd.f32 %v511, %v524
    %v526 = vpop.f32.mrf.mxu0
    %v527 = vadd.f32 %v513, %v526
    %528 = vdwg.mxu0
    %529 = vmatpush.bf16.msra.mxu0 %v364
    %530 = vmatpush.bf16.msra.mxu0 %v362
    %531 = vmatpush.bf16.msra.mxu0 %v360
    %532 = vmatpush.bf16.msra.mxu0 %v358
    %533 = vmatpush.bf16.msra.mxu0 %v356
    %534 = vmatpush.bf16.msra.mxu0 %v354
    %535 = vmatpush.bf16.msra.mxu0 %v352
    %536 = vmatpush.bf16.msra.mxu0 %v350
    %537 = vmatmul.bf16.gmra.mxu0 %v119
    %v538 = vpop.f32.mrf.mxu0
    %v539 = vadd.f32 %v525, %v538
    %v540 = vpop.f32.mrf.mxu0
    %v541 = vadd.f32 %v527, %v540
    %542 = vdwg.mxu0
    %543 = vmatpush.bf16.msra.mxu0 %v380
    %544 = vmatpush.bf16.msra.mxu0 %v378
    %545 = vmatpush.bf16.msra.mxu0 %v376
    %546 = vmatpush.bf16.msra.mxu0 %v374
    %547 = vmatpush.bf16.msra.mxu0 %v372
    %548 = vmatpush.bf16.msra.mxu0 %v370
    %549 = vmatpush.bf16.msra.mxu0 %v368
    %550 = vmatpush.bf16.msra.mxu0 %v366
    %551 = vmatmul.bf16.gmra.mxu0 %v120
    %v552 = vpop.f32.mrf.mxu0
    %v553 = vadd.f32 %v539, %v552
    %v554 = vpop.f32.mrf.mxu0
    %v555 = vadd.f32 %v541, %v554
    %556 = vdwg.mxu0
    %v557 = vld [vmem:[%s3] sm:$0xff]
    %v558 = vld [vmem:[%s3 + $0x8] sm:$0xff]
    %v559 = vmul.f32 %v553, 0.5
    %v560 = vmul.f32 %v555, 0.5
    %v561 = vmul.f32 %v559, 1.442695
    %v562 = vpow.pop %v561
    %v563 = vmul.f32 %v560, 1.442695
    %v564 = vpow.pop %v563
    %v565 = vmul.f32 %v557, %v562
    %v566 = vmul.f32 %v558, %v564
    %v567 = vadd.f32 %v497, %v565
    %v568 = vadd.f32 %v499, %v566
    %569 = vst [vmem:[%s6] sm:$0xff] %v497
    %570 = vst [vmem:[%s6 + $0x8] sm:$0xff] %v499
    %571 = vst [vmem:[%s7] sm:$0xff] %v553
    %572 = vst [vmem:[%s7 + $0x8] sm:$0xff] %v555
    %573 = vst [vmem:[%s8] sm:$0xff] %v567
    %574 = vst [vmem:[%s8 + $0x8] sm:$0xff] %v568
    %v575 = vpack.c.bf16 %v567, %v567
    %v576 = vpack.c.bf16 %v568, %v568
    %577 = vst [vmem:[#allocation2] sm:$0xf] %v575
    %578 = vst [vmem:[#allocation2 + $0x4] sm:$0xf] %v576
  $region29: #{conv_vae_forward.10} parent=0 // pred_fallthru
    _
  %v579 = vld [vmem:[#allocation2] sm:$0xf]
  %v580 = vld [vmem:[#allocation2 + $0x4] sm:$0xf]
  %v581 = vld [vmem:[%s4] sm:$0xff]
  %v582 = vld [vmem:[%s4 + $0x8] sm:$0xff]
  %v583 = vld [vmem:[%s4 + $0x10] sm:$0xff]
  %v584 = vld [vmem:[%s4 + $0x18] sm:$0xff]
  %v585 = vld [vmem:[%s4 + $0x20] sm:$0xff]
  %v586 = vld [vmem:[%s4 + $0x28] sm:$0xff]
  %v587 = vld [vmem:[%s4 + $0x30] sm:$0xff]
  %v588 = vld [vmem:[%s4 + $0x38] sm:$0xff]
  %v589 = vld [vmem:[%s4 + $0x40] sm:$0xff]
  %v590 = vld [vmem:[%s4 + $0x48] sm:$0xff]
  %v591 = vld [vmem:[%s4 + $0x50] sm:$0xff]
  %v592 = vld [vmem:[%s4 + $0x58] sm:$0xff]
  %v593 = vld [vmem:[%s4 + $0x60] sm:$0xff]
  %v594 = vld [vmem:[%s4 + $0x68] sm:$0xff]
  %v595 = vld [vmem:[%s4 + $0x70] sm:$0xff]
  %v596 = vld [vmem:[%s4 + $0x78] sm:$0xff]
  %v597 = vld [vmem:[%s4 + $0x80] sm:$0xff]
  %v598 = vld [vmem:[%s4 + $0x88] sm:$0xff]
  %v599 = vld [vmem:[%s4 + $0x90] sm:$0xff]
  %v600 = vld [vmem:[%s4 + $0x98] sm:$0xff]
  %v601 = vld [vmem:[%s4 + $0xa0] sm:$0xff]
  %v602 = vld [vmem:[%s4 + $0xa8] sm:$0xff]
  %v603 = vld [vmem:[%s4 + $0xb0] sm:$0xff]
  %v604 = vld [vmem:[%s4 + $0xb8] sm:$0xff]
  %v605 = vld [vmem:[%s4 + $0xc0] sm:$0xff]
  %v606 = vld [vmem:[%s4 + $0xc8] sm:$0xff]
  %v607 = vld [vmem:[%s4 + $0xd0] sm:$0xff]
  %v608 = vld [vmem:[%s4 + $0xd8] sm:$0xff]
  %v609 = vld [vmem:[%s4 + $0xe0] sm:$0xff]
  %v610 = vld [vmem:[%s4 + $0xe8] sm:$0xff]
  %v611 = vld [vmem:[%s4 + $0xf0] sm:$0xff]
  %v612 = vld [vmem:[%s4 + $0xf8] sm:$0xff]
  %v613 = vld [vmem:[%s5] sm:$0xf]
  %v615 = vperm.slane %v613, 0
  %v616 = vperm.slane %v613, 1
  %v617 = vperm.slane %v613, 2
  %v618 = vperm.slane %v613, 3
  %v625 = vunpack.c.l.b16 %v579
  %v626 = vunpack.c.l.b16 %v580
  %v627 = vpack.c.b16 %v626, %v625
  %v661 = vunpack.c.l.b16 %v581
  %v662 = vunpack.c.h.b16 %v581
  %v663 = vunpack.c.l.b16 %v582
  %v664 = vunpack.c.h.b16 %v582
  %v665 = vunpack.c.l.b16 %v583
  %v666 = vunpack.c.h.b16 %v583
  %v667 = vunpack.c.l.b16 %v584
  %v668 = vunpack.c.h.b16 %v584
  %v669 = vunpack.c.l.b16 %v585
  %v670 = vunpack.c.h.b16 %v585
  %v671 = vunpack.c.l.b16 %v586
  %v672 = vunpack.c.h.b16 %v586
  %v673 = vunpack.c.l.b16 %v587
  %v674 = vunpack.c.h.b16 %v587
  %v675 = vunpack.c.l.b16 %v588
  %v676 = vunpack.c.h.b16 %v588
  %v677 = vunpack.c.l.b16 %v589
  %v678 = vunpack.c.h.b16 %v589
  %v679 = vunpack.c.l.b16 %v590
  %v680 = vunpack.c.h.b16 %v590
  %v681 = vunpack.c.l.b16 %v591
  %v682 = vunpack.c.h.b16 %v591
  %v683 = vunpack.c.l.b16 %v592
  %v684 = vunpack.c.h.b16 %v592
  %v685 = vunpack.c.l.b16 %v593
  %v686 = vunpack.c.h.b16 %v593
  %v687 = vunpack.c.l.b16 %v594
  %v688 = vunpack.c.h.b16 %v594
  %v689 = vunpack.c.l.b16 %v595
  %v690 = vunpack.c.h.b16 %v595
  %v691 = vunpack.c.l.b16 %v596
  %v692 = vunpack.c.h.b16 %v596
  %v693 = vunpack.c.l.b16 %v597
  %v694 = vunpack.c.h.b16 %v597
  %v695 = vunpack.c.l.b16 %v598
  %v696 = vunpack.c.h.b16 %v598
  %v697 = vunpack.c.l.b16 %v599
  %v698 = vunpack.c.h.b16 %v599
  %v699 = vunpack.c.l.b16 %v600
  %v700 = vunpack.c.h.b16 %v600
  %v701 = vunpack.c.l.b16 %v601
  %v702 = vunpack.c.h.b16 %v601
  %v703 = vunpack.c.l.b16 %v602
  %v704 = vunpack.c.h.b16 %v602
  %v705 = vunpack.c.l.b16 %v603
  %v706 = vunpack.c.h.b16 %v603
  %v707 = vunpack.c.l.b16 %v604
  %v708 = vunpack.c.h.b16 %v604
  %v709 = vunpack.c.l.b16 %v605
  %v710 = vunpack.c.h.b16 %v605
  %v711 = vunpack.c.l.b16 %v606
  %v712 = vunpack.c.h.b16 %v606
  %v713 = vunpack.c.l.b16 %v607
  %v714 = vunpack.c.h.b16 %v607
  %v715 = vunpack.c.l.b16 %v608
  %v716 = vunpack.c.h.b16 %v608
  %v717 = vunpack.c.l.b16 %v609
  %v718 = vunpack.c.h.b16 %v609
  %v719 = vunpack.c.l.b16 %v610
  %v720 = vunpack.c.h.b16 %v610
  %v721 = vunpack.c.l.b16 %v611
  %v722 = vunpack.c.h.b16 %v611
  %v723 = vunpack.c.l.b16 %v612
  %v724 = vunpack.c.h.b16 %v612
  %v725 = vpack.c.b16 %v665, %v661
  %v726 = vpack.c.b16 %v666, %v662
  %v727 = vpack.c.b16 %v667, %v663
  %v728 = vpack.c.b16 %v668, %v664
  %v729 = vpack.c.b16 %v673, %v669
  %v730 = vpack.c.b16 %v674, %v670
  %v731 = vpack.c.b16 %v675, %v671
  %v732 = vpack.c.b16 %v676, %v672
  %v733 = vpack.c.b16 %v681, %v677
  %v734 = vpack.c.b16 %v682, %v678
  %v735 = vpack.c.b16 %v683, %v679
  %v736 = vpack.c.b16 %v684, %v680
  %v737 = vpack.c.b16 %v689, %v685
  %v738 = vpack.c.b16 %v690, %v686
  %v739 = vpack.c.b16 %v691, %v687
  %v740 = vpack.c.b16 %v692, %v688
  %v741 = vpack.c.b16 %v697, %v693
  %v742 = vpack.c.b16 %v698, %v694
  %v743 = vpack.c.b16 %v699, %v695
  %v744 = vpack.c.b16 %v700, %v696
  %v745 = vpack.c.b16 %v705, %v701
  %v746 = vpack.c.b16 %v706, %v702
  %v747 = vpack.c.b16 %v707, %v703
  %v748 = vpack.c.b16 %v708, %v704
  %v749 = vpack.c.b16 %v713, %v709
  %v750 = vpack.c.b16 %v714, %v710
  %v751 = vpack.c.b16 %v715, %v711
  %v752 = vpack.c.b16 %v716, %v712
  %v753 = vpack.c.b16 %v721, %v717
  %v754 = vpack.c.b16 %v722, %v718
  %v755 = vpack.c.b16 %v723, %v719
  %v756 = vpack.c.b16 %v724, %v720
  %789 = vmatpush.bf16.msra.mxu0 %v753
  %790 = vmatpush.bf16.msra.mxu0 %v749
  %791 = vmatpush.bf16.msra.mxu0 %v745
  %792 = vmatpush.bf16.msra.mxu0 %v741
  %793 = vmatpush.bf16.msra.mxu0 %v737
  %794 = vmatpush.bf16.msra.mxu0 %v733
  %795 = vmatpush.bf16.msra.mxu0 %v729
  %796 = vmatpush.bf16.msra.mxu0 %v725
  %797 = vmatmul.bf16.gmra.mxu0 %v627
  %v798 = vpop.f32.mrf.mxu0
  %v799 = vadd.f32 %v615, %v798
  %v800 = vpop.f32.mrf.mxu0
  %v801 = vadd.f32 %v615, %v800
  %802 = vdwg.mxu0
  %803 = vmatpush.bf16.msra.mxu0 %v754
  %804 = vmatpush.bf16.msra.mxu0 %v750
  %805 = vmatpush.bf16.msra.mxu0 %v746
  %806 = vmatpush.bf16.msra.mxu0 %v742
  %807 = vmatpush.bf16.msra.mxu0 %v738
  %808 = vmatpush.bf16.msra.mxu0 %v734
  %809 = vmatpush.bf16.msra.mxu0 %v730
  %810 = vmatpush.bf16.msra.mxu0 %v726
  %811 = vmatmul.bf16.gmra.mxu0 %v627
  %v812 = vpop.f32.mrf.mxu0
  %v813 = vadd.f32 %v616, %v812
  %v814 = vpop.f32.mrf.mxu0
  %v815 = vadd.f32 %v616, %v814
  %816 = vdwg.mxu0
  %817 = vmatpush.bf16.msra.mxu0 %v755
  %818 = vmatpush.bf16.msra.mxu0 %v751
  %819 = vmatpush.bf16.msra.mxu0 %v747
  %820 = vmatpush.bf16.msra.mxu0 %v743
  %821 = vmatpush.bf16.msra.mxu0 %v739
  %822 = vmatpush.bf16.msra.mxu0 %v735
  %823 = vmatpush.bf16.msra.mxu0 %v731
  %824 = vmatpush.bf16.msra.mxu0 %v727
  %825 = vmatmul.bf16.gmra.mxu0 %v627
  %v826 = vpop.f32.mrf.mxu0
  %v827 = vadd.f32 %v617, %v826
  %v828 = vpop.f32.mrf.mxu0
  %v829 = vadd.f32 %v617, %v828
  %830 = vdwg.mxu0
  %831 = vmatpush.bf16.msra.mxu0 %v756
  %832 = vmatpush.bf16.msra.mxu0 %v752
  %833 = vmatpush.bf16.msra.mxu0 %v748
  %834 = vmatpush.bf16.msra.mxu0 %v744
  %835 = vmatpush.bf16.msra.mxu0 %v740
  %836 = vmatpush.bf16.msra.mxu0 %v736
  %837 = vmatpush.bf16.msra.mxu0 %v732
  %838 = vmatpush.bf16.msra.mxu0 %v728
  %839 = vmatmul.bf16.gmra.mxu0 %v627
  %v840 = vpop.f32.mrf.mxu0
  %v841 = vadd.f32 %v618, %v840
  %v842 = vpop.f32.mrf.mxu0
  %v843 = vadd.f32 %v618, %v842
  %844 = vdwg.mxu0
  %v845 = vpack.c.bf16 %v813, %v799
  %v846 = vpack.c.bf16 %v841, %v827
  %v847 = vpack.c.bf16 %v815, %v801
  %v848 = vpack.c.bf16 %v843, %v829
  %849 = vst [vmem:[%s9] sm:$0xff] %v845
  %850 = vst [vmem:[%s9 + $0x8] sm:$0xff] %v846
  %851 = vst [vmem:[%s9 + $0x10] sm:$0xff] %v847
  %852 = vst [vmem:[%s9 + $0x18] sm:$0xff] %v848
  // Predicated region
  $region30: #{conv_vae_forward.10} parent=0 // pred_check
    _
  $region31: #{conv_vae_forward.10} parent=0 // pred_check_branch
    %854 = sbr.rel (0) target = $region33
  $region32: #{conv_vae_forward.10} parent=0 // pred_region
    _
  $region33: #{conv_vae_forward.10} parent=0 // pred_fallthru
    _
  // Predicated region
  $region34: #{conv_vae_forward.10} parent=0 // pred_check
    _
  $region35: #{conv_vae_forward.10} parent=0 // pred_check_branch
    %856 = sbr.rel (0) target = $region37
  $region36: #{conv_vae_forward.10} parent=0 // pred_region
    _
  $region37: #{conv_vae_forward.10} parent=0 // pred_fallthru
    _
  // Predicated region
  $region38: #{conv_vae_forward.10} parent=0 // pred_check
    _
  $region39: #{conv_vae_forward.10} parent=0 // pred_check_branch
    %858 = sbr.rel (0) target = $region41
  $region40: #{conv_vae_forward.10} parent=0 // pred_region
    _
  $region41: #{conv_vae_forward.10} parent=0 // pred_fallthru
    _
  // Predicated region
  $region42: #{conv_vae_forward.10} parent=0 // pred_check
    _
  $region43: #{conv_vae_forward.10} parent=0 // pred_check_branch
    %860 = sbr.rel (0) target = $region45
  $region44: #{conv_vae_forward.10} parent=0 // pred_region
    _
  $region45: #{conv_vae_forward.10} parent=0 // pred_fallthru
    _
  // Predicated region
  $region46: #{conv_vae_forward.10} parent=0 // pred_check
    _
  $region47: #{conv_vae_forward.10} parent=0 // pred_check_branch
    %862 = sbr.rel (0) target = $region49
  $region48: #{conv_vae_forward.10} parent=0 // pred_region
    _
  $region49: #{conv_vae_forward.10} parent=0 // pred_fallthru
    _
  // Predicated region
  $region50: #{conv_vae_forward.10} parent=0 // pred_check
    _
  $region51: #{conv_vae_forward.10} parent=0 // pred_check_branch
    %864 = sbr.rel (0) target = $region53
  $region52: #{conv_vae_forward.10} parent=0 // pred_region
    _
  $region53: #{conv_vae_forward.10} parent=0 // pred_fallthru
    _
  // Predicated region
  $region54: #{conv_vae_forward.10} parent=0 // pred_check
    _
  $region55: #{conv_vae_forward.10} parent=0 // pred_check_branch
    %866 = sbr.rel (0) target = $region57
  $region56: #{conv_vae_forward.10} parent=0 // pred_region
    _
  $region57: #{conv_vae_forward.10} parent=0 // pred_fallthru
    _
  // Predicated region
  $region58: #{conv_vae_forward.10} parent=0 // pred_check
    _
  $region59: #{conv_vae_forward.10} parent=0 // pred_check_branch
    %868 = sbr.rel (0) target = $region61
  $region60: #{conv_vae_forward.10} parent=0 // pred_region
    _
  $region61: #{conv_vae_forward.10} parent=0 // pred_fallthru
    _

// kernel: conv_vae_forward.11
$region0: #{conv_vae_forward.11}
  #allocation0 [shape = 'u32[]', space=smem, size = 0x4, offset = 0x4, fixed_abs, tag = 'smem constant byte address 0x4 - core index']
  #allocation1 [shape = 'u32[72,128]{1,0:T(1,128)}', space=vmem, size = 0x9000, scoped, tag = 'internal scratch']
  %s0 = inlined_call_operand.vmem [shape: bf16[16,1152], index: 0, kind: input, shape index: {}]
  %s1 = inlined_call_operand.vmem [shape: bf16[1152,256], index: 1, kind: input, shape index: {}]
  %s2 = inlined_call_operand.vmem [shape: f32[1,256], index: 2, kind: input, shape index: {}]
  %s3 = inlined_call_operand.vmem [shape: bf16[16,256], index: 3, kind: output, shape index: {}]
  %s4 = sld [smem:[#allocation0]]
  $region22: #{conv_vae_forward.11} parent=0
    _
  %s6 = ssub.s32 1, %s4
  %s7 = scalar_select 0, %s6, %s4
  // Predicated region
  $region2: #{conv_vae_forward.11} parent=0 // pred_check
    _
  $region3: #{conv_vae_forward.11} parent=0 // pred_check_branch
    %9 = sbr.rel (0) target = $region5
  $region4: #{conv_vae_forward.11} parent=0 // pred_region
    _
  $region5: #{conv_vae_forward.11} parent=0 // pred_fallthru
    _
  // Predicated region
  $region6: #{conv_vae_forward.11} parent=0 // pred_check
    _
  $region7: #{conv_vae_forward.11} parent=0 // pred_check_branch
    %11 = sbr.rel (0) target = $region9
  $region8: #{conv_vae_forward.11} parent=0 // pred_region
    _
  $region9: #{conv_vae_forward.11} parent=0 // pred_fallthru
    _
  // Predicated region
  $region10: #{conv_vae_forward.11} parent=0 // pred_check
    _
  $region11: #{conv_vae_forward.11} parent=0 // pred_check_branch
    %13 = sbr.rel (0) target = $region13
  $region12: #{conv_vae_forward.11} parent=0 // pred_region
    _
  $region13: #{conv_vae_forward.11} parent=0 // pred_fallthru
    _
  %v14 = vld [vmem:[%s0] sm:$0xff]
  %v15 = vld [vmem:[%s0 + $0x8] sm:$0xff]
  %v16 = vld [vmem:[%s0 + $0x10] sm:$0xff]
  %v17 = vld [vmem:[%s0 + $0x18] sm:$0xff]
  %v18 = vld [vmem:[%s0 + $0x20] sm:$0xf]
  %v19 = vld [vmem:[%s0 + $0x24] sm:$0xff]
  %v20 = vld [vmem:[%s0 + $0x2c] sm:$0xff]
  %v21 = vld [vmem:[%s0 + $0x34] sm:$0xff]
  %v22 = vld [vmem:[%s0 + $0x3c] sm:$0xff]
  %v23 = vld [vmem:[%s0 + $0x44] sm:$0xf]
  %v24 = vld [vmem:[%s1] sm:$0xff]
  %v25 = vld [vmem:[%s1 + $0x8] sm:$0xff]
  %v26 = vld [vmem:[%s1 + $0x10] sm:$0xff]
  %v27 = vld [vmem:[%s1 + $0x18] sm:$0xff]
  %v28 = vld [vmem:[%s1 + $0x20] sm:$0xff]
  %v29 = vld [vmem:[%s1 + $0x28] sm:$0xff]
  %v30 = vld [vmem:[%s1 + $0x30] sm:$0xff]
  %v31 = vld [vmem:[%s1 + $0x38] sm:$0xff]
  %v32 = vld [vmem:[%s1 + $0x40] sm:$0xff]
  %v33 = vld [vmem:[%s1 + $0x48] sm:$0xff]
  %v34 = vld [vmem:[%s1 + $0x50] sm:$0xff]
  %v35 = vld [vmem:[%s1 + $0x58] sm:$0xff]
  %v36 = vld [vmem:[%s1 + $0x60] sm:$0xff]
  %v37 = vld [vmem:[%s1 + $0x68] sm:$0xff]
  %v38 = vld [vmem:[%s1 + $0x70] sm:$0xff]
  %v39 = vld [vmem:[%s1 + $0x78] sm:$0xff]
  %v40 = vld [vmem:[%s1 + $0x80] sm:$0xff]
  %v41 = vld [vmem:[%s1 + $0x88] sm:$0xff]
  %v42 = vld [vmem:[%s1 + $0x90] sm:$0xff]
  %v43 = vld [vmem:[%s1 + $0x98] sm:$0xff]
  %v44 = vld [vmem:[%s1 + $0xa0] sm:$0xff]
  %v45 = vld [vmem:[%s1 + $0xa8] sm:$0xff]
  %v46 = vld [vmem:[%s1 + $0xb0] sm:$0xff]
  %v47 = vld [vmem:[%s1 + $0xb8] sm:$0xff]
  %v48 = vld [vmem:[%s1 + $0xc0] sm:$0xff]
  %v49 = vld [vmem:[%s1 + $0xc8] sm:$0xff]
  %v50 = vld [vmem:[%s1 + $0xd0] sm:$0xff]
  %v51 = vld [vmem:[%s1 + $0xd8] sm:$0xff]
  %v52 = vld [vmem:[%s1 + $0xe0] sm:$0xff]
  %v53 = vld [vmem:[%s1 + $0xe8] sm:$0xff]
  %v54 = vld [vmem:[%s1 + $0xf0] sm:$0xff]
  %v55 = vld [vmem:[%s1 + $0xf8] sm:$0xff]
  %v56 = vld [vmem:[%s1 + $0x100] sm:$0xff]
  %v57 = vld [vmem:[%s1 + $0x108] sm:$0xff]
  %v58 = vld [vmem:[%s1 + $0x110] sm:$0xff]
  %v59 = vld [vmem:[%s1 + $0x118] sm:$0xff]
  %v60 = vld [vmem:[%s1 + $0x120] sm:$0xff]
  %v61 = vld [vmem:[%s1 + $0x128] sm:$0xff]
  %v62 = vld [vmem:[%s1 + $0x130] sm:$0xff]
  %v63 = vld [vmem:[%s1 + $0x138] sm:$0xff]
  %v64 = vld [vmem:[%s1 + $0x140] sm:$0xff]
  %v65 = vld [vmem:[%s1 + $0x148] sm:$0xff]
  %v66 = vld [vmem:[%s1 + $0x150] sm:$0xff]
  %v67 = vld [vmem:[%s1 + $0x158] sm:$0xff]
  %v68 = vld [vmem:[%s1 + $0x160] sm:$0xff]
  %v69 = vld [vmem:[%s1 + $0x168] sm:$0xff]
  %v70 = vld [vmem:[%s1 + $0x170] sm:$0xff]
  %v71 = vld [vmem:[%s1 + $0x178] sm:$0xff]
  %v72 = vld [vmem:[%s1 + $0x180] sm:$0xff]
  %v73 = vld [vmem:[%s1 + $0x188] sm:$0xff]
  %v74 = vld [vmem:[%s1 + $0x190] sm:$0xff]
  %v75 = vld [vmem:[%s1 + $0x198] sm:$0xff]
  %v76 = vld [vmem:[%s1 + $0x1a0] sm:$0xff]
  %v77 = vld [vmem:[%s1 + $0x1a8] sm:$0xff]
  %v78 = vld [vmem:[%s1 + $0x1b0] sm:$0xff]
  %v79 = vld [vmem:[%s1 + $0x1b8] sm:$0xff]
  %v80 = vld [vmem:[%s1 + $0x1c0] sm:$0xff]
  %v81 = vld [vmem:[%s1 + $0x1c8] sm:$0xff]
  %v82 = vld [vmem:[%s1 + $0x1d0] sm:$0xff]
  %v83 = vld [vmem:[%s1 + $0x1d8] sm:$0xff]
  %v84 = vld [vmem:[%s1 + $0x1e0] sm:$0xff]
  %v85 = vld [vmem:[%s1 + $0x1e8] sm:$0xff]
  %v86 = vld [vmem:[%s1 + $0x1f0] sm:$0xff]
  %v87 = vld [vmem:[%s1 + $0x1f8] sm:$0xff]
  %v88 = vld [vmem:[%s1 + $0x200] sm:$0xff]
  %v89 = vld [vmem:[%s1 + $0x208] sm:$0xff]
  %v90 = vld [vmem:[%s1 + $0x210] sm:$0xff]
  %v91 = vld [vmem:[%s1 + $0x218] sm:$0xff]
  %v92 = vld [vmem:[%s1 + $0x220] sm:$0xff]
  %v93 = vld [vmem:[%s1 + $0x228] sm:$0xff]
  %v94 = vld [vmem:[%s1 + $0x230] sm:$0xff]
  %v95 = vld [vmem:[%s1 + $0x238] sm:$0xff]
  %v96 = vld [vmem:[%s1 + $0x240] sm:$0xff]
  %v97 = vld [vmem:[%s1 + $0x248] sm:$0xff]
  %v98 = vld [vmem:[%s1 + $0x250] sm:$0xff]
  %v99 = vld [vmem:[%s1 + $0x258] sm:$0xff]
  %v100 = vld [vmem:[%s1 + $0x260] sm:$0xff]
  %v101 = vld [vmem:[%s1 + $0x268] sm:$0xff]
  %v102 = vld [vmem:[%s1 + $0x270] sm:$0xff]
  %v103 = vld [vmem:[%s1 + $0x278] sm:$0xff]
  %v104 = vld [vmem:[%s1 + $0x280] sm:$0xff]
  %v105 = vld [vmem:[%s1 + $0x288] sm:$0xff]
  %v106 = vld [vmem:[%s1 + $0x290] sm:$0xff]
  %v107 = vld [vmem:[%s1 + $0x298] sm:$0xff]
  %v108 = vld [vmem:[%s1 + $0x2a0] sm:$0xff]
  %v109 = vld [vmem:[%s1 + $0x2a8] sm:$0xff]
  %v110 = vld [vmem:[%s1 + $0x2b0] sm:$0xff]
  %v111 = vld [vmem:[%s1 + $0x2b8] sm:$0xff]
  %v112 = vld [vmem:[%s1 + $0x2c0] sm:$0xff]
  %v113 = vld [vmem:[%s1 + $0x2c8] sm:$0xff]
  %v114 = vld [vmem:[%s1 + $0x2d0] sm:$0xff]
  %v115 = vld [vmem:[%s1 + $0x2d8] sm:$0xff]
  %v116 = vld [vmem:[%s1 + $0x2e0] sm:$0xff]
  %v117 = vld [vmem:[%s1 + $0x2e8] sm:$0xff]
  %v118 = vld [vmem:[%s1 + $0x2f0] sm:$0xff]
  %v119 = vld [vmem:[%s1 + $0x2f8] sm:$0xff]
  %v120 = vld [vmem:[%s1 + $0x300] sm:$0xff]
  %v121 = vld [vmem:[%s1 + $0x308] sm:$0xff]
  %v122 = vld [vmem:[%s1 + $0x310] sm:$0xff]
  %v123 = vld [vmem:[%s1 + $0x318] sm:$0xff]
  %v124 = vld [vmem:[%s1 + $0x320] sm:$0xff]
  %v125 = vld [vmem:[%s1 + $0x328] sm:$0xff]
  %v126 = vld [vmem:[%s1 + $0x330] sm:$0xff]
  %v127 = vld [vmem:[%s1 + $0x338] sm:$0xff]
  %v128 = vld [vmem:[%s1 + $0x340] sm:$0xff]
  %v129 = vld [vmem:[%s1 + $0x348] sm:$0xff]
  %v130 = vld [vmem:[%s1 + $0x350] sm:$0xff]
  %v131 = vld [vmem:[%s1 + $0x358] sm:$0xff]
  %v132 = vld [vmem:[%s1 + $0x360] sm:$0xff]
  %v133 = vld [vmem:[%s1 + $0x368] sm:$0xff]
  %v134 = vld [vmem:[%s1 + $0x370] sm:$0xff]
  %v135 = vld [vmem:[%s1 + $0x378] sm:$0xff]
  %v136 = vld [vmem:[%s1 + $0x380] sm:$0xff]
  %v137 = vld [vmem:[%s1 + $0x388] sm:$0xff]
  %v138 = vld [vmem:[%s1 + $0x390] sm:$0xff]
  %v139 = vld [vmem:[%s1 + $0x398] sm:$0xff]
  %v140 = vld [vmem:[%s1 + $0x3a0] sm:$0xff]
  %v141 = vld [vmem:[%s1 + $0x3a8] sm:$0xff]
  %v142 = vld [vmem:[%s1 + $0x3b0] sm:$0xff]
  %v143 = vld [vmem:[%s1 + $0x3b8] sm:$0xff]
  %v144 = vld [vmem:[%s1 + $0x3c0] sm:$0xff]
  %v145 = vld [vmem:[%s1 + $0x3c8] sm:$0xff]
  %v146 = vld [vmem:[%s1 + $0x3d0] sm:$0xff]
  %v147 = vld [vmem:[%s1 + $0x3d8] sm:$0xff]
  %v148 = vld [vmem:[%s1 + $0x3e0] sm:$0xff]
  %v149 = vld [vmem:[%s1 + $0x3e8] sm:$0xff]
  %v150 = vld [vmem:[%s1 + $0x3f0] sm:$0xff]
  %v151 = vld [vmem:[%s1 + $0x3f8] sm:$0xff]
  %v152 = vld [vmem:[%s1 + $0x400] sm:$0xff]
  %v153 = vld [vmem:[%s1 + $0x408] sm:$0xff]
  %v154 = vld [vmem:[%s1 + $0x410] sm:$0xff]
  %v155 = vld [vmem:[%s1 + $0x418] sm:$0xff]
  %v156 = vld [vmem:[%s1 + $0x420] sm:$0xff]
  %v157 = vld [vmem:[%s1 + $0x428] sm:$0xff]
  %v158 = vld [vmem:[%s1 + $0x430] sm:$0xff]
  %v159 = vld [vmem:[%s1 + $0x438] sm:$0xff]
  %v160 = vld [vmem:[%s1 + $0x440] sm:$0xff]
  %v161 = vld [vmem:[%s1 + $0x448] sm:$0xff]
  %v162 = vld [vmem:[%s1 + $0x450] sm:$0xff]
  %v163 = vld [vmem:[%s1 + $0x458] sm:$0xff]
  %v164 = vld [vmem:[%s1 + $0x460] sm:$0xff]
  %v165 = vld [vmem:[%s1 + $0x468] sm:$0xff]
  %v166 = vld [vmem:[%s1 + $0x470] sm:$0xff]
  %v167 = vld [vmem:[%s1 + $0x478] sm:$0xff]
  %v168 = vld [vmem:[%s2] sm:$0x3]
  %v170 = vperm.slane %v168, 0
  %v171 = vperm.slane %v168, 1
  %v184 = vunpack.c.l.b16 %v14
  %v185 = vunpack.c.h.b16 %v14
  %v186 = vunpack.c.l.b16 %v15
  %v187 = vunpack.c.h.b16 %v15
  %v188 = vunpack.c.l.b16 %v16
  %v189 = vunpack.c.h.b16 %v16
  %v190 = vunpack.c.l.b16 %v17
  %v191 = vunpack.c.h.b16 %v17
  %v192 = vunpack.c.l.b16 %v18
  %v193 = vunpack.c.l.b16 %v19
  %v194 = vunpack.c.h.b16 %v19
  %v195 = vunpack.c.l.b16 %v20
  %v196 = vunpack.c.h.b16 %v20
  %v197 = vunpack.c.l.b16 %v21
  %v198 = vunpack.c.h.b16 %v21
  %v199 = vunpack.c.l.b16 %v22
  %v200 = vunpack.c.h.b16 %v22
  %v201 = vunpack.c.l.b16 %v23
  %v202 = vpack.c.b16 %v193, %v184
  %v203 = vpack.c.b16 %v194, %v185
  %v204 = vpack.c.b16 %v195, %v186
  %v205 = vpack.c.b16 %v196, %v187
  %v206 = vpack.c.b16 %v197, %v188
  %v207 = vpack.c.b16 %v198, %v189
  %v208 = vpack.c.b16 %v199, %v190
  %v209 = vpack.c.b16 %v200, %v191
  %v210 = vpack.c.b16 %v201, %v192
  %v364 = vunpack.c.l.b16 %v24
  %v365 = vunpack.c.h.b16 %v24
  %v366 = vunpack.c.l.b16 %v25
  %v367 = vunpack.c.h.b16 %v25
  %v368 = vunpack.c.l.b16 %v26
  %v369 = vunpack.c.h.b16 %v26
  %v370 = vunpack.c.l.b16 %v27
  %v371 = vunpack.c.h.b16 %v27
  %v372 = vunpack.c.l.b16 %v28
  %v373 = vunpack.c.h.b16 %v28
  %v374 = vunpack.c.l.b16 %v29
  %v375 = vunpack.c.h.b16 %v29
  %v376 = vunpack.c.l.b16 %v30
  %v377 = vunpack.c.h.b16 %v30
  %v378 = vunpack.c.l.b16 %v31
  %v379 = vunpack.c.h.b16 %v31
  %v380 = vunpack.c.l.b16 %v32
  %v381 = vunpack.c.h.b16 %v32
  %v382 = vunpack.c.l.b16 %v33
  %v383 = vunpack.c.h.b16 %v33
  %v384 = vunpack.c.l.b16 %v34
  %v385 = vunpack.c.h.b16 %v34
  %v386 = vunpack.c.l.b16 %v35
  %v387 = vunpack.c.h.b16 %v35
  %v388 = vunpack.c.l.b16 %v36
  %v389 = vunpack.c.h.b16 %v36
  %v390 = vunpack.c.l.b16 %v37
  %v391 = vunpack.c.h.b16 %v37
  %v392 = vunpack.c.l.b16 %v38
  %v393 = vunpack.c.h.b16 %v38
  %v394 = vunpack.c.l.b16 %v39
  %v395 = vunpack.c.h.b16 %v39
  %v396 = vunpack.c.l.b16 %v40
  %v397 = vunpack.c.h.b16 %v40
  %v398 = vunpack.c.l.b16 %v41
  %v399 = vunpack.c.h.b16 %v41
  %v400 = vunpack.c.l.b16 %v42
  %v401 = vunpack.c.h.b16 %v42
  %v402 = vunpack.c.l.b16 %v43
  %v403 = vunpack.c.h.b16 %v43
  %v404 = vunpack.c.l.b16 %v44
  %v405 = vunpack.c.h.b16 %v44
  %v406 = vunpack.c.l.b16 %v45
  %v407 = vunpack.c.h.b16 %v45
  %v408 = vunpack.c.l.b16 %v46
  %v409 = vunpack.c.h.b16 %v46
  %v410 = vunpack.c.l.b16 %v47
  %v411 = vunpack.c.h.b16 %v47
  %v412 = vunpack.c.l.b16 %v48
  %v413 = vunpack.c.h.b16 %v48
  %v414 = vunpack.c.l.b16 %v49
  %v415 = vunpack.c.h.b16 %v49
  %v416 = vunpack.c.l.b16 %v50
  %v417 = vunpack.c.h.b16 %v50
  %v418 = vunpack.c.l.b16 %v51
  %v419 = vunpack.c.h.b16 %v51
  %v420 = vunpack.c.l.b16 %v52
  %v421 = vunpack.c.h.b16 %v52
  %v422 = vunpack.c.l.b16 %v53
  %v423 = vunpack.c.h.b16 %v53
  %v424 = vunpack.c.l.b16 %v54
  %v425 = vunpack.c.h.b16 %v54
  %v426 = vunpack.c.l.b16 %v55
  %v427 = vunpack.c.h.b16 %v55
  %v428 = vunpack.c.l.b16 %v56
  %v429 = vunpack.c.h.b16 %v56
  %v430 = vunpack.c.l.b16 %v57
  %v431 = vunpack.c.h.b16 %v57
  %v432 = vunpack.c.l.b16 %v58
  %v433 = vunpack.c.h.b16 %v58
  %v434 = vunpack.c.l.b16 %v59
  %v435 = vunpack.c.h.b16 %v59
  %v436 = vunpack.c.l.b16 %v60
  %v437 = vunpack.c.h.b16 %v60
  %v438 = vunpack.c.l.b16 %v61
  %v439 = vunpack.c.h.b16 %v61
  %v440 = vunpack.c.l.b16 %v62
  %v441 = vunpack.c.h.b16 %v62
  %v442 = vunpack.c.l.b16 %v63
  %v443 = vunpack.c.h.b16 %v63
  %v444 = vunpack.c.l.b16 %v64
  %v445 = vunpack.c.h.b16 %v64
  %v446 = vunpack.c.l.b16 %v65
  %v447 = vunpack.c.h.b16 %v65
  %v448 = vunpack.c.l.b16 %v66
  %v449 = vunpack.c.h.b16 %v66
  %v450 = vunpack.c.l.b16 %v67
  %v451 = vunpack.c.h.b16 %v67
  %v452 = vunpack.c.l.b16 %v68
  %v453 = vunpack.c.h.b16 %v68
  %v454 = vunpack.c.l.b16 %v69
  %v455 = vunpack.c.h.b16 %v69
  %v456 = vunpack.c.l.b16 %v70
  %v457 = vunpack.c.h.b16 %v70
  %v458 = vunpack.c.l.b16 %v71
  %v459 = vunpack.c.h.b16 %v71
  %v460 = vunpack.c.l.b16 %v72
  %v461 = vunpack.c.h.b16 %v72
  %v462 = vunpack.c.l.b16 %v73
  %v463 = vunpack.c.h.b16 %v73
  %v464 = vunpack.c.l.b16 %v74
  %v465 = vunpack.c.h.b16 %v74
  %v466 = vunpack.c.l.b16 %v75
  %v467 = vunpack.c.h.b16 %v75
  %v468 = vunpack.c.l.b16 %v76
  %v469 = vunpack.c.h.b16 %v76
  %v470 = vunpack.c.l.b16 %v77
  %v471 = vunpack.c.h.b16 %v77
  %v472 = vunpack.c.l.b16 %v78
  %v473 = vunpack.c.h.b16 %v78
  %v474 = vunpack.c.l.b16 %v79
  %v475 = vunpack.c.h.b16 %v79
  %v476 = vunpack.c.l.b16 %v80
  %v477 = vunpack.c.h.b16 %v80
  %v478 = vunpack.c.l.b16 %v81
  %v479 = vunpack.c.h.b16 %v81
  %v480 = vunpack.c.l.b16 %v82
  %v481 = vunpack.c.h.b16 %v82
  %v482 = vunpack.c.l.b16 %v83
  %v483 = vunpack.c.h.b16 %v83
  %v484 = vunpack.c.l.b16 %v84
  %v485 = vunpack.c.h.b16 %v84
  %v486 = vunpack.c.l.b16 %v85
  %v487 = vunpack.c.h.b16 %v85
  %v488 = vunpack.c.l.b16 %v86
  %v489 = vunpack.c.h.b16 %v86
  %v490 = vunpack.c.l.b16 %v87
  %v491 = vunpack.c.h.b16 %v87
  %v492 = vunpack.c.l.b16 %v88
  %v493 = vunpack.c.h.b16 %v88
  %v494 = vunpack.c.l.b16 %v89
  %v495 = vunpack.c.h.b16 %v89
  %v496 = vunpack.c.l.b16 %v90
  %v497 = vunpack.c.h.b16 %v90
  %v498 = vunpack.c.l.b16 %v91
  %v499 = vunpack.c.h.b16 %v91
  %v500 = vunpack.c.l.b16 %v92
  %v501 = vunpack.c.h.b16 %v92
  %v502 = vunpack.c.l.b16 %v93
  %v503 = vunpack.c.h.b16 %v93
  %v504 = vunpack.c.l.b16 %v94
  %v505 = vunpack.c.h.b16 %v94
  %v506 = vunpack.c.l.b16 %v95
  %v507 = vunpack.c.h.b16 %v95
  %v508 = vunpack.c.l.b16 %v96
  %v509 = vunpack.c.h.b16 %v96
  %v510 = vunpack.c.l.b16 %v97
  %v511 = vunpack.c.h.b16 %v97
  %v512 = vunpack.c.l.b16 %v98
  %v513 = vunpack.c.h.b16 %v98
  %v514 = vunpack.c.l.b16 %v99
  %v515 = vunpack.c.h.b16 %v99
  %v516 = vunpack.c.l.b16 %v100
  %v517 = vunpack.c.h.b16 %v100
  %v518 = vunpack.c.l.b16 %v101
  %v519 = vunpack.c.h.b16 %v101
  %v520 = vunpack.c.l.b16 %v102
  %v521 = vunpack.c.h.b16 %v102
  %v522 = vunpack.c.l.b16 %v103
  %v523 = vunpack.c.h.b16 %v103
  %v524 = vunpack.c.l.b16 %v104
  %v525 = vunpack.c.h.b16 %v104
  %v526 = vunpack.c.l.b16 %v105
  %v527 = vunpack.c.h.b16 %v105
  %v528 = vunpack.c.l.b16 %v106
  %v529 = vunpack.c.h.b16 %v106
  %v530 = vunpack.c.l.b16 %v107
  %v531 = vunpack.c.h.b16 %v107
  %v532 = vunpack.c.l.b16 %v108
  %v533 = vunpack.c.h.b16 %v108
  %v534 = vunpack.c.l.b16 %v109
  %v535 = vunpack.c.h.b16 %v109
  %v536 = vunpack.c.l.b16 %v110
  %v537 = vunpack.c.h.b16 %v110
  %v538 = vunpack.c.l.b16 %v111
  %v539 = vunpack.c.h.b16 %v111
  %v540 = vunpack.c.l.b16 %v112
  %v541 = vunpack.c.h.b16 %v112
  %v542 = vunpack.c.l.b16 %v113
  %v543 = vunpack.c.h.b16 %v113
  %v544 = vunpack.c.l.b16 %v114
  %v545 = vunpack.c.h.b16 %v114
  %v546 = vunpack.c.l.b16 %v115
  %v547 = vunpack.c.h.b16 %v115
  %v548 = vunpack.c.l.b16 %v116
  %v549 = vunpack.c.h.b16 %v116
  %v550 = vunpack.c.l.b16 %v117
  %v551 = vunpack.c.h.b16 %v117
  %v552 = vunpack.c.l.b16 %v118
  %v553 = vunpack.c.h.b16 %v118
  %v554 = vunpack.c.l.b16 %v119
  %v555 = vunpack.c.h.b16 %v119
  %v556 = vunpack.c.l.b16 %v120
  %v557 = vunpack.c.h.b16 %v120
  %v558 = vunpack.c.l.b16 %v121
  %v559 = vunpack.c.h.b16 %v121
  %v560 = vunpack.c.l.b16 %v122
  %v561 = vunpack.c.h.b16 %v122
  %v562 = vunpack.c.l.b16 %v123
  %v563 = vunpack.c.h.b16 %v123
  %v564 = vunpack.c.l.b16 %v124
  %v565 = vunpack.c.h.b16 %v124
  %v566 = vunpack.c.l.b16 %v125
  %v567 = vunpack.c.h.b16 %v125
  %v568 = vunpack.c.l.b16 %v126
  %v569 = vunpack.c.h.b16 %v126
  %v570 = vunpack.c.l.b16 %v127
  %v571 = vunpack.c.h.b16 %v127
  %v572 = vunpack.c.l.b16 %v128
  %v573 = vunpack.c.h.b16 %v128
  %v574 = vunpack.c.l.b16 %v129
  %v575 = vunpack.c.h.b16 %v129
  %v576 = vunpack.c.l.b16 %v130
  %v577 = vunpack.c.h.b16 %v130
  %v578 = vunpack.c.l.b16 %v131
  %v579 = vunpack.c.h.b16 %v131
  %v580 = vunpack.c.l.b16 %v132
  %v581 = vunpack.c.h.b16 %v132
  %v582 = vunpack.c.l.b16 %v133
  %v583 = vunpack.c.h.b16 %v133
  %v584 = vunpack.c.l.b16 %v134
  %v585 = vunpack.c.h.b16 %v134
  %v586 = vunpack.c.l.b16 %v135
  %v587 = vunpack.c.h.b16 %v135
  %v588 = vunpack.c.l.b16 %v136
  %v589 = vunpack.c.h.b16 %v136
  %v590 = vunpack.c.l.b16 %v137
  %v591 = vunpack.c.h.b16 %v137
  %v592 = vunpack.c.l.b16 %v138
  %v593 = vunpack.c.h.b16 %v138
  %v594 = vunpack.c.l.b16 %v139
  %v595 = vunpack.c.h.b16 %v139
  %v596 = vunpack.c.l.b16 %v140
  %v597 = vunpack.c.h.b16 %v140
  %v598 = vunpack.c.l.b16 %v141
  %v599 = vunpack.c.h.b16 %v141
  %v600 = vunpack.c.l.b16 %v142
  %v601 = vunpack.c.h.b16 %v142
  %v602 = vunpack.c.l.b16 %v143
  %v603 = vunpack.c.h.b16 %v143
  %v604 = vunpack.c.l.b16 %v144
  %v605 = vunpack.c.h.b16 %v144
  %v606 = vunpack.c.l.b16 %v145
  %v607 = vunpack.c.h.b16 %v145
  %v608 = vunpack.c.l.b16 %v146
  %v609 = vunpack.c.h.b16 %v146
  %v610 = vunpack.c.l.b16 %v147
  %v611 = vunpack.c.h.b16 %v147
  %v612 = vunpack.c.l.b16 %v148
  %v613 = vunpack.c.h.b16 %v148
  %v614 = vunpack.c.l.b16 %v149
  %v615 = vunpack.c.h.b16 %v149
  %v616 = vunpack.c.l.b16 %v150
  %v617 = vunpack.c.h.b16 %v150
  %v618 = vunpack.c.l.b16 %v151
  %v619 = vunpack.c.h.b16 %v151
  %v620 = vunpack.c.l.b16 %v152
  %v621 = vunpack.c.h.b16 %v152
  %v622 = vunpack.c.l.b16 %v153
  %v623 = vunpack.c.h.b16 %v153
  %v624 = vunpack.c.l.b16 %v154
  %v625 = vunpack.c.h.b16 %v154
  %v626 = vunpack.c.l.b16 %v155
  %v627 = vunpack.c.h.b16 %v155
  %v628 = vunpack.c.l.b16 %v156
  %v629 = vunpack.c.h.b16 %v156
  %v630 = vunpack.c.l.b16 %v157
  %v631 = vunpack.c.h.b16 %v157
  %v632 = vunpack.c.l.b16 %v158
  %v633 = vunpack.c.h.b16 %v158
  %v634 = vunpack.c.l.b16 %v159
  %v635 = vunpack.c.h.b16 %v159
  %v636 = vunpack.c.l.b16 %v160
  %v637 = vunpack.c.h.b16 %v160
  %v638 = vunpack.c.l.b16 %v161
  %v639 = vunpack.c.h.b16 %v161
  %v640 = vunpack.c.l.b16 %v162
  %v641 = vunpack.c.h.b16 %v162
  %v642 = vunpack.c.l.b16 %v163
  %v643 = vunpack.c.h.b16 %v163
  %v644 = vunpack.c.l.b16 %v164
  %v645 = vunpack.c.h.b16 %v164
  %v646 = vunpack.c.l.b16 %v165
  %v647 = vunpack.c.h.b16 %v165
  %v648 = vunpack.c.l.b16 %v166
  %v649 = vunpack.c.h.b16 %v166
  %v650 = vunpack.c.l.b16 %v167
  %v651 = vunpack.c.h.b16 %v167
  %v652 = vpack.c.b16 %v366, %v364
  %v653 = vpack.c.b16 %v367, %v365
  %v654 = vpack.c.b16 %v370, %v368
  %v655 = vpack.c.b16 %v371, %v369
  %v656 = vpack.c.b16 %v374, %v372
  %v657 = vpack.c.b16 %v375, %v373
  %v658 = vpack.c.b16 %v378, %v376
  %v659 = vpack.c.b16 %v379, %v377
  %v660 = vpack.c.b16 %v382, %v380
  %v661 = vpack.c.b16 %v383, %v381
  %v662 = vpack.c.b16 %v386, %v384
  %v663 = vpack.c.b16 %v387, %v385
  %v664 = vpack.c.b16 %v390, %v388
  %v665 = vpack.c.b16 %v391, %v389
  %v666 = vpack.c.b16 %v394, %v392
  %v667 = vpack.c.b16 %v395, %v393
  %v668 = vpack.c.b16 %v398, %v396
  %v669 = vpack.c.b16 %v399, %v397
  %v670 = vpack.c.b16 %v402, %v400
  %v671 = vpack.c.b16 %v403, %v401
  %v672 = vpack.c.b16 %v406, %v404
  %v673 = vpack.c.b16 %v407, %v405
  %v674 = vpack.c.b16 %v410, %v408
  %v675 = vpack.c.b16 %v411, %v409
  %v676 = vpack.c.b16 %v414, %v412
  %v677 = vpack.c.b16 %v415, %v413
  %v678 = vpack.c.b16 %v418, %v416
  %v679 = vpack.c.b16 %v419, %v417
  %v680 = vpack.c.b16 %v422, %v420
  %v681 = vpack.c.b16 %v423, %v421
  %v682 = vpack.c.b16 %v426, %v424
  %v683 = vpack.c.b16 %v427, %v425
  %v684 = vpack.c.b16 %v430, %v428
  %v685 = vpack.c.b16 %v431, %v429
  %v686 = vpack.c.b16 %v434, %v432
  %v687 = vpack.c.b16 %v435, %v433
  %v688 = vpack.c.b16 %v438, %v436
  %v689 = vpack.c.b16 %v439, %v437
  %v690 = vpack.c.b16 %v442, %v440
  %v691 = vpack.c.b16 %v443, %v441
  %v692 = vpack.c.b16 %v446, %v444
  %v693 = vpack.c.b16 %v447, %v445
  %v694 = vpack.c.b16 %v450, %v448
  %v695 = vpack.c.b16 %v451, %v449
  %v696 = vpack.c.b16 %v454, %v452
  %v697 = vpack.c.b16 %v455, %v453
  %v698 = vpack.c.b16 %v458, %v456
  %v699 = vpack.c.b16 %v459, %v457
  %v700 = vpack.c.b16 %v462, %v460
  %v701 = vpack.c.b16 %v463, %v461
  %v702 = vpack.c.b16 %v466, %v464
  %v703 = vpack.c.b16 %v467, %v465
  %v704 = vpack.c.b16 %v470, %v468
  %v705 = vpack.c.b16 %v471, %v469
  %v706 = vpack.c.b16 %v474, %v472
  %v707 = vpack.c.b16 %v475, %v473
  %v708 = vpack.c.b16 %v478, %v476
  %v709 = vpack.c.b16 %v479, %v477
  %v710 = vpack.c.b16 %v482, %v480
  %v711 = vpack.c.b16 %v483, %v481
  %v712 = vpack.c.b16 %v486, %v484
  %v713 = vpack.c.b16 %v487, %v485
  %v714 = vpack.c.b16 %v490, %v488
  %v715 = vpack.c.b16 %v491, %v489
  %v716 = vpack.c.b16 %v494, %v492
  %v717 = vpack.c.b16 %v495, %v493
  %v718 = vpack.c.b16 %v498, %v496
  %v719 = vpack.c.b16 %v499, %v497
  %v720 = vpack.c.b16 %v502, %v500
  %v721 = vpack.c.b16 %v503, %v501
  %v722 = vpack.c.b16 %v506, %v504
  %v723 = vpack.c.b16 %v507, %v505
  %v724 = vpack.c.b16 %v510, %v508
  %v725 = vpack.c.b16 %v511, %v509
  %v726 = vpack.c.b16 %v514, %v512
  %v727 = vpack.c.b16 %v515, %v513
  %v728 = vpack.c.b16 %v518, %v516
  %v729 = vpack.c.b16 %v519, %v517
  %v730 = vpack.c.b16 %v522, %v520
  %v731 = vpack.c.b16 %v523, %v521
  %v732 = vpack.c.b16 %v526, %v524
  %v733 = vpack.c.b16 %v527, %v525
  %v734 = vpack.c.b16 %v530, %v528
  %v735 = vpack.c.b16 %v531, %v529
  %v736 = vpack.c.b16 %v534, %v532
  %v737 = vpack.c.b16 %v535, %v533
  %v738 = vpack.c.b16 %v538, %v536
  %v739 = vpack.c.b16 %v539, %v537
  %v740 = vpack.c.b16 %v542, %v540
  %v741 = vpack.c.b16 %v543, %v541
  %v742 = vpack.c.b16 %v546, %v544
  %v743 = vpack.c.b16 %v547, %v545
  %v744 = vpack.c.b16 %v550, %v548
  %v745 = vpack.c.b16 %v551, %v549
  %v746 = vpack.c.b16 %v554, %v552
  %v747 = vpack.c.b16 %v555, %v553
  %v748 = vpack.c.b16 %v558, %v556
  %v749 = vpack.c.b16 %v559, %v557
  %v750 = vpack.c.b16 %v562, %v560
  %v751 = vpack.c.b16 %v563, %v561
  %v752 = vpack.c.b16 %v566, %v564
  %v753 = vpack.c.b16 %v567, %v565
  %v754 = vpack.c.b16 %v570, %v568
  %v755 = vpack.c.b16 %v571, %v569
  %v756 = vpack.c.b16 %v574, %v572
  %v757 = vpack.c.b16 %v575, %v573
  %v758 = vpack.c.b16 %v578, %v576
  %v759 = vpack.c.b16 %v579, %v577
  %v760 = vpack.c.b16 %v582, %v580
  %v761 = vpack.c.b16 %v583, %v581
  %v762 = vpack.c.b16 %v586, %v584
  %v763 = vpack.c.b16 %v587, %v585
  %v764 = vpack.c.b16 %v590, %v588
  %v765 = vpack.c.b16 %v591, %v589
  %v766 = vpack.c.b16 %v594, %v592
  %v767 = vpack.c.b16 %v595, %v593
  %v768 = vpack.c.b16 %v598, %v596
  %v769 = vpack.c.b16 %v599, %v597
  %v770 = vpack.c.b16 %v602, %v600
  %v771 = vpack.c.b16 %v603, %v601
  %v772 = vpack.c.b16 %v606, %v604
  %v773 = vpack.c.b16 %v607, %v605
  %v774 = vpack.c.b16 %v610, %v608
  %v775 = vpack.c.b16 %v611, %v609
  %v776 = vpack.c.b16 %v614, %v612
  %v777 = vpack.c.b16 %v615, %v613
  %v778 = vpack.c.b16 %v618, %v616
  %v779 = vpack.c.b16 %v619, %v617
  %v780 = vpack.c.b16 %v622, %v620
  %v781 = vpack.c.b16 %v623, %v621
  %v782 = vpack.c.b16 %v626, %v624
  %v783 = vpack.c.b16 %v627, %v625
  %v784 = vpack.c.b16 %v630, %v628
  %v785 = vpack.c.b16 %v631, %v629
  %v786 = vpack.c.b16 %v634, %v632
  %v787 = vpack.c.b16 %v635, %v633
  %v788 = vpack.c.b16 %v638, %v636
  %v789 = vpack.c.b16 %v639, %v637
  %v790 = vpack.c.b16 %v642, %v640
  %v791 = vpack.c.b16 %v643, %v641
  %v792 = vpack.c.b16 %v646, %v644
  %v793 = vpack.c.b16 %v647, %v645
  %v794 = vpack.c.b16 %v650, %v648
  %v795 = vpack.c.b16 %v651, %v649
  %940 = vmatpush.bf16.msra.mxu0 %v666
  %941 = vmatpush.bf16.msra.mxu0 %v664
  %942 = vmatpush.bf16.msra.mxu0 %v662
  %943 = vmatpush.bf16.msra.mxu0 %v660
  %944 = vmatpush.bf16.msra.mxu0 %v658
  %945 = vmatpush.bf16.msra.mxu0 %v656
  %946 = vmatpush.bf16.msra.mxu0 %v654
  %947 = vmatpush.bf16.msra.mxu0 %v652
  %948 = vmatmul.bf16.gmra.mxu0 %v202
  %v949 = vpop.f32.mrf.mxu0
  %v950 = vadd.f32 %v170, %v949
  %v951 = vpop.f32.mrf.mxu0
  %v952 = vadd.f32 %v170, %v951
  %953 = vdwg.mxu0
  %954 = vmatpush.bf16.msra.mxu0 %v682
  %955 = vmatpush.bf16.msra.mxu0 %v680
  %956 = vmatpush.bf16.msra.mxu0 %v678
  %957 = vmatpush.bf16.msra.mxu0 %v676
  %958 = vmatpush.bf16.msra.mxu0 %v674
  %959 = vmatpush.bf16.msra.mxu0 %v672
  %960 = vmatpush.bf16.msra.mxu0 %v670
  %961 = vmatpush.bf16.msra.mxu0 %v668
  %962 = vmatmul.bf16.gmra.mxu0 %v203
  %v963 = vpop.f32.mrf.mxu0
  %v964 = vadd.f32 %v950, %v963
  %v965 = vpop.f32.mrf.mxu0
  %v966 = vadd.f32 %v952, %v965
  %967 = vdwg.mxu0
  %968 = vmatpush.bf16.msra.mxu0 %v698
  %969 = vmatpush.bf16.msra.mxu0 %v696
  %970 = vmatpush.bf16.msra.mxu0 %v694
  %971 = vmatpush.bf16.msra.mxu0 %v692
  %972 = vmatpush.bf16.msra.mxu0 %v690
  %973 = vmatpush.bf16.msra.mxu0 %v688
  %974 = vmatpush.bf16.msra.mxu0 %v686
  %975 = vmatpush.bf16.msra.mxu0 %v684
  %976 = vmatmul.bf16.gmra.mxu0 %v204
  %v977 = vpop.f32.mrf.mxu0
  %v978 = vadd.f32 %v964, %v977
  %v979 = vpop.f32.mrf.mxu0
  %v980 = vadd.f32 %v966, %v979
  %981 = vdwg.mxu0
  %982 = vmatpush.bf16.msra.mxu0 %v714
  %983 = vmatpush.bf16.msra.mxu0 %v712
  %984 = vmatpush.bf16.msra.mxu0 %v710
  %985 = vmatpush.bf16.msra.mxu0 %v708
  %986 = vmatpush.bf16.msra.mxu0 %v706
  %987 = vmatpush.bf16.msra.mxu0 %v704
  %988 = vmatpush.bf16.msra.mxu0 %v702
  %989 = vmatpush.bf16.msra.mxu0 %v700
  %990 = vmatmul.bf16.gmra.mxu0 %v205
  %v991 = vpop.f32.mrf.mxu0
  %v992 = vadd.f32 %v978, %v991
  %v993 = vpop.f32.mrf.mxu0
  %v994 = vadd.f32 %v980, %v993
  %995 = vdwg.mxu0
  %996 = vmatpush.bf16.msra.mxu0 %v730
  %997 = vmatpush.bf16.msra.mxu0 %v728
  %998 = vmatpush.bf16.msra.mxu0 %v726
  %999 = vmatpush.bf16.msra.mxu0 %v724
  %1000 = vmatpush.bf16.msra.mxu0 %v722
  %1001 = vmatpush.bf16.msra.mxu0 %v720
  %1002 = vmatpush.bf16.msra.mxu0 %v718
  %1003 = vmatpush.bf16.msra.mxu0 %v716
  %1004 = vmatmul.bf16.gmra.mxu0 %v206
  %v1005 = vpop.f32.mrf.mxu0
  %v1006 = vadd.f32 %v992, %v1005
  %v1007 = vpop.f32.mrf.mxu0
  %v1008 = vadd.f32 %v994, %v1007
  %1009 = vdwg.mxu0
  %1010 = vmatpush.bf16.msra.mxu0 %v746
  %1011 = vmatpush.bf16.msra.mxu0 %v744
  %1012 = vmatpush.bf16.msra.mxu0 %v742
  %1013 = vmatpush.bf16.msra.mxu0 %v740
  %1014 = vmatpush.bf16.msra.mxu0 %v738
  %1015 = vmatpush.bf16.msra.mxu0 %v736
  %1016 = vmatpush.bf16.msra.mxu0 %v734
  %1017 = vmatpush.bf16.msra.mxu0 %v732
  %1018 = vmatmul.bf16.gmra.mxu0 %v207
  %v1019 = vpop.f32.mrf.mxu0
  %v1020 = vadd.f32 %v1006, %v1019
  %v1021 = vpop.f32.mrf.mxu0
  %v1022 = vadd.f32 %v1008, %v1021
  %1023 = vdwg.mxu0
  %1024 = vmatpush.bf16.msra.mxu0 %v762
  %1025 = vmatpush.bf16.msra.mxu0 %v760
  %1026 = vmatpush.bf16.msra.mxu0 %v758
  %1027 = vmatpush.bf16.msra.mxu0 %v756
  %1028 = vmatpush.bf16.msra.mxu0 %v754
  %1029 = vmatpush.bf16.msra.mxu0 %v752
  %1030 = vmatpush.bf16.msra.mxu0 %v750
  %1031 = vmatpush.bf16.msra.mxu0 %v748
  %1032 = vmatmul.bf16.gmra.mxu0 %v208
  %v1033 = vpop.f32.mrf.mxu0
  %v1034 = vadd.f32 %v1020, %v1033
  %v1035 = vpop.f32.mrf.mxu0
  %v1036 = vadd.f32 %v1022, %v1035
  %1037 = vdwg.mxu0
  %1038 = vmatpush.bf16.msra.mxu0 %v778
  %1039 = vmatpush.bf16.msra.mxu0 %v776
  %1040 = vmatpush.bf16.msra.mxu0 %v774
  %1041 = vmatpush.bf16.msra.mxu0 %v772
  %1042 = vmatpush.bf16.msra.mxu0 %v770
  %1043 = vmatpush.bf16.msra.mxu0 %v768
  %1044 = vmatpush.bf16.msra.mxu0 %v766
  %1045 = vmatpush.bf16.msra.mxu0 %v764
  %1046 = vmatmul.bf16.gmra.mxu0 %v209
  %v1047 = vpop.f32.mrf.mxu0
  %v1048 = vadd.f32 %v1034, %v1047
  %v1049 = vpop.f32.mrf.mxu0
  %v1050 = vadd.f32 %v1036, %v1049
  %1051 = vdwg.mxu0
  %1052 = vmatpush.bf16.msra.mxu0 %v794
  %1053 = vmatpush.bf16.msra.mxu0 %v792
  %1054 = vmatpush.bf16.msra.mxu0 %v790
  %1055 = vmatpush.bf16.msra.mxu0 %v788
  %1056 = vmatpush.bf16.msra.mxu0 %v786
  %1057 = vmatpush.bf16.msra.mxu0 %v784
  %1058 = vmatpush.bf16.msra.mxu0 %v782
  %1059 = vmatpush.bf16.msra.mxu0 %v780
  %1060 = vmatmul.bf16.gmra.mxu0 %v210
  %v1061 = vpop.f32.mrf.mxu0
  %v1062 = vadd.f32 %v1048, %v1061
  %v1063 = vpop.f32.mrf.mxu0
  %v1064 = vadd.f32 %v1050, %v1063
  %1065 = vdwg.mxu0
  %1066 = vmatpush.bf16.msra.mxu0 %v667
  %1067 = vmatpush.bf16.msra.mxu0 %v665
  %1068 = vmatpush.bf16.msra.mxu0 %v663
  %1069 = vmatpush.bf16.msra.mxu0 %v661
  %1070 = vmatpush.bf16.msra.mxu0 %v659
  %1071 = vmatpush.bf16.msra.mxu0 %v657
  %1072 = vmatpush.bf16.msra.mxu0 %v655
  %1073 = vmatpush.bf16.msra.mxu0 %v653
  %1074 = vmatmul.bf16.gmra.mxu0 %v202
  %v1075 = vpop.f32.mrf.mxu0
  %v1076 = vadd.f32 %v171, %v1075
  %v1077 = vpop.f32.mrf.mxu0
  %v1078 = vadd.f32 %v171, %v1077
  %1079 = vdwg.mxu0
  %1080 = vmatpush.bf16.msra.mxu0 %v683
  %1081 = vmatpush.bf16.msra.mxu0 %v681
  %1082 = vmatpush.bf16.msra.mxu0 %v679
  %1083 = vmatpush.bf16.msra.mxu0 %v677
  %1084 = vmatpush.bf16.msra.mxu0 %v675
  %1085 = vmatpush.bf16.msra.mxu0 %v673
  %1086 = vmatpush.bf16.msra.mxu0 %v671
  %1087 = vmatpush.bf16.msra.mxu0 %v669
  %1088 = vmatmul.bf16.gmra.mxu0 %v203
  %v1089 = vpop.f32.mrf.mxu0
  %v1090 = vadd.f32 %v1076, %v1089
  %v1091 = vpop.f32.mrf.mxu0
  %v1092 = vadd.f32 %v1078, %v1091
  %1093 = vdwg.mxu0
  %1094 = vmatpush.bf16.msra.mxu0 %v699
  %1095 = vmatpush.bf16.msra.mxu0 %v697
  %1096 = vmatpush.bf16.msra.mxu0 %v695
  %1097 = vmatpush.bf16.msra.mxu0 %v693
  %1098 = vmatpush.bf16.msra.mxu0 %v691
  %1099 = vmatpush.bf16.msra.mxu0 %v689
  %1100 = vmatpush.bf16.msra.mxu0 %v687
  %1101 = vmatpush.bf16.msra.mxu0 %v685
  %1102 = vmatmul.bf16.gmra.mxu0 %v204
  %v1103 = vpop.f32.mrf.mxu0
  %v1104 = vadd.f32 %v1090, %v1103
  %v1105 = vpop.f32.mrf.mxu0
  %v1106 = vadd.f32 %v1092, %v1105
  %1107 = vdwg.mxu0
  %1108 = vmatpush.bf16.msra.mxu0 %v715
  %1109 = vmatpush.bf16.msra.mxu0 %v713
  %1110 = vmatpush.bf16.msra.mxu0 %v711
  %1111 = vmatpush.bf16.msra.mxu0 %v709
  %1112 = vmatpush.bf16.msra.mxu0 %v707
  %1113 = vmatpush.bf16.msra.mxu0 %v705
  %1114 = vmatpush.bf16.msra.mxu0 %v703
  %1115 = vmatpush.bf16.msra.mxu0 %v701
  %1116 = vmatmul.bf16.gmra.mxu0 %v205
  %v1117 = vpop.f32.mrf.mxu0
  %v1118 = vadd.f32 %v1104, %v1117
  %v1119 = vpop.f32.mrf.mxu0
  %v1120 = vadd.f32 %v1106, %v1119
  %1121 = vdwg.mxu0
  %1122 = vmatpush.bf16.msra.mxu0 %v731
  %1123 = vmatpush.bf16.msra.mxu0 %v729
  %1124 = vmatpush.bf16.msra.mxu0 %v727
  %1125 = vmatpush.bf16.msra.mxu0 %v725
  %1126 = vmatpush.bf16.msra.mxu0 %v723
  %1127 = vmatpush.bf16.msra.mxu0 %v721
  %1128 = vmatpush.bf16.msra.mxu0 %v719
  %1129 = vmatpush.bf16.msra.mxu0 %v717
  %1130 = vmatmul.bf16.gmra.mxu0 %v206
  %v1131 = vpop.f32.mrf.mxu0
  %v1132 = vadd.f32 %v1118, %v1131
  %v1133 = vpop.f32.mrf.mxu0
  %v1134 = vadd.f32 %v1120, %v1133
  %1135 = vdwg.mxu0
  %1136 = vmatpush.bf16.msra.mxu0 %v747
  %1137 = vmatpush.bf16.msra.mxu0 %v745
  %1138 = vmatpush.bf16.msra.mxu0 %v743
  %1139 = vmatpush.bf16.msra.mxu0 %v741
  %1140 = vmatpush.bf16.msra.mxu0 %v739
  %1141 = vmatpush.bf16.msra.mxu0 %v737
  %1142 = vmatpush.bf16.msra.mxu0 %v735
  %1143 = vmatpush.bf16.msra.mxu0 %v733
  %1144 = vmatmul.bf16.gmra.mxu0 %v207
  %v1145 = vpop.f32.mrf.mxu0
  %v1146 = vadd.f32 %v1132, %v1145
  %v1147 = vpop.f32.mrf.mxu0
  %v1148 = vadd.f32 %v1134, %v1147
  %1149 = vdwg.mxu0
  %1150 = vmatpush.bf16.msra.mxu0 %v763
  %1151 = vmatpush.bf16.msra.mxu0 %v761
  %1152 = vmatpush.bf16.msra.mxu0 %v759
  %1153 = vmatpush.bf16.msra.mxu0 %v757
  %1154 = vmatpush.bf16.msra.mxu0 %v755
  %1155 = vmatpush.bf16.msra.mxu0 %v753
  %1156 = vmatpush.bf16.msra.mxu0 %v751
  %1157 = vmatpush.bf16.msra.mxu0 %v749
  %1158 = vmatmul.bf16.gmra.mxu0 %v208
  %v1159 = vpop.f32.mrf.mxu0
  %v1160 = vadd.f32 %v1146, %v1159
  %v1161 = vpop.f32.mrf.mxu0
  %v1162 = vadd.f32 %v1148, %v1161
  %1163 = vdwg.mxu0
  %1164 = vmatpush.bf16.msra.mxu0 %v779
  %1165 = vmatpush.bf16.msra.mxu0 %v777
  %1166 = vmatpush.bf16.msra.mxu0 %v775
  %1167 = vmatpush.bf16.msra.mxu0 %v773
  %1168 = vmatpush.bf16.msra.mxu0 %v771
  %1169 = vmatpush.bf16.msra.mxu0 %v769
  %1170 = vmatpush.bf16.msra.mxu0 %v767
  %1171 = vmatpush.bf16.msra.mxu0 %v765
  %1172 = vmatmul.bf16.gmra.mxu0 %v209
  %v1173 = vpop.f32.mrf.mxu0
  %v1174 = vadd.f32 %v1160, %v1173
  %v1175 = vpop.f32.mrf.mxu0
  %v1176 = vadd.f32 %v1162, %v1175
  %1177 = vdwg.mxu0
  %1178 = vmatpush.bf16.msra.mxu0 %v795
  %1179 = vmatpush.bf16.msra.mxu0 %v793
  %1180 = vmatpush.bf16.msra.mxu0 %v791
  %1181 = vmatpush.bf16.msra.mxu0 %v789
  %1182 = vmatpush.bf16.msra.mxu0 %v787
  %1183 = vmatpush.bf16.msra.mxu0 %v785
  %1184 = vmatpush.bf16.msra.mxu0 %v783
  %1185 = vmatpush.bf16.msra.mxu0 %v781
  %1186 = vmatmul.bf16.gmra.mxu0 %v210
  %v1187 = vpop.f32.mrf.mxu0
  %v1188 = vadd.f32 %v1174, %v1187
  %v1189 = vpop.f32.mrf.mxu0
  %v1190 = vadd.f32 %v1176, %v1189
  %1191 = vdwg.mxu0
  %v1192 = vmax.f32 %v1062, 0.0
  %v1193 = vmax.f32 %v1188, 0.0
  %v1194 = vmax.f32 %v1064, 0.0
  %v1195 = vmax.f32 %v1190, 0.0
  %v1196 = vpack.c.bf16 %v1193, %v1192
  %v1197 = vpack.c.bf16 %v1195, %v1194
  %1198 = vst [vmem:[%s3] sm:$0xff] %v1196
  %1199 = vst [vmem:[%s3 + $0x8] sm:$0xff] %v1197
  // Predicated region
  $region14: #{conv_vae_forward.11} parent=0 // pred_check
    _
  $region15: #{conv_vae_forward.11} parent=0 // pred_check_branch
    %1201 = sbr.rel (0) target = $region17
  $region16: #{conv_vae_forward.11} parent=0 // pred_region
    _
  $region17: #{conv_vae_forward.11} parent=0 // pred_fallthru
    _
  // Predicated region
  $region18: #{conv_vae_forward.11} parent=0 // pred_check
    _
  $region19: #{conv_vae_forward.11} parent=0 // pred_check_branch
    %1203 = sbr.rel (0) target = $region21
  $region20: #{conv_vae_forward.11} parent=0 // pred_region
    _
  $region21: #{conv_vae_forward.11} parent=0 // pred_fallthru
    _

// kernel: conv_vae_forward.12
$region0: #{conv_vae_forward.12}
  #allocation0 [shape = 'u32[]', space=smem, size = 0x4, offset = 0x4, fixed_abs, tag = 'smem constant byte address 0x4 - core index']
  #allocation1 [shape = 'u32[72,128]{1,0:T(1,128)}', space=vmem, size = 0x9000, scoped, tag = 'internal scratch']
  %s0 = inlined_call_operand.vmem [shape: bf16[32,576], index: 0, kind: input, shape index: {}]
  %s1 = inlined_call_operand.vmem [shape: bf16[576,128], index: 1, kind: input, shape index: {}]
  %s2 = inlined_call_operand.vmem [shape: f32[1,128], index: 2, kind: input, shape index: {}]
  %s3 = inlined_call_operand.vmem [shape: bf16[32,128], index: 3, kind: output, shape index: {}]
  %s4 = sld [smem:[#allocation0]]
  $region45: #{conv_vae_forward.12} parent=0
    _
  %s6 = ssub.s32 1, %s4
  %s7 = scalar_select 0, %s6, %s4
  loop: start=0, step=1, limit=4
  $region2: #{conv_vae_forward.12} parent=0 // loop_pre_header
    _
  $region3: #{conv_vae_forward.12} parent=0 // loop_header
    %s9 = sphi 0, %s13
    %p10 = scmp.ge.s32.totalorder %s9, 4
    %s16 = sphi 0, %s28
    %s17 = sphi 0, %s24
    %s18 = sphi 0, %s16
    %s19 = sphi 0, %s17
    %s20 = sphi 0, %s18
    %s21 = sphi 0, %s19
    %s31 = sphi 0, %s33
    %s34 = sphi 0, %s31
    %s35 = sphi 0, %s34
    %s51 = sphi 0, %s35
    %s57 = sphi 0, %s59
    %s60 = sphi 0, %s57
    %s61 = sphi 0, %s60
    %s77 = sphi 0, %s61
    %s83 = sphi 0, %s85
    %s86 = sphi 0, %s83
    %s87 = sphi 0, %s86
    %s103 = sphi 0, %s87
    %s111 = sphi 0, %s113
    %s114 = sphi 0, %s111
    %s115 = sphi 0, %s114
    %s131 = sphi 0, %s115
  $region4: #{conv_vae_forward.12} parent=0 // loop_header_branch
    %12 = sbr.rel (%p10) target = $region8
  $region5: #{conv_vae_forward.12} parent=0 // loop_body
    %s14 = ssub.s32 %s9, 1
    %s15 = ssub.s32 %s9, 2
    %s22 = sadd.s32 1, %s17
    %p23 = scmp.ge.s32.totalorder %s22, 1
    %s24 = scalar_select %p23, 0, %s22
    %s25 = sadd.s32 1, %s16
    %s26 = scalar_select %p23, %s25, %s16
    %p27 = scmp.ge.s32.totalorder %s26, 2
    %s28 = scalar_select %p27, 0, %s26
    %s29 = ssub.s32 %s16, %s28
    %p30 = scmp.eq.s32.totalorder %s29, 0
    %s32 = sadd.s32 %s31, 1
    %s33 = scalar_select %p30, %s31, %s32
    %p36 = pneg %p30
    %p37 = scmp.eq.s32.totalorder %s9, 1
    %p38 = por %p36, %p37
    %p39 = scmp.ne.s32.totalorder %s31, %s34
    %p40 = scmp.eq.s32.totalorder %s9, 0
    %p41 = por %p39, %p40
    %p42 = scmp.ne.s32.totalorder %s31, %s34
    %p43 = scmp.eq.s32.totalorder %s14, 1
    %p44 = por %p42, %p43
    %p45 = scmp.ne.s32.totalorder %s34, %s35
    %p46 = scmp.eq.s32.totalorder %s14, 0
    %p47 = por %p45, %p46
    %p48 = scmp.ne.s32.totalorder %s34, %s35
    %p49 = scmp.eq.s32.totalorder %s15, 1
    %p50 = por %p48, %p49
    %p52 = scmp.ne.s32.totalorder %s35, %s51
    %p53 = scmp.eq.s32.totalorder %s15, 0
    %p54 = por %p52, %p53
    %s55 = ssub.s32 %s17, %s24
    %p56 = scmp.eq.s32.totalorder %s55, 0
    %s58 = sadd.s32 %s57, 1
    %s59 = scalar_select %p56, %s57, %s58
    %p62 = pneg %p56
    %p63 = scmp.eq.s32.totalorder %s9, 1
    %p64 = por %p62, %p63
    %p65 = scmp.ne.s32.totalorder %s57, %s60
    %p66 = scmp.eq.s32.totalorder %s9, 0
    %p67 = por %p65, %p66
    %p68 = scmp.ne.s32.totalorder %s57, %s60
    %p69 = scmp.eq.s32.totalorder %s14, 1
    %p70 = por %p68, %p69
    %p71 = scmp.ne.s32.totalorder %s60, %s61
    %p72 = scmp.eq.s32.totalorder %s14, 0
    %p73 = por %p71, %p72
    %p74 = scmp.ne.s32.totalorder %s60, %s61
    %p75 = scmp.eq.s32.totalorder %s15, 1
    %p76 = por %p74, %p75
    %p78 = scmp.ne.s32.totalorder %s61, %s77
    %p79 = scmp.eq.s32.totalorder %s15, 0
    %p80 = por %p78, %p79
    %s81 = ssub.s32 %s17, %s24
    %p82 = scmp.eq.s32.totalorder %s81, 0
    %s84 = sadd.s32 %s83, 1
    %s85 = scalar_select %p82, %s83, %s84
    %p88 = pneg %p82
    %p89 = scmp.eq.s32.totalorder %s9, 1
    %p90 = por %p88, %p89
    %p91 = scmp.ne.s32.totalorder %s83, %s86
    %p92 = scmp.eq.s32.totalorder %s9, 0
    %p93 = por %p91, %p92
    %p94 = scmp.ne.s32.totalorder %s83, %s86
    %p95 = scmp.eq.s32.totalorder %s14, 1
    %p96 = por %p94, %p95
    %p97 = scmp.ne.s32.totalorder %s86, %s87
    %p98 = scmp.eq.s32.totalorder %s14, 0
    %p99 = por %p97, %p98
    %p100 = scmp.ne.s32.totalorder %s86, %s87
    %p101 = scmp.eq.s32.totalorder %s15, 1
    %p102 = por %p100, %p101
    %p104 = scmp.ne.s32.totalorder %s87, %s103
    %p105 = scmp.eq.s32.totalorder %s15, 0
    %p106 = por %p104, %p105
    %s107 = ssub.s32 %s16, %s28
    %s108 = ssub.s32 %s17, %s24
    %s109 = sor.u32 %s107, %s108
    %p110 = scmp.eq.s32.totalorder %s109, 0
    %s112 = sadd.s32 %s111, 1
    %s113 = scalar_select %p110, %s111, %s112
    %p116 = pneg %p110
    %p117 = scmp.eq.s32.totalorder %s9, 1
    %p118 = por %p116, %p117
    %p119 = scmp.ne.s32.totalorder %s111, %s114
    %p120 = scmp.eq.s32.totalorder %s9, 0
    %p121 = por %p119, %p120
    %p122 = scmp.ne.s32.totalorder %s111, %s114
    %p123 = scmp.eq.s32.totalorder %s14, 1
    %p124 = por %p122, %p123
    %p125 = scmp.ne.s32.totalorder %s114, %s115
    %p126 = scmp.eq.s32.totalorder %s14, 0
    %p127 = por %p125, %p126
    %p128 = scmp.ne.s32.totalorder %s114, %s115
    %p129 = scmp.eq.s32.totalorder %s15, 1
    %p130 = por %p128, %p129
    %p132 = scmp.ne.s32.totalorder %s115, %s131
    %p133 = scmp.eq.s32.totalorder %s15, 0
    %p134 = por %p132, %p133
    %p135 = scmp.le.s32.totalorder 1, %s9
    %p136 = scmp.lt.s32.totalorder %s9, 3
    %p137 = pnand %p135, %p136
    %p138 = pneg %p137
    // Predicated region
    $region9: #{conv_vae_forward.12} parent=5 // pred_check
      _
    $region10: #{conv_vae_forward.12} parent=5 // pred_check_branch
      %140 = sbr.rel (%p137) target = $region12
    $region11: #{conv_vae_forward.12} parent=5 // pred_region
      %s141 = ssub.s32 %s9, 1
      // Predicated region
      $region13: #{conv_vae_forward.12} parent=11 // pred_check
        %p142 = pneg %p73
      $region14: #{conv_vae_forward.12} parent=11 // pred_check_branch
        %144 = sbr.rel (%p142) target = $region16
      $region15: #{conv_vae_forward.12} parent=11 // pred_region
        %p145 = scmp.lt.s32.totalorder %s19, 0
        %s146 = scalar_select %p145, %s19, 0
        %s147 = smul.addr %s146, 4
        %s148 = scalar_lea.vmem %s1, %s147
      $region16: #{conv_vae_forward.12} parent=11 // pred_fallthru
        _
      // Predicated region
      $region17: #{conv_vae_forward.12} parent=11 // pred_check
        %p149 = pneg %p99
      $region18: #{conv_vae_forward.12} parent=11 // pred_check_branch
        %151 = sbr.rel (%p149) target = $region20
      $region19: #{conv_vae_forward.12} parent=11 // pred_region
        %p152 = scmp.lt.s32.totalorder %s19, 0
        %s153 = scalar_select %p152, %s19, 0
        %s154 = scalar_lea.vmem %s2, %s153
      $region20: #{conv_vae_forward.12} parent=11 // pred_fallthru
        _
    $region12: #{conv_vae_forward.12} parent=5 // pred_fallthru
      _
    %p155 = scmp.lt.s32.totalorder %s9, 2
    // Predicated region
    $region21: #{conv_vae_forward.12} parent=5 // pred_check
      %p156 = pneg %p155
    $region22: #{conv_vae_forward.12} parent=5 // pred_check_branch
      %158 = sbr.rel (%p156) target = $region24
    $region23: #{conv_vae_forward.12} parent=5 // pred_region
      // Predicated region
      $region25: #{conv_vae_forward.12} parent=23 // pred_check
        %p159 = pneg %p41
      $region26: #{conv_vae_forward.12} parent=23 // pred_check_branch
        %161 = sbr.rel (%p159) target = $region28
      $region27: #{conv_vae_forward.12} parent=23 // pred_region
        %s162 = smul.u32 2, %s16
        %p163 = scmp.lt.s32.totalorder %s162, 3
        %s164 = scalar_select %p163, %s162, 3
        %s165 = smul.addr %s164, 5
        %s166 = smul.addr %s165, 4
        %s167 = scalar_lea.vmem %s0, %s166
        %s168 = smul.u32 2, %s16
      $region28: #{conv_vae_forward.12} parent=23 // pred_fallthru
        _
    $region24: #{conv_vae_forward.12} parent=5 // pred_fallthru
      _
    %p169 = scmp.le.s32.totalorder 1, %s9
    %p170 = scmp.lt.s32.totalorder %s9, 3
    %p171 = pnand %p169, %p170
    %p172 = pneg %p171
    // Predicated region
    $region29: #{conv_vae_forward.12} parent=5 // pred_check
      _
    $region30: #{conv_vae_forward.12} parent=5 // pred_check_branch
      %174 = sbr.rel (%p171) target = $region32
    $region31: #{conv_vae_forward.12} parent=5 // pred_region
      %s175 = ssub.s32 %s9, 1
      %s176 = smul.u32 2, %s18
      %p177 = scmp.lt.s32.totalorder %s176, 3
      %s178 = scalar_select %p177, %s176, 3
      %s179 = smul.addr %s178, 5
      %s180 = smul.addr %s179, 4
      %s181 = scalar_lea.vmem %s0, %s180
      %p182 = pneg %p47
      %p183 = pneg %p44
      %p184 = scmp.lt.s32.totalorder %s19, 0
      %s185 = scalar_select %p184, %s19, 0
      %s186 = smul.addr %s185, 4
      %s187 = scalar_lea.vmem %s1, %s186
      %p188 = pneg %p73
      %p189 = pneg %p70
      %p190 = scmp.lt.s32.totalorder %s19, 0
      %s191 = scalar_select %p190, %s19, 0
      %s192 = scalar_lea.vmem %s2, %s191
      %p193 = pneg %p99
      %p194 = pneg %p96
      %p195 = pneg %p127
      %p196 = pneg %p124
      %s197 = smul.u32 2, %s18
      %p198 = scmp.lt.s32.totalorder %s197, 3
      %s199 = scalar_select %p198, %s197, 3
      %p200 = scmp.lt.s32.totalorder %s19, 0
      %s201 = scalar_select %p200, %s19, 0
      %s202 = sadd.s32 %s201, %s199
      %s203 = smul.addr %s202, 4
      %s204 = scalar_lea.vmem %s3, %s203
      %s205 = smul.u32 2, %s18
      %p206 = scmp.lt.s32.totalorder %s205, 3
      %s207 = scalar_select %p206, %s205, 3
      %s208 = smul.addr %s207, 5
      %s209 = smul.addr %s208, 4
      %s210 = scalar_lea.vmem %s0, %s209
      %s211 = smul.u32 2, %s18
      %p212 = scmp.lt.s32.totalorder %s19, 0
      %s213 = scalar_select %p212, %s19, 0
      %s214 = smul.addr %s213, 4
      %s215 = scalar_lea.vmem %s1, %s214
      %p216 = scmp.lt.s32.totalorder %s19, 0
      %s217 = scalar_select %p216, %s19, 0
      %s218 = scalar_lea.vmem %s2, %s217
      %s219 = smul.u32 2, %s18
      %p220 = scmp.lt.s32.totalorder %s219, 3
      %s221 = scalar_select %p220, %s219, 3
      %p222 = scmp.lt.s32.totalorder %s19, 0
      %s223 = scalar_select %p222, %s19, 0
      %s224 = sadd.s32 %s223, %s221
      %s225 = smul.addr %s224, 4
      %s226 = scalar_lea.vmem %s3, %s225
      %s227 = smul.u32 2, %s18
      %v229 = vld [vmem:[%s210] sm:$0xff]
      %v230 = vld [vmem:[%s210 + $0x8] sm:$0xff]
      %v231 = vld [vmem:[%s210 + $0x10] sm:$0xf]
      %v232 = vld [vmem:[%s210 + $0x14] sm:$0xff]
      %v233 = vld [vmem:[%s210 + $0x1c] sm:$0xff]
      %v234 = vld [vmem:[%s210 + $0x24] sm:$0xf]
      %v235 = vld [vmem:[%s215] sm:$0xf]
      %v236 = vld [vmem:[%s215 + $0x4] sm:$0xf]
      %v237 = vld [vmem:[%s215 + $0x8] sm:$0xf]
      %v238 = vld [vmem:[%s215 + $0xc] sm:$0xf]
      %v239 = vld [vmem:[%s215 + $0x10] sm:$0xf]
      %v240 = vld [vmem:[%s215 + $0x14] sm:$0xf]
      %v241 = vld [vmem:[%s215 + $0x18] sm:$0xf]
      %v242 = vld [vmem:[%s215 + $0x1c] sm:$0xf]
      %v243 = vld [vmem:[%s215 + $0x20] sm:$0xf]
      %v244 = vld [vmem:[%s215 + $0x24] sm:$0xf]
      %v245 = vld [vmem:[%s215 + $0x28] sm:$0xf]
      %v246 = vld [vmem:[%s215 + $0x2c] sm:$0xf]
      %v247 = vld [vmem:[%s215 + $0x30] sm:$0xf]
      %v248 = vld [vmem:[%s215 + $0x34] sm:$0xf]
      %v249 = vld [vmem:[%s215 + $0x38] sm:$0xf]
      %v250 = vld [vmem:[%s215 + $0x3c] sm:$0xf]
      %v251 = vld [vmem:[%s215 + $0x40] sm:$0xf]
      %v252 = vld [vmem:[%s215 + $0x44] sm:$0xf]
      %v253 = vld [vmem:[%s215 + $0x48] sm:$0xf]
      %v254 = vld [vmem:[%s215 + $0x4c] sm:$0xf]
      %v255 = vld [vmem:[%s215 + $0x50] sm:$0xf]
      %v256 = vld [vmem:[%s215 + $0x54] sm:$0xf]
      %v257 = vld [vmem:[%s215 + $0x58] sm:$0xf]
      %v258 = vld [vmem:[%s215 + $0x5c] sm:$0xf]
      %v259 = vld [vmem:[%s215 + $0x60] sm:$0xf]
      %v260 = vld [vmem:[%s215 + $0x64] sm:$0xf]
      %v261 = vld [vmem:[%s215 + $0x68] sm:$0xf]
      %v262 = vld [vmem:[%s215 + $0x6c] sm:$0xf]
      %v263 = vld [vmem:[%s215 + $0x70] sm:$0xf]
      %v264 = vld [vmem:[%s215 + $0x74] sm:$0xf]
      %v265 = vld [vmem:[%s215 + $0x78] sm:$0xf]
      %v266 = vld [vmem:[%s215 + $0x7c] sm:$0xf]
      %v267 = vld [vmem:[%s215 + $0x80] sm:$0xf]
      %v268 = vld [vmem:[%s215 + $0x84] sm:$0xf]
      %v269 = vld [vmem:[%s215 + $0x88] sm:$0xf]
      %v270 = vld [vmem:[%s215 + $0x8c] sm:$0xf]
      %v271 = vld [vmem:[%s215 + $0x90] sm:$0xf]
      %v272 = vld [vmem:[%s215 + $0x94] sm:$0xf]
      %v273 = vld [vmem:[%s215 + $0x98] sm:$0xf]
      %v274 = vld [vmem:[%s215 + $0x9c] sm:$0xf]
      %v275 = vld [vmem:[%s215 + $0xa0] sm:$0xf]
      %v276 = vld [vmem:[%s215 + $0xa4] sm:$0xf]
      %v277 = vld [vmem:[%s215 + $0xa8] sm:$0xf]
      %v278 = vld [vmem:[%s215 + $0xac] sm:$0xf]
      %v279 = vld [vmem:[%s215 + $0xb0] sm:$0xf]
      %v280 = vld [vmem:[%s215 + $0xb4] sm:$0xf]
      %v281 = vld [vmem:[%s215 + $0xb8] sm:$0xf]
      %v282 = vld [vmem:[%s215 + $0xbc] sm:$0xf]
      %v283 = vld [vmem:[%s215 + $0xc0] sm:$0xf]
      %v284 = vld [vmem:[%s215 + $0xc4] sm:$0xf]
      %v285 = vld [vmem:[%s215 + $0xc8] sm:$0xf]
      %v286 = vld [vmem:[%s215 + $0xcc] sm:$0xf]
      %v287 = vld [vmem:[%s215 + $0xd0] sm:$0xf]
      %v288 = vld [vmem:[%s215 + $0xd4] sm:$0xf]
      %v289 = vld [vmem:[%s215 + $0xd8] sm:$0xf]
      %v290 = vld [vmem:[%s215 + $0xdc] sm:$0xf]
      %v291 = vld [vmem:[%s215 + $0xe0] sm:$0xf]
      %v292 = vld [vmem:[%s215 + $0xe4] sm:$0xf]
      %v293 = vld [vmem:[%s215 + $0xe8] sm:$0xf]
      %v294 = vld [vmem:[%s215 + $0xec] sm:$0xf]
      %v295 = vld [vmem:[%s215 + $0xf0] sm:$0xf]
      %v296 = vld [vmem:[%s215 + $0xf4] sm:$0xf]
      %v297 = vld [vmem:[%s215 + $0xf8] sm:$0xf]
      %v298 = vld [vmem:[%s215 + $0xfc] sm:$0xf]
      %v299 = vld [vmem:[%s215 + $0x100] sm:$0xf]
      %v300 = vld [vmem:[%s215 + $0x104] sm:$0xf]
      %v301 = vld [vmem:[%s215 + $0x108] sm:$0xf]
      %v302 = vld [vmem:[%s215 + $0x10c] sm:$0xf]
      %v303 = vld [vmem:[%s215 + $0x110] sm:$0xf]
      %v304 = vld [vmem:[%s215 + $0x114] sm:$0xf]
      %v305 = vld [vmem:[%s215 + $0x118] sm:$0xf]
      %v306 = vld [vmem:[%s215 + $0x11c] sm:$0xf]
      %v307 = vld [vmem:[%s218] sm:$0x1]
      %v309 = vperm.slane %v307, 0
      %v317 = vunpack.c.l.b16 %v229
      %v318 = vunpack.c.h.b16 %v229
      %v319 = vunpack.c.l.b16 %v230
      %v320 = vunpack.c.h.b16 %v230
      %v321 = vunpack.c.l.b16 %v231
      %v322 = vunpack.c.l.b16 %v232
      %v323 = vunpack.c.h.b16 %v232
      %v324 = vunpack.c.l.b16 %v233
      %v325 = vunpack.c.h.b16 %v233
      %v326 = vunpack.c.l.b16 %v234
      %v327 = vpack.c.b16 %v322, %v317
      %v328 = vpack.c.b16 %v323, %v318
      %v329 = vpack.c.b16 %v324, %v319
      %v330 = vpack.c.b16 %v325, %v320
      %v331 = vpack.c.b16 %v326, %v321
      %v408 = vunpack.c.l.b16 %v235
      %v409 = vunpack.c.l.b16 %v236
      %v410 = vunpack.c.l.b16 %v237
      %v411 = vunpack.c.l.b16 %v238
      %v412 = vunpack.c.l.b16 %v239
      %v413 = vunpack.c.l.b16 %v240
      %v414 = vunpack.c.l.b16 %v241
      %v415 = vunpack.c.l.b16 %v242
      %v416 = vunpack.c.l.b16 %v243
      %v417 = vunpack.c.l.b16 %v244
      %v418 = vunpack.c.l.b16 %v245
      %v419 = vunpack.c.l.b16 %v246
      %v420 = vunpack.c.l.b16 %v247
      %v421 = vunpack.c.l.b16 %v248
      %v422 = vunpack.c.l.b16 %v249
      %v423 = vunpack.c.l.b16 %v250
      %v424 = vunpack.c.l.b16 %v251
      %v425 = vunpack.c.l.b16 %v252
      %v426 = vunpack.c.l.b16 %v253
      %v427 = vunpack.c.l.b16 %v254
      %v428 = vunpack.c.l.b16 %v255
      %v429 = vunpack.c.l.b16 %v256
      %v430 = vunpack.c.l.b16 %v257
      %v431 = vunpack.c.l.b16 %v258
      %v432 = vunpack.c.l.b16 %v259
      %v433 = vunpack.c.l.b16 %v260
      %v434 = vunpack.c.l.b16 %v261
      %v435 = vunpack.c.l.b16 %v262
      %v436 = vunpack.c.l.b16 %v263
      %v437 = vunpack.c.l.b16 %v264
      %v438 = vunpack.c.l.b16 %v265
      %v439 = vunpack.c.l.b16 %v266
      %v440 = vunpack.c.l.b16 %v267
      %v441 = vunpack.c.l.b16 %v268
      %v442 = vunpack.c.l.b16 %v269
      %v443 = vunpack.c.l.b16 %v270
      %v444 = vunpack.c.l.b16 %v271
      %v445 = vunpack.c.l.b16 %v272
      %v446 = vunpack.c.l.b16 %v273
      %v447 = vunpack.c.l.b16 %v274
      %v448 = vunpack.c.l.b16 %v275
      %v449 = vunpack.c.l.b16 %v276
      %v450 = vunpack.c.l.b16 %v277
      %v451 = vunpack.c.l.b16 %v278
      %v452 = vunpack.c.l.b16 %v279
      %v453 = vunpack.c.l.b16 %v280
      %v454 = vunpack.c.l.b16 %v281
      %v455 = vunpack.c.l.b16 %v282
      %v456 = vunpack.c.l.b16 %v283
      %v457 = vunpack.c.l.b16 %v284
      %v458 = vunpack.c.l.b16 %v285
      %v459 = vunpack.c.l.b16 %v286
      %v460 = vunpack.c.l.b16 %v287
      %v461 = vunpack.c.l.b16 %v288
      %v462 = vunpack.c.l.b16 %v289
      %v463 = vunpack.c.l.b16 %v290
      %v464 = vunpack.c.l.b16 %v291
      %v465 = vunpack.c.l.b16 %v292
      %v466 = vunpack.c.l.b16 %v293
      %v467 = vunpack.c.l.b16 %v294
      %v468 = vunpack.c.l.b16 %v295
      %v469 = vunpack.c.l.b16 %v296
      %v470 = vunpack.c.l.b16 %v297
      %v471 = vunpack.c.l.b16 %v298
      %v472 = vunpack.c.l.b16 %v299
      %v473 = vunpack.c.l.b16 %v300
      %v474 = vunpack.c.l.b16 %v301
      %v475 = vunpack.c.l.b16 %v302
      %v476 = vunpack.c.l.b16 %v303
      %v477 = vunpack.c.l.b16 %v304
      %v478 = vunpack.c.l.b16 %v305
      %v479 = vunpack.c.l.b16 %v306
      %v480 = vpack.c.b16 %v409, %v408
      %v481 = vpack.c.b16 %v411, %v410
      %v482 = vpack.c.b16 %v413, %v412
      %v483 = vpack.c.b16 %v415, %v414
      %v484 = vpack.c.b16 %v417, %v416
      %v485 = vpack.c.b16 %v419, %v418
      %v486 = vpack.c.b16 %v421, %v420
      %v487 = vpack.c.b16 %v423, %v422
      %v488 = vpack.c.b16 %v425, %v424
      %v489 = vpack.c.b16 %v427, %v426
      %v490 = vpack.c.b16 %v429, %v428
      %v491 = vpack.c.b16 %v431, %v430
      %v492 = vpack.c.b16 %v433, %v432
      %v493 = vpack.c.b16 %v435, %v434
      %v494 = vpack.c.b16 %v437, %v436
      %v495 = vpack.c.b16 %v439, %v438
      %v496 = vpack.c.b16 %v441, %v440
      %v497 = vpack.c.b16 %v443, %v442
      %v498 = vpack.c.b16 %v445, %v444
      %v499 = vpack.c.b16 %v447, %v446
      %v500 = vpack.c.b16 %v449, %v448
      %v501 = vpack.c.b16 %v451, %v450
      %v502 = vpack.c.b16 %v453, %v452
      %v503 = vpack.c.b16 %v455, %v454
      %v504 = vpack.c.b16 %v457, %v456
      %v505 = vpack.c.b16 %v459, %v458
      %v506 = vpack.c.b16 %v461, %v460
      %v507 = vpack.c.b16 %v463, %v462
      %v508 = vpack.c.b16 %v465, %v464
      %v509 = vpack.c.b16 %v467, %v466
      %v510 = vpack.c.b16 %v469, %v468
      %v511 = vpack.c.b16 %v471, %v470
      %v512 = vpack.c.b16 %v473, %v472
      %v513 = vpack.c.b16 %v475, %v474
      %v514 = vpack.c.b16 %v477, %v476
      %v515 = vpack.c.b16 %v479, %v478
      %vm552 = vcmask 523264
      %v554 = vsel %vm552, %v331, 0
      %556 = vmatpush.bf16.msra.mxu0 %v487
      %557 = vmatpush.bf16.msra.mxu0 %v486
      %558 = vmatpush.bf16.msra.mxu0 %v485
      %559 = vmatpush.bf16.msra.mxu0 %v484
      %560 = vmatpush.bf16.msra.mxu0 %v483
      %561 = vmatpush.bf16.msra.mxu0 %v482
      %562 = vmatpush.bf16.msra.mxu0 %v481
      %563 = vmatpush.bf16.msra.mxu0 %v480
      %564 = vmatmul.bf16.gmra.mxu0 %v327
      %v565 = vpop.f32.mrf.mxu0
      %v566 = vadd.f32 %v309, %v565
      %v567 = vpop.f32.mrf.mxu0
      %v568 = vadd.f32 %v309, %v567
      %569 = vdwg.mxu0
      %570 = vmatpush.bf16.msra.mxu0 %v495
      %571 = vmatpush.bf16.msra.mxu0 %v494
      %572 = vmatpush.bf16.msra.mxu0 %v493
      %573 = vmatpush.bf16.msra.mxu0 %v492
      %574 = vmatpush.bf16.msra.mxu0 %v491
      %575 = vmatpush.bf16.msra.mxu0 %v490
      %576 = vmatpush.bf16.msra.mxu0 %v489
      %577 = vmatpush.bf16.msra.mxu0 %v488
      %578 = vmatmul.bf16.gmra.mxu0 %v328
      %v579 = vpop.f32.mrf.mxu0
      %v580 = vadd.f32 %v566, %v579
      %v581 = vpop.f32.mrf.mxu0
      %v582 = vadd.f32 %v568, %v581
      %583 = vdwg.mxu0
      %584 = vmatpush.bf16.msra.mxu0 %v503
      %585 = vmatpush.bf16.msra.mxu0 %v502
      %586 = vmatpush.bf16.msra.mxu0 %v501
      %587 = vmatpush.bf16.msra.mxu0 %v500
      %588 = vmatpush.bf16.msra.mxu0 %v499
      %589 = vmatpush.bf16.msra.mxu0 %v498
      %590 = vmatpush.bf16.msra.mxu0 %v497
      %591 = vmatpush.bf16.msra.mxu0 %v496
      %592 = vmatmul.bf16.gmra.mxu0 %v329
      %v593 = vpop.f32.mrf.mxu0
      %v594 = vadd.f32 %v580, %v593
      %v595 = vpop.f32.mrf.mxu0
      %v596 = vadd.f32 %v582, %v595
      %597 = vdwg.mxu0
      %598 = vmatpush.bf16.msra.mxu0 %v511
      %599 = vmatpush.bf16.msra.mxu0 %v510
      %600 = vmatpush.bf16.msra.mxu0 %v509
      %601 = vmatpush.bf16.msra.mxu0 %v508
      %602 = vmatpush.bf16.msra.mxu0 %v507
      %603 = vmatpush.bf16.msra.mxu0 %v506
      %604 = vmatpush.bf16.msra.mxu0 %v505
      %605 = vmatpush.bf16.msra.mxu0 %v504
      %606 = vmatmul.bf16.gmra.mxu0 %v330
      %v607 = vpop.f32.mrf.mxu0
      %v608 = vadd.f32 %v594, %v607
      %v609 = vpop.f32.mrf.mxu0
      %v610 = vadd.f32 %v596, %v609
      %611 = vdwg.mxu0
      %612 = vmatpush.bf16.msra.mxu0 0
      %613 = vmatpush.bf16.msra.mxu0 0
      %614 = vmatpush.bf16.msra.mxu0 0
      %615 = vmatpush.bf16.msra.mxu0 0
      %616 = vmatpush.bf16.msra.mxu0 %v515
      %617 = vmatpush.bf16.msra.mxu0 %v514
      %618 = vmatpush.bf16.msra.mxu0 %v513
      %619 = vmatpush.bf16.msra.mxu0 %v512
      %620 = vmatmul.bf16.gmra.mxu0 %v554
      %v621 = vpop.f32.mrf.mxu0
      %v622 = vadd.f32 %v608, %v621
      %v623 = vpop.f32.mrf.mxu0
      %v624 = vadd.f32 %v610, %v623
      %625 = vdwg.mxu0
      %v626 = vmax.f32 %v622, 0.0
      %v627 = vmax.f32 %v624, 0.0
      %v628 = vpack.c.bf16 %v626, %v626
      %v629 = vpack.c.bf16 %v627, %v627
      %630 = vst [vmem:[%s226] sm:$0xf] %v628
      %631 = vst [vmem:[%s226 + $0x4] sm:$0xf] %v629
      %s632 = smul.u32 2, %s18
      %p633 = scmp.lt.s32.totalorder %s632, 3
      %s634 = scalar_select %p633, %s632, 3
      %p635 = scmp.lt.s32.totalorder %s19, 0
      %s636 = scalar_select %p635, %s19, 0
      %s637 = sadd.s32 %s636, %s634
      %s638 = smul.addr %s637, 4
      %s639 = scalar_lea.vmem %s3, %s638
      // Predicated region
      $region33: #{conv_vae_forward.12} parent=31 // pred_check
        %p640 = pneg %p124
      $region34: #{conv_vae_forward.12} parent=31 // pred_check_branch
        %642 = sbr.rel (%p640) target = $region36
      $region35: #{conv_vae_forward.12} parent=31 // pred_region
        %s643 = smul.u32 2, %s18
      $region36: #{conv_vae_forward.12} parent=31 // pred_fallthru
        _
    $region32: #{conv_vae_forward.12} parent=5 // pred_fallthru
      _
    %p644 = scmp.le.s32.totalorder 2, %s9
    // Predicated region
    $region37: #{conv_vae_forward.12} parent=5 // pred_check
      %p645 = pneg %p644
    $region38: #{conv_vae_forward.12} parent=5 // pred_check_branch
      %647 = sbr.rel (%p645) target = $region40
    $region39: #{conv_vae_forward.12} parent=5 // pred_region
      %s648 = ssub.s32 %s9, 2
      // Predicated region
      $region41: #{conv_vae_forward.12} parent=39 // pred_check
        %p649 = pneg %p130
      $region42: #{conv_vae_forward.12} parent=39 // pred_check_branch
        %651 = sbr.rel (%p649) target = $region44
      $region43: #{conv_vae_forward.12} parent=39 // pred_region
        %s652 = smul.u32 2, %s20
        %p653 = scmp.lt.s32.totalorder %s652, 3
        %s654 = scalar_select %p653, %s652, 3
        %p655 = scmp.lt.s32.totalorder %s21, 0
        %s656 = scalar_select %p655, %s21, 0
        %s657 = sadd.s32 %s656, %s654
        %s658 = smul.addr %s657, 4
        %s659 = scalar_lea.vmem %s3, %s658
      $region44: #{conv_vae_forward.12} parent=39 // pred_fallthru
        _
    $region40: #{conv_vae_forward.12} parent=5 // pred_fallthru
      _
  $region6: #{conv_vae_forward.12} parent=0 // loop_footer
    %s13 = sadd.s32 1, %s9
  $region7: #{conv_vae_forward.12} parent=0 // loop_footer_branch
    %8 = sbr.rel target = $region3
  $region8: #{conv_vae_forward.12} parent=0 // loop_exit
    _

// kernel: conv_vae_forward.13
$region0: #{conv_vae_forward.13}
  #allocation0 [shape = 'u32[]', space=smem, size = 0x4, offset = 0x4, fixed_abs, tag = 'smem constant byte address 0x4 - core index']
  #allocation1 [shape = 'u32[72,128]{1,0:T(1,128)}', space=vmem, size = 0x9000, scoped, tag = 'internal scratch']
  %s0 = inlined_call_operand.vmem [shape: bf16[128,288], index: 0, kind: input, shape index: {}]
  %s1 = inlined_call_operand.vmem [shape: bf16[288,128], index: 1, kind: input, shape index: {}]
  %s2 = inlined_call_operand.vmem [shape: f32[1,128], index: 2, kind: input, shape index: {}]
  %s3 = inlined_call_operand.vmem [shape: f32[128,128], index: 3, kind: output, shape index: {}]
  %s4 = sld [smem:[#allocation0]]
  $region45: #{conv_vae_forward.13} parent=0
    _
  %s6 = ssub.s32 1, %s4
  %s7 = scalar_select 0, %s6, %s4
  loop: start=0, step=1, limit=4
  $region2: #{conv_vae_forward.13} parent=0 // loop_pre_header
    _
  $region3: #{conv_vae_forward.13} parent=0 // loop_header
    %s9 = sphi 0, %s13
    %p10 = scmp.ge.s32.totalorder %s9, 4
    %s16 = sphi 0, %s28
    %s17 = sphi 0, %s24
    %s18 = sphi 0, %s16
    %s19 = sphi 0, %s17
    %s20 = sphi 0, %s18
    %s21 = sphi 0, %s19
    %s31 = sphi 0, %s33
    %s34 = sphi 0, %s31
    %s35 = sphi 0, %s34
    %s51 = sphi 0, %s35
    %s57 = sphi 0, %s59
    %s60 = sphi 0, %s57
    %s61 = sphi 0, %s60
    %s77 = sphi 0, %s61
    %s83 = sphi 0, %s85
    %s86 = sphi 0, %s83
    %s87 = sphi 0, %s86
    %s103 = sphi 0, %s87
    %s111 = sphi 0, %s113
    %s114 = sphi 0, %s111
    %s115 = sphi 0, %s114
    %s131 = sphi 0, %s115
  $region4: #{conv_vae_forward.13} parent=0 // loop_header_branch
    %12 = sbr.rel (%p10) target = $region8
  $region5: #{conv_vae_forward.13} parent=0 // loop_body
    %s14 = ssub.s32 %s9, 1
    %s15 = ssub.s32 %s9, 2
    %s22 = sadd.s32 1, %s17
    %p23 = scmp.ge.s32.totalorder %s22, 1
    %s24 = scalar_select %p23, 0, %s22
    %s25 = sadd.s32 1, %s16
    %s26 = scalar_select %p23, %s25, %s16
    %p27 = scmp.ge.s32.totalorder %s26, 2
    %s28 = scalar_select %p27, 0, %s26
    %s29 = ssub.s32 %s16, %s28
    %p30 = scmp.eq.s32.totalorder %s29, 0
    %s32 = sadd.s32 %s31, 1
    %s33 = scalar_select %p30, %s31, %s32
    %p36 = pneg %p30
    %p37 = scmp.eq.s32.totalorder %s9, 1
    %p38 = por %p36, %p37
    %p39 = scmp.ne.s32.totalorder %s31, %s34
    %p40 = scmp.eq.s32.totalorder %s9, 0
    %p41 = por %p39, %p40
    %p42 = scmp.ne.s32.totalorder %s31, %s34
    %p43 = scmp.eq.s32.totalorder %s14, 1
    %p44 = por %p42, %p43
    %p45 = scmp.ne.s32.totalorder %s34, %s35
    %p46 = scmp.eq.s32.totalorder %s14, 0
    %p47 = por %p45, %p46
    %p48 = scmp.ne.s32.totalorder %s34, %s35
    %p49 = scmp.eq.s32.totalorder %s15, 1
    %p50 = por %p48, %p49
    %p52 = scmp.ne.s32.totalorder %s35, %s51
    %p53 = scmp.eq.s32.totalorder %s15, 0
    %p54 = por %p52, %p53
    %s55 = ssub.s32 %s17, %s24
    %p56 = scmp.eq.s32.totalorder %s55, 0
    %s58 = sadd.s32 %s57, 1
    %s59 = scalar_select %p56, %s57, %s58
    %p62 = pneg %p56
    %p63 = scmp.eq.s32.totalorder %s9, 1
    %p64 = por %p62, %p63
    %p65 = scmp.ne.s32.totalorder %s57, %s60
    %p66 = scmp.eq.s32.totalorder %s9, 0
    %p67 = por %p65, %p66
    %p68 = scmp.ne.s32.totalorder %s57, %s60
    %p69 = scmp.eq.s32.totalorder %s14, 1
    %p70 = por %p68, %p69
    %p71 = scmp.ne.s32.totalorder %s60, %s61
    %p72 = scmp.eq.s32.totalorder %s14, 0
    %p73 = por %p71, %p72
    %p74 = scmp.ne.s32.totalorder %s60, %s61
    %p75 = scmp.eq.s32.totalorder %s15, 1
    %p76 = por %p74, %p75
    %p78 = scmp.ne.s32.totalorder %s61, %s77
    %p79 = scmp.eq.s32.totalorder %s15, 0
    %p80 = por %p78, %p79
    %s81 = ssub.s32 %s17, %s24
    %p82 = scmp.eq.s32.totalorder %s81, 0
    %s84 = sadd.s32 %s83, 1
    %s85 = scalar_select %p82, %s83, %s84
    %p88 = pneg %p82
    %p89 = scmp.eq.s32.totalorder %s9, 1
    %p90 = por %p88, %p89
    %p91 = scmp.ne.s32.totalorder %s83, %s86
    %p92 = scmp.eq.s32.totalorder %s9, 0
    %p93 = por %p91, %p92
    %p94 = scmp.ne.s32.totalorder %s83, %s86
    %p95 = scmp.eq.s32.totalorder %s14, 1
    %p96 = por %p94, %p95
    %p97 = scmp.ne.s32.totalorder %s86, %s87
    %p98 = scmp.eq.s32.totalorder %s14, 0
    %p99 = por %p97, %p98
    %p100 = scmp.ne.s32.totalorder %s86, %s87
    %p101 = scmp.eq.s32.totalorder %s15, 1
    %p102 = por %p100, %p101
    %p104 = scmp.ne.s32.totalorder %s87, %s103
    %p105 = scmp.eq.s32.totalorder %s15, 0
    %p106 = por %p104, %p105
    %s107 = ssub.s32 %s16, %s28
    %s108 = ssub.s32 %s17, %s24
    %s109 = sor.u32 %s107, %s108
    %p110 = scmp.eq.s32.totalorder %s109, 0
    %s112 = sadd.s32 %s111, 1
    %s113 = scalar_select %p110, %s111, %s112
    %p116 = pneg %p110
    %p117 = scmp.eq.s32.totalorder %s9, 1
    %p118 = por %p116, %p117
    %p119 = scmp.ne.s32.totalorder %s111, %s114
    %p120 = scmp.eq.s32.totalorder %s9, 0
    %p121 = por %p119, %p120
    %p122 = scmp.ne.s32.totalorder %s111, %s114
    %p123 = scmp.eq.s32.totalorder %s14, 1
    %p124 = por %p122, %p123
    %p125 = scmp.ne.s32.totalorder %s114, %s115
    %p126 = scmp.eq.s32.totalorder %s14, 0
    %p127 = por %p125, %p126
    %p128 = scmp.ne.s32.totalorder %s114, %s115
    %p129 = scmp.eq.s32.totalorder %s15, 1
    %p130 = por %p128, %p129
    %p132 = scmp.ne.s32.totalorder %s115, %s131
    %p133 = scmp.eq.s32.totalorder %s15, 0
    %p134 = por %p132, %p133
    %p135 = scmp.le.s32.totalorder 1, %s9
    %p136 = scmp.lt.s32.totalorder %s9, 3
    %p137 = pnand %p135, %p136
    %p138 = pneg %p137
    // Predicated region
    $region9: #{conv_vae_forward.13} parent=5 // pred_check
      _
    $region10: #{conv_vae_forward.13} parent=5 // pred_check_branch
      %140 = sbr.rel (%p137) target = $region12
    $region11: #{conv_vae_forward.13} parent=5 // pred_region
      %s141 = ssub.s32 %s9, 1
      // Predicated region
      $region13: #{conv_vae_forward.13} parent=11 // pred_check
        %p142 = pneg %p73
      $region14: #{conv_vae_forward.13} parent=11 // pred_check_branch
        %144 = sbr.rel (%p142) target = $region16
      $region15: #{conv_vae_forward.13} parent=11 // pred_region
        %p145 = scmp.lt.s32.totalorder %s19, 0
        %s146 = scalar_select %p145, %s19, 0
        %s147 = smul.addr %s146, 4
        %s148 = scalar_lea.vmem %s1, %s147
      $region16: #{conv_vae_forward.13} parent=11 // pred_fallthru
        _
      // Predicated region
      $region17: #{conv_vae_forward.13} parent=11 // pred_check
        %p149 = pneg %p99
      $region18: #{conv_vae_forward.13} parent=11 // pred_check_branch
        %151 = sbr.rel (%p149) target = $region20
      $region19: #{conv_vae_forward.13} parent=11 // pred_region
        %p152 = scmp.lt.s32.totalorder %s19, 0
        %s153 = scalar_select %p152, %s19, 0
        %s154 = scalar_lea.vmem %s2, %s153
      $region20: #{conv_vae_forward.13} parent=11 // pred_fallthru
        _
    $region12: #{conv_vae_forward.13} parent=5 // pred_fallthru
      _
    %p155 = scmp.lt.s32.totalorder %s9, 2
    // Predicated region
    $region21: #{conv_vae_forward.13} parent=5 // pred_check
      %p156 = pneg %p155
    $region22: #{conv_vae_forward.13} parent=5 // pred_check_branch
      %158 = sbr.rel (%p156) target = $region24
    $region23: #{conv_vae_forward.13} parent=5 // pred_region
      // Predicated region
      $region25: #{conv_vae_forward.13} parent=23 // pred_check
        %p159 = pneg %p41
      $region26: #{conv_vae_forward.13} parent=23 // pred_check_branch
        %161 = sbr.rel (%p159) target = $region28
      $region27: #{conv_vae_forward.13} parent=23 // pred_region
        %s162 = smul.u32 8, %s16
        %p163 = scmp.lt.s32.totalorder %s162, 15
        %s164 = scalar_select %p163, %s162, 15
        %s165 = smul.addr %s164, 3
        %s166 = smul.addr %s165, 4
        %s167 = scalar_lea.vmem %s0, %s166
        %s168 = smul.u32 8, %s16
      $region28: #{conv_vae_forward.13} parent=23 // pred_fallthru
        _
    $region24: #{conv_vae_forward.13} parent=5 // pred_fallthru
      _
    %p169 = scmp.le.s32.totalorder 1, %s9
    %p170 = scmp.lt.s32.totalorder %s9, 3
    %p171 = pnand %p169, %p170
    %p172 = pneg %p171
    // Predicated region
    $region29: #{conv_vae_forward.13} parent=5 // pred_check
      _
    $region30: #{conv_vae_forward.13} parent=5 // pred_check_branch
      %174 = sbr.rel (%p171) target = $region32
    $region31: #{conv_vae_forward.13} parent=5 // pred_region
      %s175 = ssub.s32 %s9, 1
      %s176 = smul.u32 8, %s18
      %p177 = scmp.lt.s32.totalorder %s176, 15
      %s178 = scalar_select %p177, %s176, 15
      %s179 = smul.addr %s178, 3
      %s180 = smul.addr %s179, 4
      %s181 = scalar_lea.vmem %s0, %s180
      %p182 = pneg %p47
      %p183 = pneg %p44
      %p184 = scmp.lt.s32.totalorder %s19, 0
      %s185 = scalar_select %p184, %s19, 0
      %s186 = smul.addr %s185, 4
      %s187 = scalar_lea.vmem %s1, %s186
      %p188 = pneg %p73
      %p189 = pneg %p70
      %p190 = scmp.lt.s32.totalorder %s19, 0
      %s191 = scalar_select %p190, %s19, 0
      %s192 = scalar_lea.vmem %s2, %s191
      %p193 = pneg %p99
      %p194 = pneg %p96
      %p195 = pneg %p127
      %p196 = pneg %p124
      %s197 = smul.u32 8, %s18
      %p198 = scmp.lt.s32.totalorder %s197, 15
      %s199 = scalar_select %p198, %s197, 15
      %p200 = scmp.lt.s32.totalorder %s19, 0
      %s201 = scalar_select %p200, %s19, 0
      %s202 = sadd.s32 %s201, %s199
      %s203 = smul.addr %s202, 8
      %s204 = scalar_lea.vmem %s3, %s203
      %s205 = smul.u32 8, %s18
      %p206 = scmp.lt.s32.totalorder %s205, 15
      %s207 = scalar_select %p206, %s205, 15
      %s208 = smul.addr %s207, 3
      %s209 = smul.addr %s208, 4
      %s210 = scalar_lea.vmem %s0, %s209
      %s211 = smul.u32 8, %s18
      %p212 = scmp.lt.s32.totalorder %s19, 0
      %s213 = scalar_select %p212, %s19, 0
      %s214 = smul.addr %s213, 4
      %s215 = scalar_lea.vmem %s1, %s214
      %p216 = scmp.lt.s32.totalorder %s19, 0
      %s217 = scalar_select %p216, %s19, 0
      %s218 = scalar_lea.vmem %s2, %s217
      %s219 = smul.u32 8, %s18
      %p220 = scmp.lt.s32.totalorder %s219, 15
      %s221 = scalar_select %p220, %s219, 15
      %p222 = scmp.lt.s32.totalorder %s19, 0
      %s223 = scalar_select %p222, %s19, 0
      %s224 = sadd.s32 %s223, %s221
      %s225 = smul.addr %s224, 8
      %s226 = scalar_lea.vmem %s3, %s225
      %s227 = smul.u32 8, %s18
      %v229 = vld [vmem:[%s210] sm:$0xff]
      %v230 = vld [vmem:[%s210 + $0x8] sm:$0xf]
      %v231 = vld [vmem:[%s210 + $0xc] sm:$0xff]
      %v232 = vld [vmem:[%s210 + $0x14] sm:$0xf]
      %v233 = vld [vmem:[%s210 + $0x18] sm:$0xff]
      %v234 = vld [vmem:[%s210 + $0x20] sm:$0xf]
      %v235 = vld [vmem:[%s210 + $0x24] sm:$0xff]
      %v236 = vld [vmem:[%s210 + $0x2c] sm:$0xf]
      %v237 = vld [vmem:[%s210 + $0x30] sm:$0xff]
      %v238 = vld [vmem:[%s210 + $0x38] sm:$0xf]
      %v239 = vld [vmem:[%s210 + $0x3c] sm:$0xff]
      %v240 = vld [vmem:[%s210 + $0x44] sm:$0xf]
      %v241 = vld [vmem:[%s210 + $0x48] sm:$0xff]
      %v242 = vld [vmem:[%s210 + $0x50] sm:$0xf]
      %v243 = vld [vmem:[%s210 + $0x54] sm:$0xff]
      %v244 = vld [vmem:[%s210 + $0x5c] sm:$0xf]
      %v245 = vld [vmem:[%s215] sm:$0xf]
      %v246 = vld [vmem:[%s215 + $0x4] sm:$0xf]
      %v247 = vld [vmem:[%s215 + $0x8] sm:$0xf]
      %v248 = vld [vmem:[%s215 + $0xc] sm:$0xf]
      %v249 = vld [vmem:[%s215 + $0x10] sm:$0xf]
      %v250 = vld [vmem:[%s215 + $0x14] sm:$0xf]
      %v251 = vld [vmem:[%s215 + $0x18] sm:$0xf]
      %v252 = vld [vmem:[%s215 + $0x1c] sm:$0xf]
      %v253 = vld [vmem:[%s215 + $0x20] sm:$0xf]
      %v254 = vld [vmem:[%s215 + $0x24] sm:$0xf]
      %v255 = vld [vmem:[%s215 + $0x28] sm:$0xf]
      %v256 = vld [vmem:[%s215 + $0x2c] sm:$0xf]
      %v257 = vld [vmem:[%s215 + $0x30] sm:$0xf]
      %v258 = vld [vmem:[%s215 + $0x34] sm:$0xf]
      %v259 = vld [vmem:[%s215 + $0x38] sm:$0xf]
      %v260 = vld [vmem:[%s215 + $0x3c] sm:$0xf]
      %v261 = vld [vmem:[%s215 + $0x40] sm:$0xf]
      %v262 = vld [vmem:[%s215 + $0x44] sm:$0xf]
      %v263 = vld [vmem:[%s215 + $0x48] sm:$0xf]
      %v264 = vld [vmem:[%s215 + $0x4c] sm:$0xf]
      %v265 = vld [vmem:[%s215 + $0x50] sm:$0xf]
      %v266 = vld [vmem:[%s215 + $0x54] sm:$0xf]
      %v267 = vld [vmem:[%s215 + $0x58] sm:$0xf]
      %v268 = vld [vmem:[%s215 + $0x5c] sm:$0xf]
      %v269 = vld [vmem:[%s215 + $0x60] sm:$0xf]
      %v270 = vld [vmem:[%s215 + $0x64] sm:$0xf]
      %v271 = vld [vmem:[%s215 + $0x68] sm:$0xf]
      %v272 = vld [vmem:[%s215 + $0x6c] sm:$0xf]
      %v273 = vld [vmem:[%s215 + $0x70] sm:$0xf]
      %v274 = vld [vmem:[%s215 + $0x74] sm:$0xf]
      %v275 = vld [vmem:[%s215 + $0x78] sm:$0xf]
      %v276 = vld [vmem:[%s215 + $0x7c] sm:$0xf]
      %v277 = vld [vmem:[%s215 + $0x80] sm:$0xf]
      %v278 = vld [vmem:[%s215 + $0x84] sm:$0xf]
      %v279 = vld [vmem:[%s215 + $0x88] sm:$0xf]
      %v280 = vld [vmem:[%s215 + $0x8c] sm:$0xf]
      %v281 = vld [vmem:[%s218] sm:$0x1]
      %v283 = vperm.slane %v281, 0
      %v301 = vunpack.c.l.b16 %v229
      %v302 = vunpack.c.h.b16 %v229
      %v303 = vunpack.c.l.b16 %v230
      %v304 = vunpack.c.l.b16 %v231
      %v305 = vunpack.c.h.b16 %v231
      %v306 = vunpack.c.l.b16 %v232
      %v307 = vunpack.c.l.b16 %v233
      %v308 = vunpack.c.h.b16 %v233
      %v309 = vunpack.c.l.b16 %v234
      %v310 = vunpack.c.l.b16 %v235
      %v311 = vunpack.c.h.b16 %v235
      %v312 = vunpack.c.l.b16 %v236
      %v313 = vunpack.c.l.b16 %v237
      %v314 = vunpack.c.h.b16 %v237
      %v315 = vunpack.c.l.b16 %v238
      %v316 = vunpack.c.l.b16 %v239
      %v317 = vunpack.c.h.b16 %v239
      %v318 = vunpack.c.l.b16 %v240
      %v319 = vunpack.c.l.b16 %v241
      %v320 = vunpack.c.h.b16 %v241
      %v321 = vunpack.c.l.b16 %v242
      %v322 = vunpack.c.l.b16 %v243
      %v323 = vunpack.c.h.b16 %v243
      %v324 = vunpack.c.l.b16 %v244
      %v325 = vpack.c.b16 %v304, %v301
      %v326 = vpack.c.b16 %v305, %v302
      %v327 = vpack.c.b16 %v306, %v303
      %v328 = vpack.c.b16 %v310, %v307
      %v329 = vpack.c.b16 %v311, %v308
      %v330 = vpack.c.b16 %v312, %v309
      %v331 = vpack.c.b16 %v316, %v313
      %v332 = vpack.c.b16 %v317, %v314
      %v333 = vpack.c.b16 %v318, %v315
      %v334 = vpack.c.b16 %v322, %v319
      %v335 = vpack.c.b16 %v323, %v320
      %v336 = vpack.c.b16 %v324, %v321
      %v381 = vunpack.c.l.b16 %v245
      %v382 = vunpack.c.l.b16 %v246
      %v383 = vunpack.c.l.b16 %v247
      %v384 = vunpack.c.l.b16 %v248
      %v385 = vunpack.c.l.b16 %v249
      %v386 = vunpack.c.l.b16 %v250
      %v387 = vunpack.c.l.b16 %v251
      %v388 = vunpack.c.l.b16 %v252
      %v389 = vunpack.c.l.b16 %v253
      %v390 = vunpack.c.l.b16 %v254
      %v391 = vunpack.c.l.b16 %v255
      %v392 = vunpack.c.l.b16 %v256
      %v393 = vunpack.c.l.b16 %v257
      %v394 = vunpack.c.l.b16 %v258
      %v395 = vunpack.c.l.b16 %v259
      %v396 = vunpack.c.l.b16 %v260
      %v397 = vunpack.c.l.b16 %v261
      %v398 = vunpack.c.l.b16 %v262
      %v399 = vunpack.c.l.b16 %v263
      %v400 = vunpack.c.l.b16 %v264
      %v401 = vunpack.c.l.b16 %v265
      %v402 = vunpack.c.l.b16 %v266
      %v403 = vunpack.c.l.b16 %v267
      %v404 = vunpack.c.l.b16 %v268
      %v405 = vunpack.c.l.b16 %v269
      %v406 = vunpack.c.l.b16 %v270
      %v407 = vunpack.c.l.b16 %v271
      %v408 = vunpack.c.l.b16 %v272
      %v409 = vunpack.c.l.b16 %v273
      %v410 = vunpack.c.l.b16 %v274
      %v411 = vunpack.c.l.b16 %v275
      %v412 = vunpack.c.l.b16 %v276
      %v413 = vunpack.c.l.b16 %v277
      %v414 = vunpack.c.l.b16 %v278
      %v415 = vunpack.c.l.b16 %v279
      %v416 = vunpack.c.l.b16 %v280
      %v417 = vpack.c.b16 %v382, %v381
      %v418 = vpack.c.b16 %v384, %v383
      %v419 = vpack.c.b16 %v386, %v385
      %v420 = vpack.c.b16 %v388, %v387
      %v421 = vpack.c.b16 %v390, %v389
      %v422 = vpack.c.b16 %v392, %v391
      %v423 = vpack.c.b16 %v394, %v393
      %v424 = vpack.c.b16 %v396, %v395
      %v425 = vpack.c.b16 %v398, %v397
      %v426 = vpack.c.b16 %v400, %v399
      %v427 = vpack.c.b16 %v402, %v401
      %v428 = vpack.c.b16 %v404, %v403
      %v429 = vpack.c.b16 %v406, %v405
      %v430 = vpack.c.b16 %v408, %v407
      %v431 = vpack.c.b16 %v410, %v409
      %v432 = vpack.c.b16 %v412, %v411
      %v433 = vpack.c.b16 %v414, %v413
      %v434 = vpack.c.b16 %v416, %v415
      %vm453 = vcmask 261120
      %v455 = vsel %vm453, %v327, 0
      %v458 = vsel %vm453, %v330, 0
      %v461 = vsel %vm453, %v333, 0
      %v464 = vsel %vm453, %v336, 0
      %466 = vmatpush.bf16.msra.mxu0 %v424
      %467 = vmatpush.bf16.msra.mxu0 %v423
      %468 = vmatpush.bf16.msra.mxu0 %v422
      %469 = vmatpush.bf16.msra.mxu0 %v421
      %470 = vmatpush.bf16.msra.mxu0 %v420
      %471 = vmatpush.bf16.msra.mxu0 %v419
      %472 = vmatpush.bf16.msra.mxu0 %v418
      %473 = vmatpush.bf16.msra.mxu0 %v417
      %474 = vmatmul.bf16.gmra.mxu0 %v325
      %v475 = vpop.f32.mrf.mxu0
      %v476 = vadd.f32 %v283, %v475
      %v477 = vpop.f32.mrf.mxu0
      %v478 = vadd.f32 %v283, %v477
      %479 = vmatmul.bf16.gmra.mxu0 %v328
      %v480 = vpop.f32.mrf.mxu0
      %v481 = vadd.f32 %v283, %v480
      %v482 = vpop.f32.mrf.mxu0
      %v483 = vadd.f32 %v283, %v482
      %484 = vmatmul.bf16.gmra.mxu0 %v331
      %v485 = vpop.f32.mrf.mxu0
      %v486 = vadd.f32 %v283, %v485
      %v487 = vpop.f32.mrf.mxu0
      %v488 = vadd.f32 %v283, %v487
      %489 = vmatmul.bf16.gmra.mxu0 %v334
      %v490 = vpop.f32.mrf.mxu0
      %v491 = vadd.f32 %v283, %v490
      %v492 = vpop.f32.mrf.mxu0
      %v493 = vadd.f32 %v283, %v492
      %494 = vdwg.mxu0
      %495 = vmatpush.bf16.msra.mxu0 %v432
      %496 = vmatpush.bf16.msra.mxu0 %v431
      %497 = vmatpush.bf16.msra.mxu0 %v430
      %498 = vmatpush.bf16.msra.mxu0 %v429
      %499 = vmatpush.bf16.msra.mxu0 %v428
      %500 = vmatpush.bf16.msra.mxu0 %v427
      %501 = vmatpush.bf16.msra.mxu0 %v426
      %502 = vmatpush.bf16.msra.mxu0 %v425
      %503 = vmatmul.bf16.gmra.mxu0 %v326
      %v504 = vpop.f32.mrf.mxu0
      %v505 = vadd.f32 %v476, %v504
      %v506 = vpop.f32.mrf.mxu0
      %v507 = vadd.f32 %v478, %v506
      %508 = vmatmul.bf16.gmra.mxu0 %v329
      %v509 = vpop.f32.mrf.mxu0
      %v510 = vadd.f32 %v481, %v509
      %v511 = vpop.f32.mrf.mxu0
      %v512 = vadd.f32 %v483, %v511
      %513 = vmatmul.bf16.gmra.mxu0 %v332
      %v514 = vpop.f32.mrf.mxu0
      %v515 = vadd.f32 %v486, %v514
      %v516 = vpop.f32.mrf.mxu0
      %v517 = vadd.f32 %v488, %v516
      %518 = vmatmul.bf16.gmra.mxu0 %v335
      %v519 = vpop.f32.mrf.mxu0
      %v520 = vadd.f32 %v491, %v519
      %v521 = vpop.f32.mrf.mxu0
      %v522 = vadd.f32 %v493, %v521
      %523 = vdwg.mxu0
      %524 = vmatpush.bf16.msra.mxu0 0
      %525 = vmatpush.bf16.msra.mxu0 0
      %526 = vmatpush.bf16.msra.mxu0 0
      %527 = vmatpush.bf16.msra.mxu0 0
      %528 = vmatpush.bf16.msra.mxu0 0
      %529 = vmatpush.bf16.msra.mxu0 0
      %530 = vmatpush.bf16.msra.mxu0 %v434
      %531 = vmatpush.bf16.msra.mxu0 %v433
      %532 = vmatmul.bf16.gmra.mxu0 %v455
      %v533 = vpop.f32.mrf.mxu0
      %v534 = vadd.f32 %v505, %v533
      %v535 = vpop.f32.mrf.mxu0
      %v536 = vadd.f32 %v507, %v535
      %537 = vmatmul.bf16.gmra.mxu0 %v458
      %v538 = vpop.f32.mrf.mxu0
      %v539 = vadd.f32 %v510, %v538
      %v540 = vpop.f32.mrf.mxu0
      %v541 = vadd.f32 %v512, %v540
      %542 = vmatmul.bf16.gmra.mxu0 %v461
      %v543 = vpop.f32.mrf.mxu0
      %v544 = vadd.f32 %v515, %v543
      %v545 = vpop.f32.mrf.mxu0
      %v546 = vadd.f32 %v517, %v545
      %547 = vmatmul.bf16.gmra.mxu0 %v464
      %v548 = vpop.f32.mrf.mxu0
      %v549 = vadd.f32 %v520, %v548
      %v550 = vpop.f32.mrf.mxu0
      %v551 = vadd.f32 %v522, %v550
      %552 = vdwg.mxu0
      %v553 = vxor.u32 %v534, 2147483648
      %v554 = vxor.u32 %v536, 2147483648
      %v555 = vxor.u32 %v539, 2147483648
      %v556 = vxor.u32 %v541, 2147483648
      %v557 = vxor.u32 %v544, 2147483648
      %v558 = vxor.u32 %v546, 2147483648
      %v559 = vxor.u32 %v549, 2147483648
      %v560 = vxor.u32 %v551, 2147483648
      %v561 = vmul.f32 %v553, 1.442695
      %v562 = vpow.pop %v561
      %v563 = vmul.f32 %v554, 1.442695
      %v564 = vpow.pop %v563
      %v565 = vmul.f32 %v555, 1.442695
      %v566 = vpow.pop %v565
      %v567 = vmul.f32 %v556, 1.442695
      %v568 = vpow.pop %v567
      %v569 = vmul.f32 %v557, 1.442695
      %v570 = vpow.pop %v569
      %v571 = vmul.f32 %v558, 1.442695
      %v572 = vpow.pop %v571
      %v573 = vmul.f32 %v559, 1.442695
      %v574 = vpow.pop %v573
      %v575 = vmul.f32 %v560, 1.442695
      %v576 = vpow.pop %v575
      %v577 = vadd.f32 %v562, 1.0
      %v578 = vadd.f32 %v564, 1.0
      %v579 = vadd.f32 %v566, 1.0
      %v580 = vadd.f32 %v568, 1.0
      %v581 = vadd.f32 %v570, 1.0
      %v582 = vadd.f32 %v572, 1.0
      %v583 = vadd.f32 %v574, 1.0
      %v584 = vadd.f32 %v576, 1.0
      %v585 = vrcp.pop %v577
      %v586 = vmul.f32 %v577, %v585
      %v587 = vsub.f32 1.0, %v586
      %v588 = vmul.f32 %v585, %v587
      %v589 = vadd.f32 %v585, %v588
      %vm590 = vweird.f32 %v577
      %vm591 = vweird.f32 %v585
      %vm592 = vmor %vm590, %vm591
      %v593 = vsel %vm592, %v585, %v589
      %v594 = vand.u32 2147483647, %v577
      %vm595 = vcmp.eq.f32.partialorder %v594, 8.507059e+37
      %v596 = vand.u32 %v577, 2147483648
      %v597 = vor.u32 1.1754944e-38, %v596
      %v598 = vsel %vm595, %v597, %v593
      %v599 = vmul.f32 1.0, %v598
      %v600 = vrcp.pop %v578
      %v601 = vmul.f32 %v578, %v600
      %v602 = vsub.f32 1.0, %v601
      %v603 = vmul.f32 %v600, %v602
      %v604 = vadd.f32 %v600, %v603
      %vm605 = vweird.f32 %v578
      %vm606 = vweird.f32 %v600
      %vm607 = vmor %vm605, %vm606
      %v608 = vsel %vm607, %v600, %v604
      %v609 = vand.u32 2147483647, %v578
      %vm610 = vcmp.eq.f32.partialorder %v609, 8.507059e+37
      %v611 = vand.u32 %v578, 2147483648
      %v612 = vor.u32 1.1754944e-38, %v611
      %v613 = vsel %vm610, %v612, %v608
      %v614 = vmul.f32 1.0, %v613
      %v615 = vrcp.pop %v579
      %v616 = vmul.f32 %v579, %v615
      %v617 = vsub.f32 1.0, %v616
      %v618 = vmul.f32 %v615, %v617
      %v619 = vadd.f32 %v615, %v618
      %vm620 = vweird.f32 %v579
      %vm621 = vweird.f32 %v615
      %vm622 = vmor %vm620, %vm621
      %v623 = vsel %vm622, %v615, %v619
      %v624 = vand.u32 2147483647, %v579
      %vm625 = vcmp.eq.f32.partialorder %v624, 8.507059e+37
      %v626 = vand.u32 %v579, 2147483648
      %v627 = vor.u32 1.1754944e-38, %v626
      %v628 = vsel %vm625, %v627, %v623
      %v629 = vmul.f32 1.0, %v628
      %v630 = vrcp.pop %v580
      %v631 = vmul.f32 %v580, %v630
      %v632 = vsub.f32 1.0, %v631
      %v633 = vmul.f32 %v630, %v632
      %v634 = vadd.f32 %v630, %v633
      %vm635 = vweird.f32 %v580
      %vm636 = vweird.f32 %v630
      %vm637 = vmor %vm635, %vm636
      %v638 = vsel %vm637, %v630, %v634
      %v639 = vand.u32 2147483647, %v580
      %vm640 = vcmp.eq.f32.partialorder %v639, 8.507059e+37
      %v641 = vand.u32 %v580, 2147483648
      %v642 = vor.u32 1.1754944e-38, %v641
      %v643 = vsel %vm640, %v642, %v638
      %v644 = vmul.f32 1.0, %v643
      %v645 = vrcp.pop %v581
      %v646 = vmul.f32 %v581, %v645
      %v647 = vsub.f32 1.0, %v646
      %v648 = vmul.f32 %v645, %v647
      %v649 = vadd.f32 %v645, %v648
      %vm650 = vweird.f32 %v581
      %vm651 = vweird.f32 %v645
      %vm652 = vmor %vm650, %vm651
      %v653 = vsel %vm652, %v645, %v649
      %v654 = vand.u32 2147483647, %v581
      %vm655 = vcmp.eq.f32.partialorder %v654, 8.507059e+37
      %v656 = vand.u32 %v581, 2147483648
      %v657 = vor.u32 1.1754944e-38, %v656
      %v658 = vsel %vm655, %v657, %v653
      %v659 = vmul.f32 1.0, %v658
      %v660 = vrcp.pop %v582
      %v661 = vmul.f32 %v582, %v660
      %v662 = vsub.f32 1.0, %v661
      %v663 = vmul.f32 %v660, %v662
      %v664 = vadd.f32 %v660, %v663
      %vm665 = vweird.f32 %v582
      %vm666 = vweird.f32 %v660
      %vm667 = vmor %vm665, %vm666
      %v668 = vsel %vm667, %v660, %v664
      %v669 = vand.u32 2147483647, %v582
      %vm670 = vcmp.eq.f32.partialorder %v669, 8.507059e+37
      %v671 = vand.u32 %v582, 2147483648
      %v672 = vor.u32 1.1754944e-38, %v671
      %v673 = vsel %vm670, %v672, %v668
      %v674 = vmul.f32 1.0, %v673
      %v675 = vrcp.pop %v583
      %v676 = vmul.f32 %v583, %v675
      %v677 = vsub.f32 1.0, %v676
      %v678 = vmul.f32 %v675, %v677
      %v679 = vadd.f32 %v675, %v678
      %vm680 = vweird.f32 %v583
      %vm681 = vweird.f32 %v675
      %vm682 = vmor %vm680, %vm681
      %v683 = vsel %vm682, %v675, %v679
      %v684 = vand.u32 2147483647, %v583
      %vm685 = vcmp.eq.f32.partialorder %v684, 8.507059e+37
      %v686 = vand.u32 %v583, 2147483648
      %v687 = vor.u32 1.1754944e-38, %v686
      %v688 = vsel %vm685, %v687, %v683
      %v689 = vmul.f32 1.0, %v688
      %v690 = vrcp.pop %v584
      %v691 = vmul.f32 %v584, %v690
      %v692 = vsub.f32 1.0, %v691
      %v693 = vmul.f32 %v690, %v692
      %v694 = vadd.f32 %v690, %v693
      %vm695 = vweird.f32 %v584
      %vm696 = vweird.f32 %v690
      %vm697 = vmor %vm695, %vm696
      %v698 = vsel %vm697, %v690, %v694
      %v699 = vand.u32 2147483647, %v584
      %vm700 = vcmp.eq.f32.partialorder %v699, 8.507059e+37
      %v701 = vand.u32 %v584, 2147483648
      %v702 = vor.u32 1.1754944e-38, %v701
      %v703 = vsel %vm700, %v702, %v698
      %v704 = vmul.f32 1.0, %v703
      %705 = vst [vmem:[%s226] sm:$0xff] %v599
      %706 = vst [vmem:[%s226 + $0x8] sm:$0xff] %v614
      %707 = vst [vmem:[%s226 + $0x10] sm:$0xff] %v629
      %708 = vst [vmem:[%s226 + $0x18] sm:$0xff] %v644
      %709 = vst [vmem:[%s226 + $0x20] sm:$0xff] %v659
      %710 = vst [vmem:[%s226 + $0x28] sm:$0xff] %v674
      %711 = vst [vmem:[%s226 + $0x30] sm:$0xff] %v689
      %712 = vst [vmem:[%s226 + $0x38] sm:$0xff] %v704
      %s713 = smul.u32 8, %s18
      %p714 = scmp.lt.s32.totalorder %s713, 15
      %s715 = scalar_select %p714, %s713, 15
      %p716 = scmp.lt.s32.totalorder %s19, 0
      %s717 = scalar_select %p716, %s19, 0
      %s718 = sadd.s32 %s717, %s715
      %s719 = smul.addr %s718, 8
      %s720 = scalar_lea.vmem %s3, %s719
      // Predicated region
      $region33: #{conv_vae_forward.13} parent=31 // pred_check
        %p721 = pneg %p124
      $region34: #{conv_vae_forward.13} parent=31 // pred_check_branch
        %723 = sbr.rel (%p721) target = $region36
      $region35: #{conv_vae_forward.13} parent=31 // pred_region
        %s724 = smul.u32 8, %s18
      $region36: #{conv_vae_forward.13} parent=31 // pred_fallthru
        _
    $region32: #{conv_vae_forward.13} parent=5 // pred_fallthru
      _
    %p725 = scmp.le.s32.totalorder 2, %s9
    // Predicated region
    $region37: #{conv_vae_forward.13} parent=5 // pred_check
      %p726 = pneg %p725
    $region38: #{conv_vae_forward.13} parent=5 // pred_check_branch
      %728 = sbr.rel (%p726) target = $region40
    $region39: #{conv_vae_forward.13} parent=5 // pred_region
      %s729 = ssub.s32 %s9, 2
      // Predicated region
      $region41: #{conv_vae_forward.13} parent=39 // pred_check
        %p730 = pneg %p130
      $region42: #{conv_vae_forward.13} parent=39 // pred_check_branch
        %732 = sbr.rel (%p730) target = $region44
      $region43: #{conv_vae_forward.13} parent=39 // pred_region
        %s733 = smul.u32 8, %s20
        %p734 = scmp.lt.s32.totalorder %s733, 15
        %s735 = scalar_select %p734, %s733, 15
        %p736 = scmp.lt.s32.totalorder %s21, 0
        %s737 = scalar_select %p736, %s21, 0
        %s738 = sadd.s32 %s737, %s735
        %s739 = smul.addr %s738, 8
        %s740 = scalar_lea.vmem %s3, %s739
      $region44: #{conv_vae_forward.13} parent=39 // pred_fallthru
        _
    $region40: #{conv_vae_forward.13} parent=5 // pred_fallthru
      _
  $region6: #{conv_vae_forward.13} parent=0 // loop_footer
    %s13 = sadd.s32 1, %s9
  $region7: #{conv_vae_forward.13} parent=0 // loop_footer_branch
    %8 = sbr.rel target = $region3
  $region8: #{conv_vae_forward.13} parent=0 // loop_exit
    _

</llo_original>
